<compile_context>
chip_gen: v7x
topology: tpu7x:2x2x1
jax: 0.10.0
libtpu: 0.0.40
codegen_flags: <defaults>
</compile_context>

<pallas_src>
import jax
import jax.numpy as jnp
import numpy as np
from jax.experimental import pallas as pl
from jax.experimental.pallas import tpu as pltpu


def _round_up(x, m):
    return ((x + m - 1) // m) * m


def _sigmoid_via_tanh(x):
    # logistic(x) = 0.5*tanh(0.5*x) + 0.5 : one EUP transcendental instead of
    # exp + reciprocal, keeps the EUP slot off the critical path on v7x.
    return 0.5 * jnp.tanh(0.5 * x) + 0.5


def _metalearner_kernel(gp_ref, grad_ref, ci_ref, wl_ref, wm_ref,
                        h_ref, c_ref, fic_ref):
    gp = gp_ref[...]                      # (G, TN)  grad_prep, lane-major (N on lanes)
    wl = wl_ref[...]                      # (H, 3*(G+1)) per-gate [wx_0..wx_{G-1}, folded bias]
    G = gp.shape[0]
    H = wl.shape[0]
    stride = G + 1

    def pre_gate(k):                      # G is tiny -> VPU broadcast-FMAs, no MXU needed
        base = k * stride
        acc = wl[:, base + G:base + G + 1]            # folded bias (H, 1)
        for j in range(G):
            acc = acc + wl[:, base + j:base + j + 1] * gp[j:j + 1, :]
        return acc                                     # (H, TN)

    # --- nn.LSTMCell, hx=None: h_prev = c_prev = 0 -> forget gate and W_hh drop out ---
    i_g = _sigmoid_via_tanh(pre_gate(0))
    g_g = jnp.tanh(pre_gate(1))
    o_g = _sigmoid_via_tanh(pre_gate(2))
    c_lstm = i_g * g_g                    # f_g * 0 + i_g * g_g
    h = o_g * jnp.tanh(c_lstm)
    h_ref[...] = h                        # lane-dense (H, TN) stores
    c_ref[...] = c_lstm

    # --- MetaLSTMCell, hx=None: f_prev = i_prev = 0, c_prev = cI ---
    # (2x20)@(20xTN) is >98% MXU padding -> do it as 2*H scalar-broadcast FMAs on the VPU.
    wm = wm_ref[...]                      # (2, H+2): rows [WF_x(H), w_c, bF], [WI_x(H), w_c, bI]
    ci = ci_ref[...]                      # (1, TN)
    grad = grad_ref[...]                  # (1, TN)
    f_acc = wm[0:1, H:H + 1] * ci + wm[0:1, H + 1:H + 2]
    i_acc = wm[1:2, H:H + 1] * ci + wm[1:2, H + 1:H + 2]
    for j in range(H):
        hj = h[j:j + 1, :]
        f_acc = f_acc + wm[0:1, j:j + 1] * hj
        i_acc = i_acc + wm[1:2, j:j + 1] * hj
    c_next = _sigmoid_via_tanh(f_acc) * ci - _sigmoid_via_tanh(i_acc) * grad
    fic_ref[0:1, :] = f_acc               # direct row stores (no concatenate temporary)
    fic_ref[1:2, :] = i_acc
    fic_ref[2:3, :] = c_next


def init_metalearner_params(key, input_size, hidden_size, n_learner_params):
    """Synthetic init matching the PyTorch module's init distributions (native layout)."""
    IN, H, N = input_size, hidden_size, n_learner_params
    ks = jax.random.split(key, 9)
    k = 1.0 / float(H) ** 0.5
    # nn.LSTMCell params, U(-1/sqrt(H), 1/sqrt(H)), gate order i,f,g,o along dim 0.
    weight_ih = jax.random.uniform(ks[0], (4 * H, IN), jnp.float32, -k, k)
    weight_hh = jax.random.uniform(ks[1], (4 * H, H), jnp.float32, -k, k)   # unused when hs=None
    bias_ih = jax.random.uniform(ks[2], (4 * H,), jnp.float32, -k, k)
    bias_hh = jax.random.uniform(ks[3], (4 * H,), jnp.float32, -k, k)
    # MetaLSTMCell params.
    WF = jax.random.uniform(ks[4], (H + 2, 1), jnp.float32, -0.01, 0.01)
    WI = jax.random.uniform(ks[5], (H + 2, 1), jnp.float32, -0.01, 0.01)
    cI = jax.random.uniform(ks[6], (N, 1), jnp.float32, -0.01, 0.01)
    bF = jax.random.uniform(ks[7], (1, 1), jnp.float32, 4.0, 6.0)
    bI = jax.random.uniform(ks[8], (1, 1), jnp.float32, -5.0, -4.0)
    return dict(weight_ih=weight_ih, weight_hh=weight_hh, bias_ih=bias_ih,
                bias_hh=bias_hh, WF=WF, WI=WI, cI=cI, bF=bF, bI=bI)


def metalearner_forward(params, loss, grad_prep, grad, hidden_size,
                        tile_n=8192, state_layout="lane_major"):
    """MetaLearner.forward (hs=None path).

    Returns (theta_next, [(lstmhx, lstmcx), [f_next, i_next, c_next]]).

    With state_layout="lane_major" (default, fastest) the internal LSTM recurrent
    state is returned as (hidden_size, N) — identical values to PyTorch's
    (N, hidden_size) tensors, just transposed — avoiding two full HBM passes.
    Pass state_layout="torch" for the exact PyTorch layout.
    """
    # TODO(synk): recurrent-state threading (hs != None across meta-steps) is not wired in;
    # this implements the module's default hs=None path exactly.
    N, G = grad_prep.shape
    L = loss.shape[1]
    H = hidden_size
    f32 = jnp.float32

    # ---- host-side weight prep (tiny, O(H) work) ----
    w4 = params["weight_ih"].astype(f32).reshape(4, H, L + G)        # gate-major [i,f,g,o]
    bias4 = (params["bias_ih"] + params["bias_hh"]).astype(f32).reshape(4, H)
    # fold the N-replicated loss columns of xn_lstm into the bias: b' = b + Wih[:, :L] @ loss
    b_fold = bias4 + jnp.einsum("ghl,l->gh", w4[:, :, :L], loss[0].astype(f32))
    gsel = jnp.array([0, 2, 3])                 # keep gates i, g, o (forget gate * 0 dropped)
    wx = w4[gsel][:, :, L:]                     # (3, H, G)
    w_lstm = jnp.concatenate([wx, b_fold[gsel][:, :, None]], axis=-1)     # (3, H, G+1)
    w_lstm = jnp.transpose(w_lstm, (1, 0, 2)).reshape(H, 3 * (G + 1))     # (H, 3*(G+1))

    WF = params["WF"].astype(f32)
    WI = params["WI"].astype(f32)
    row_f = jnp.concatenate([WF[:H + 1, 0], params["bF"].astype(f32)[0]])  # [WF_x(H), w_c, bF]
    row_i = jnp.concatenate([WI[:H + 1, 0], params["bI"].astype(f32)[0]])  # [WI_x(H), w_c, bI]
    w_meta = jnp.stack([row_f, row_i], axis=0)                             # (2, H+2)

    # ---- lane-major per-param streams: learner-parameter axis N on lanes, NO padding ----
    gp_t = grad_prep.astype(f32).T              # (G, N)   only unavoidable host relayout
    grad_t = grad.astype(f32).reshape(1, N)     # (1, N)   free reshape
    ci_t = params["cI"].astype(f32).reshape(1, N)

    # Tile selection: big tiles amortize the ~0.35us/step overhead; keep >= 2 grid steps
    # so v7x megacore ("parallel" axis) uses both TensorCores; boundary block is masked
    # by Pallas so no host padding to a tile multiple is required.
    n128 = _round_up(N, 128)
    tile = min(_round_up(max(int(tile_n), 128), 128), n128)
    if tile >= n128 and n128 >= 256:
        tile = _round_up(pl.cdiv(n128, 2), 128)
    grid = pl.cdiv(N, tile)

    # Rough VMEM estimate (double-buffered blocks + in-body (H, tile) temporaries);
    # only raise the scoped limit when the default would be too small (large tile_n).
    est_vmem = 4 * tile * (2 * ((G + 2) + (2 * H + 3)) + 10 * H)
    vmem_limit = None if est_vmem <= 14 * 1024 * 1024 else min(2 * est_vmem, 60 * 1024 * 1024)

    row = lambda r: pl.BlockSpec((r, tile), lambda n: (0, n))
    full = lambda a: pl.BlockSpec(a.shape, lambda n: (0, 0))

    h_t, c_t, fic = pl.pallas_call(
        _metalearner_kernel,
        out_shape=(jax.ShapeDtypeStruct((H, N), f32),    # lstm h, lane-major
                   jax.ShapeDtypeStruct((H, N), f32),    # lstm c, lane-major
                   jax.ShapeDtypeStruct((3, N), f32)),   # [f_next; i_next; c_next]
        grid_spec=pltpu.PrefetchScalarGridSpec(
            num_scalar_prefetch=0,
            grid=(grid,),
            in_specs=[row(G), row(1), row(1), full(w_lstm), full(w_meta)],
            out_specs=(row(H), row(H), row(3)),
        ),
        compiler_params=pltpu.CompilerParams(
            dimension_semantics=("parallel",),
            vmem_limit_bytes=vmem_limit),
    )(gp_t, grad_t, ci_t, w_lstm, w_meta)

    if state_layout == "torch":
        lstmhx, lstmcx = h_t.T, c_t.T          # two extra 80 B/param HBM passes each
    else:
        lstmhx, lstmcx = h_t, c_t              # (H, N) lane-major recurrent state

    c_row = fic[2]                              # (N,) — sliced once, reused for both outputs
    f_next = fic[0].reshape(N, 1)
    i_next = fic[1].reshape(N, 1)
    c_next = c_row.reshape(N, 1)
    theta_next = c_row
    return theta_next, [(lstmhx, lstmcx), [f_next, i_next, c_next]]


def _reference_forward(params, loss, grad_prep, grad, H):
    """Pure-JAX re-statement of the PyTorch forward (hs=None) for verification."""
    N = grad_prep.shape[0]
    xn = jnp.concatenate([jnp.broadcast_to(loss, grad_prep.shape), grad_prep], axis=1)
    gates = xn @ params["weight_ih"].T + params["bias_ih"] + params["bias_hh"]  # h_prev = 0
    i_g, f_g, g_g, o_g = jnp.split(gates, 4, axis=1)
    i_g, f_g, o_g = jax.nn.sigmoid(i_g), jax.nn.sigmoid(f_g), jax.nn.sigmoid(o_g)
    g_g = jnp.tanh(g_g)
    c = i_g * g_g                                # c_prev = 0
    h = o_g * jnp.tanh(c)
    c_prev = params["cI"]
    zeros = jnp.zeros((N, 1), jnp.float32)
    f_next = jnp.concatenate([h, c_prev, zeros], axis=1) @ params["WF"] + params["bF"]
    i_next = jnp.concatenate([h, c_prev, zeros], axis=1) @ params["WI"] + params["bI"]
    c_next = jax.nn.sigmoid(f_next) * c_prev - jax.nn.sigmoid(i_next) * grad.reshape(N, 1)
    return c_next[:, 0], h, c, f_next, i_next, c_next


if __name__ == "__main__":
    input_size, hidden_size, n_learner_params = 4, 20, 5000  # >=2 grid steps + masked tail

    key = jax.random.PRNGKey(0)
    kp, kl, kg, kgr = jax.random.split(key, 4)
    params = init_metalearner_params(kp, input_size, hidden_size, n_learner_params)

    loss = jax.random.normal(kl, (1, 2), jnp.float32)
    grad_prep = jax.random.normal(kg, (n_learner_params, 2), jnp.float32)
    grad = jax.random.normal(kgr, (n_learner_params,), jnp.float32)

    fwd = jax.jit(metalearner_forward,
                  static_argnames=("hidden_size", "tile_n", "state_layout"))
    theta_next, (lstm_state, metalstm_state) = fwd(
        params, loss, grad_prep, grad, hidden_size=hidden_size, tile_n=8192)
    jax.block_until_ready(theta_next)

    # shape checks: theta_next and the MetaLSTM state keep PyTorch shapes; the LSTM
    # recurrent state is returned lane-major (hidden, N) == PyTorch tensors transposed.
    assert theta_next.shape == (n_learner_params,)
    assert lstm_state[0].shape == (hidden_size, n_learner_params)
    assert lstm_state[1].shape == (hidden_size, n_learner_params)
    assert metalstm_state[0].shape == (n_learner_params, 1)
    assert metalstm_state[1].shape == (n_learner_params, 1)
    assert metalstm_state[2].shape == (n_learner_params, 1)

    # numerical check against a pure-JAX reference of the PyTorch forward
    t_ref, h_ref, c_ref, f_ref, i_ref, cn_ref = _reference_forward(
        params, loss, grad_prep, grad, hidden_size)
    np.testing.assert_allclose(np.asarray(theta_next), np.asarray(t_ref), rtol=2e-4, atol=2e-5)
    np.testing.assert_allclose(np.asarray(lstm_state[0]), np.asarray(h_ref).T, rtol=2e-4, atol=2e-5)
    np.testing.assert_allclose(np.asarray(lstm_state[1]), np.asarray(c_ref).T, rtol=2e-4, atol=2e-5)
    np.testing.assert_allclose(np.asarray(metalstm_state[0]), np.asarray(f_ref), rtol=2e-4, atol=2e-5)
    np.testing.assert_allclose(np.asarray(metalstm_state[1]), np.asarray(i_ref), rtol=2e-4, atol=2e-5)
    np.testing.assert_allclose(np.asarray(metalstm_state[2]), np.asarray(cn_ref), rtol=2e-4, atol=2e-5)

    print("KERNEL_OK")
</pallas_src>

<mosaic_0001>
module attributes {stable_mosaic.version = 11 : i64} {
  func.func @_metalearner_kernel(%arg0: i32, %arg1: memref<2x2560xf32, #tpu.memory_space<vmem>>, %arg2: memref<1x2560xf32, #tpu.memory_space<vmem>>, %arg3: memref<1x2560xf32, #tpu.memory_space<vmem>>, %arg4: memref<20x9xf32, #tpu.memory_space<vmem>>, %arg5: memref<2x22xf32, #tpu.memory_space<vmem>>, %arg6: memref<20x2560xf32, #tpu.memory_space<vmem>>, %arg7: memref<20x2560xf32, #tpu.memory_space<vmem>>, %arg8: memref<3x2560xf32, #tpu.memory_space<vmem>>) attributes {dimension_semantics = [#tpu.dimension_semantics<parallel>], iteration_bounds = array<i64: 2>, scalar_prefetch = 0 : i64, scratch_operands = 0 : i64, tpu.core_type = #tpu.core_type<tc>, window_params = [{transform_indices = @transform_0, window_bounds = array<i64: 2, 2560>}, {transform_indices = @transform_1, window_bounds = array<i64: 1, 2560>}, {transform_indices = @transform_2, window_bounds = array<i64: 1, 2560>}, {pipeline_mode = #tpu.pipeline_mode<synchronous>, transform_indices = @transform_3, window_bounds = array<i64: 20, 9>}, {pipeline_mode = #tpu.pipeline_mode<synchronous>, transform_indices = @transform_4, window_bounds = array<i64: 2, 22>}, {transform_indices = @transform_5, window_bounds = array<i64: 20, 2560>}, {transform_indices = @transform_6, window_bounds = array<i64: 20, 2560>}, {transform_indices = @transform_7, window_bounds = array<i64: 3, 2560>}]} {
    %c0 = arith.constant 0 : index
    %c0_0 = arith.constant 0 : index
    %0 = vector.load %arg1[%c0, %c0_0] : memref<2x2560xf32, #tpu.memory_space<vmem>>, vector<2x2560xf32>
    %c0_1 = arith.constant 0 : index
    %c0_2 = arith.constant 0 : index
    %1 = vector.load %arg4[%c0_1, %c0_2] : memref<20x9xf32, #tpu.memory_space<vmem>>, vector<20x9xf32>
    %2 = vector.extract_strided_slice %1 {offsets = [0, 2], sizes = [20, 1], strides = [1, 1]} : vector<20x9xf32> to vector<20x1xf32>
    %3 = vector.extract_strided_slice %1 {offsets = [0, 0], sizes = [20, 1], strides = [1, 1]} : vector<20x9xf32> to vector<20x1xf32>
    %4 = vector.extract_strided_slice %0 {offsets = [0, 0], sizes = [1, 2560], strides = [1, 1]} : vector<2x2560xf32> to vector<1x2560xf32>
    %5 = vector.broadcast %3 : vector<20x1xf32> to vector<20x2560xf32>
    %6 = vector.broadcast %4 : vector<1x2560xf32> to vector<20x2560xf32>
    %7 = arith.mulf %5, %6 : vector<20x2560xf32>
    %8 = vector.broadcast %2 : vector<20x1xf32> to vector<20x2560xf32>
    %9 = arith.addf %8, %7 : vector<20x2560xf32>
    %10 = vector.extract_strided_slice %1 {offsets = [0, 1], sizes = [20, 1], strides = [1, 1]} : vector<20x9xf32> to vector<20x1xf32>
    %11 = vector.extract_strided_slice %0 {offsets = [1, 0], sizes = [1, 2560], strides = [1, 1]} : vector<2x2560xf32> to vector<1x2560xf32>
    %12 = vector.broadcast %10 : vector<20x1xf32> to vector<20x2560xf32>
    %13 = vector.broadcast %11 : vector<1x2560xf32> to vector<20x2560xf32>
    %14 = arith.mulf %12, %13 : vector<20x2560xf32>
    %15 = arith.addf %9, %14 : vector<20x2560xf32>
    %cst = arith.constant 5.000000e-01 : f32
    %16 = vector.broadcast %cst : f32 to vector<20x2560xf32>
    %17 = arith.mulf %16, %15 : vector<20x2560xf32>
    %18 = math.tanh %17 : vector<20x2560xf32>
    %cst_3 = arith.constant 5.000000e-01 : f32
    %19 = vector.broadcast %cst_3 : f32 to vector<20x2560xf32>
    %20 = arith.mulf %19, %18 : vector<20x2560xf32>
    %cst_4 = arith.constant 5.000000e-01 : f32
    %21 = vector.broadcast %cst_4 : f32 to vector<20x2560xf32>
    %22 = arith.addf %20, %21 : vector<20x2560xf32>
    %23 = vector.extract_strided_slice %1 {offsets = [0, 5], sizes = [20, 1], strides = [1, 1]} : vector<20x9xf32> to vector<20x1xf32>
    %24 = vector.extract_strided_slice %1 {offsets = [0, 3], sizes = [20, 1], strides = [1, 1]} : vector<20x9xf32> to vector<20x1xf32>
    %25 = vector.extract_strided_slice %0 {offsets = [0, 0], sizes = [1, 2560], strides = [1, 1]} : vector<2x2560xf32> to vector<1x2560xf32>
    %26 = vector.broadcast %24 : vector<20x1xf32> to vector<20x2560xf32>
    %27 = vector.broadcast %25 : vector<1x2560xf32> to vector<20x2560xf32>
    %28 = arith.mulf %26, %27 : vector<20x2560xf32>
    %29 = vector.broadcast %23 : vector<20x1xf32> to vector<20x2560xf32>
    %30 = arith.addf %29, %28 : vector<20x2560xf32>
    %31 = vector.extract_strided_slice %1 {offsets = [0, 4], sizes = [20, 1], strides = [1, 1]} : vector<20x9xf32> to vector<20x1xf32>
    %32 = vector.extract_strided_slice %0 {offsets = [1, 0], sizes = [1, 2560], strides = [1, 1]} : vector<2x2560xf32> to vector<1x2560xf32>
    %33 = vector.broadcast %31 : vector<20x1xf32> to vector<20x2560xf32>
    %34 = vector.broadcast %32 : vector<1x2560xf32> to vector<20x2560xf32>
    %35 = arith.mulf %33, %34 : vector<20x2560xf32>
    %36 = arith.addf %30, %35 : vector<20x2560xf32>
    %37 = math.tanh %36 : vector<20x2560xf32>
    %38 = vector.extract_strided_slice %1 {offsets = [0, 8], sizes = [20, 1], strides = [1, 1]} : vector<20x9xf32> to vector<20x1xf32>
    %39 = vector.extract_strided_slice %1 {offsets = [0, 6], sizes = [20, 1], strides = [1, 1]} : vector<20x9xf32> to vector<20x1xf32>
    %40 = vector.extract_strided_slice %0 {offsets = [0, 0], sizes = [1, 2560], strides = [1, 1]} : vector<2x2560xf32> to vector<1x2560xf32>
    %41 = vector.broadcast %39 : vector<20x1xf32> to vector<20x2560xf32>
    %42 = vector.broadcast %40 : vector<1x2560xf32> to vector<20x2560xf32>
    %43 = arith.mulf %41, %42 : vector<20x2560xf32>
    %44 = vector.broadcast %38 : vector<20x1xf32> to vector<20x2560xf32>
    %45 = arith.addf %44, %43 : vector<20x2560xf32>
    %46 = vector.extract_strided_slice %1 {offsets = [0, 7], sizes = [20, 1], strides = [1, 1]} : vector<20x9xf32> to vector<20x1xf32>
    %47 = vector.extract_strided_slice %0 {offsets = [1, 0], sizes = [1, 2560], strides = [1, 1]} : vector<2x2560xf32> to vector<1x2560xf32>
    %48 = vector.broadcast %46 : vector<20x1xf32> to vector<20x2560xf32>
    %49 = vector.broadcast %47 : vector<1x2560xf32> to vector<20x2560xf32>
    %50 = arith.mulf %48, %49 : vector<20x2560xf32>
    %51 = arith.addf %45, %50 : vector<20x2560xf32>
    %cst_5 = arith.constant 5.000000e-01 : f32
    %52 = vector.broadcast %cst_5 : f32 to vector<20x2560xf32>
    %53 = arith.mulf %52, %51 : vector<20x2560xf32>
    %54 = math.tanh %53 : vector<20x2560xf32>
    %cst_6 = arith.constant 5.000000e-01 : f32
    %55 = vector.broadcast %cst_6 : f32 to vector<20x2560xf32>
    %56 = arith.mulf %55, %54 : vector<20x2560xf32>
    %cst_7 = arith.constant 5.000000e-01 : f32
    %57 = vector.broadcast %cst_7 : f32 to vector<20x2560xf32>
    %58 = arith.addf %56, %57 : vector<20x2560xf32>
    %59 = arith.mulf %22, %37 : vector<20x2560xf32>
    %60 = math.tanh %59 : vector<20x2560xf32>
    %61 = arith.mulf %58, %60 : vector<20x2560xf32>
    %c0_8 = arith.constant 0 : index
    %c0_9 = arith.constant 0 : index
    %62 = vector.load %arg6[%c0_8, %c0_9] : memref<20x2560xf32, #tpu.memory_space<vmem>>, vector<20x2560xf32>
    tpu.vector_store %arg6[%c0_8, %c0_9], %61 {strides = array<i32>} : memref<20x2560xf32, #tpu.memory_space<vmem>>, vector<20x2560xf32>,
    %c0_10 = arith.constant 0 : index
    %c0_11 = arith.constant 0 : index
    %63 = vector.load %arg7[%c0_10, %c0_11] : memref<20x2560xf32, #tpu.memory_space<vmem>>, vector<20x2560xf32>
    tpu.vector_store %arg7[%c0_10, %c0_11], %59 {strides = array<i32>} : memref<20x2560xf32, #tpu.memory_space<vmem>>, vector<20x2560xf32>,
    %c0_12 = arith.constant 0 : index
    %c0_13 = arith.constant 0 : index
    %64 = vector.load %arg5[%c0_12, %c0_13] : memref<2x22xf32, #tpu.memory_space<vmem>>, vector<2x22xf32>
    %c0_14 = arith.constant 0 : index
    %c0_15 = arith.constant 0 : index
    %65 = vector.load %arg3[%c0_14, %c0_15] : memref<1x2560xf32, #tpu.memory_space<vmem>>, vector<1x2560xf32>
    %c0_16 = arith.constant 0 : index
    %c0_17 = arith.constant 0 : index
    %66 = vector.load %arg2[%c0_16, %c0_17] : memref<1x2560xf32, #tpu.memory_space<vmem>>, vector<1x2560xf32>
    %67 = vector.extract_strided_slice %64 {offsets = [0, 20], sizes = [1, 1], strides = [1, 1]} : vector<2x22xf32> to vector<1x1xf32>
    %68 = vector.broadcast %67 : vector<1x1xf32> to vector<1x2560xf32>
    %69 = arith.mulf %68, %65 : vector<1x2560xf32>
    %70 = vector.extract_strided_slice %64 {offsets = [0, 21], sizes = [1, 1], strides = [1, 1]} : vector<2x22xf32> to vector<1x1xf32>
    %71 = vector.broadcast %70 : vector<1x1xf32> to vector<1x2560xf32>
    %72 = arith.addf %69, %71 : vector<1x2560xf32>
    %73 = vector.extract_strided_slice %64 {offsets = [1, 20], sizes = [1, 1], strides = [1, 1]} : vector<2x22xf32> to vector<1x1xf32>
    %74 = vector.broadcast %73 : vector<1x1xf32> to vector<1x2560xf32>
    %75 = arith.mulf %74, %65 : vector<1x2560xf32>
    %76 = vector.extract_strided_slice %64 {offsets = [1, 21], sizes = [1, 1], strides = [1, 1]} : vector<2x22xf32> to vector<1x1xf32>
    %77 = vector.broadcast %76 : vector<1x1xf32> to vector<1x2560xf32>
    %78 = arith.addf %75, %77 : vector<1x2560xf32>
    %79 = vector.extract_strided_slice %61 {offsets = [0, 0], sizes = [1, 2560], strides = [1, 1]} : vector<20x2560xf32> to vector<1x2560xf32>
    %80 = vector.extract_strided_slice %64 {offsets = [0, 0], sizes = [1, 1], strides = [1, 1]} : vector<2x22xf32> to vector<1x1xf32>
    %81 = vector.broadcast %80 : vector<1x1xf32> to vector<1x2560xf32>
    %82 = arith.mulf %81, %79 : vector<1x2560xf32>
    %83 = arith.addf %72, %82 : vector<1x2560xf32>
    %84 = vector.extract_strided_slice %64 {offsets = [1, 0], sizes = [1, 1], strides = [1, 1]} : vector<2x22xf32> to vector<1x1xf32>
    %85 = vector.broadcast %84 : vector<1x1xf32> to vector<1x2560xf32>
    %86 = arith.mulf %85, %79 : vector<1x2560xf32>
    %87 = arith.addf %78, %86 : vector<1x2560xf32>
    %88 = vector.extract_strided_slice %61 {offsets = [1, 0], sizes = [1, 2560], strides = [1, 1]} : vector<20x2560xf32> to vector<1x2560xf32>
    %89 = vector.extract_strided_slice %64 {offsets = [0, 1], sizes = [1, 1], strides = [1, 1]} : vector<2x22xf32> to vector<1x1xf32>
    %90 = vector.broadcast %89 : vector<1x1xf32> to vector<1x2560xf32>
    %91 = arith.mulf %90, %88 : vector<1x2560xf32>
    %92 = arith.addf %83, %91 : vector<1x2560xf32>
    %93 = vector.extract_strided_slice %64 {offsets = [1, 1], sizes = [1, 1], strides = [1, 1]} : vector<2x22xf32> to vector<1x1xf32>
    %94 = vector.broadcast %93 : vector<1x1xf32> to vector<1x2560xf32>
    %95 = arith.mulf %94, %88 : vector<1x2560xf32>
    %96 = arith.addf %87, %95 : vector<1x2560xf32>
    %97 = vector.extract_strided_slice %61 {offsets = [2, 0], sizes = [1, 2560], strides = [1, 1]} : vector<20x2560xf32> to vector<1x2560xf32>
    %98 = vector.extract_strided_slice %64 {offsets = [0, 2], sizes = [1, 1], strides = [1, 1]} : vector<2x22xf32> to vector<1x1xf32>
    %99 = vector.broadcast %98 : vector<1x1xf32> to vector<1x2560xf32>
    %100 = arith.mulf %99, %97 : vector<1x2560xf32>
    %101 = arith.addf %92, %100 : vector<1x2560xf32>
    %102 = vector.extract_strided_slice %64 {offsets = [1, 2], sizes = [1, 1], strides = [1, 1]} : vector<2x22xf32> to vector<1x1xf32>
    %103 = vector.broadcast %102 : vector<1x1xf32> to vector<1x2560xf32>
    %104 = arith.mulf %103, %97 : vector<1x2560xf32>
    %105 = arith.addf %96, %104 : vector<1x2560xf32>
    %106 = vector.extract_strided_slice %61 {offsets = [3, 0], sizes = [1, 2560], strides = [1, 1]} : vector<20x2560xf32> to vector<1x2560xf32>
    %107 = vector.extract_strided_slice %64 {offsets = [0, 3], sizes = [1, 1], strides = [1, 1]} : vector<2x22xf32> to vector<1x1xf32>
    %108 = vector.broadcast %107 : vector<1x1xf32> to vector<1x2560xf32>
    %109 = arith.mulf %108, %106 : vector<1x2560xf32>
    %110 = arith.addf %101, %109 : vector<1x2560xf32>
    %111 = vector.extract_strided_slice %64 {offsets = [1, 3], sizes = [1, 1], strides = [1, 1]} : vector<2x22xf32> to vector<1x1xf32>
    %112 = vector.broadcast %111 : vector<1x1xf32> to vector<1x2560xf32>
    %113 = arith.mulf %112, %106 : vector<1x2560xf32>
    %114 = arith.addf %105, %113 : vector<1x2560xf32>
    %115 = vector.extract_strided_slice %61 {offsets = [4, 0], sizes = [1, 2560], strides = [1, 1]} : vector<20x2560xf32> to vector<1x2560xf32>
    %116 = vector.extract_strided_slice %64 {offsets = [0, 4], sizes = [1, 1], strides = [1, 1]} : vector<2x22xf32> to vector<1x1xf32>
    %117 = vector.broadcast %116 : vector<1x1xf32> to vector<1x2560xf32>
    %118 = arith.mulf %117, %115 : vector<1x2560xf32>
    %119 = arith.addf %110, %118 : vector<1x2560xf32>
    %120 = vector.extract_strided_slice %64 {offsets = [1, 4], sizes = [1, 1], strides = [1, 1]} : vector<2x22xf32> to vector<1x1xf32>
    %121 = vector.broadcast %120 : vector<1x1xf32> to vector<1x2560xf32>
    %122 = arith.mulf %121, %115 : vector<1x2560xf32>
    %123 = arith.addf %114, %122 : vector<1x2560xf32>
    %124 = vector.extract_strided_slice %61 {offsets = [5, 0], sizes = [1, 2560], strides = [1, 1]} : vector<20x2560xf32> to vector<1x2560xf32>
    %125 = vector.extract_strided_slice %64 {offsets = [0, 5], sizes = [1, 1], strides = [1, 1]} : vector<2x22xf32> to vector<1x1xf32>
    %126 = vector.broadcast %125 : vector<1x1xf32> to vector<1x2560xf32>
    %127 = arith.mulf %126, %124 : vector<1x2560xf32>
    %128 = arith.addf %119, %127 : vector<1x2560xf32>
    %129 = vector.extract_strided_slice %64 {offsets = [1, 5], sizes = [1, 1], strides = [1, 1]} : vector<2x22xf32> to vector<1x1xf32>
    %130 = vector.broadcast %129 : vector<1x1xf32> to vector<1x2560xf32>
    %131 = arith.mulf %130, %124 : vector<1x2560xf32>
    %132 = arith.addf %123, %131 : vector<1x2560xf32>
    %133 = vector.extract_strided_slice %61 {offsets = [6, 0], sizes = [1, 2560], strides = [1, 1]} : vector<20x2560xf32> to vector<1x2560xf32>
    %134 = vector.extract_strided_slice %64 {offsets = [0, 6], sizes = [1, 1], strides = [1, 1]} : vector<2x22xf32> to vector<1x1xf32>
    %135 = vector.broadcast %134 : vector<1x1xf32> to vector<1x2560xf32>
    %136 = arith.mulf %135, %133 : vector<1x2560xf32>
    %137 = arith.addf %128, %136 : vector<1x2560xf32>
    %138 = vector.extract_strided_slice %64 {offsets = [1, 6], sizes = [1, 1], strides = [1, 1]} : vector<2x22xf32> to vector<1x1xf32>
    %139 = vector.broadcast %138 : vector<1x1xf32> to vector<1x2560xf32>
    %140 = arith.mulf %139, %133 : vector<1x2560xf32>
    %141 = arith.addf %132, %140 : vector<1x2560xf32>
    %142 = vector.extract_strided_slice %61 {offsets = [7, 0], sizes = [1, 2560], strides = [1, 1]} : vector<20x2560xf32> to vector<1x2560xf32>
    %143 = vector.extract_strided_slice %64 {offsets = [0, 7], sizes = [1, 1], strides = [1, 1]} : vector<2x22xf32> to vector<1x1xf32>
    %144 = vector.broadcast %143 : vector<1x1xf32> to vector<1x2560xf32>
    %145 = arith.mulf %144, %142 : vector<1x2560xf32>
    %146 = arith.addf %137, %145 : vector<1x2560xf32>
    %147 = vector.extract_strided_slice %64 {offsets = [1, 7], sizes = [1, 1], strides = [1, 1]} : vector<2x22xf32> to vector<1x1xf32>
    %148 = vector.broadcast %147 : vector<1x1xf32> to vector<1x2560xf32>
    %149 = arith.mulf %148, %142 : vector<1x2560xf32>
    %150 = arith.addf %141, %149 : vector<1x2560xf32>
    %151 = vector.extract_strided_slice %61 {offsets = [8, 0], sizes = [1, 2560], strides = [1, 1]} : vector<20x2560xf32> to vector<1x2560xf32>
    %152 = vector.extract_strided_slice %64 {offsets = [0, 8], sizes = [1, 1], strides = [1, 1]} : vector<2x22xf32> to vector<1x1xf32>
    %153 = vector.broadcast %152 : vector<1x1xf32> to vector<1x2560xf32>
    %154 = arith.mulf %153, %151 : vector<1x2560xf32>
    %155 = arith.addf %146, %154 : vector<1x2560xf32>
    %156 = vector.extract_strided_slice %64 {offsets = [1, 8], sizes = [1, 1], strides = [1, 1]} : vector<2x22xf32> to vector<1x1xf32>
    %157 = vector.broadcast %156 : vector<1x1xf32> to vector<1x2560xf32>
    %158 = arith.mulf %157, %151 : vector<1x2560xf32>
    %159 = arith.addf %150, %158 : vector<1x2560xf32>
    %160 = vector.extract_strided_slice %61 {offsets = [9, 0], sizes = [1, 2560], strides = [1, 1]} : vector<20x2560xf32> to vector<1x2560xf32>
    %161 = vector.extract_strided_slice %64 {offsets = [0, 9], sizes = [1, 1], strides = [1, 1]} : vector<2x22xf32> to vector<1x1xf32>
    %162 = vector.broadcast %161 : vector<1x1xf32> to vector<1x2560xf32>
    %163 = arith.mulf %162, %160 : vector<1x2560xf32>
    %164 = arith.addf %155, %163 : vector<1x2560xf32>
    %165 = vector.extract_strided_slice %64 {offsets = [1, 9], sizes = [1, 1], strides = [1, 1]} : vector<2x22xf32> to vector<1x1xf32>
    %166 = vector.broadcast %165 : vector<1x1xf32> to vector<1x2560xf32>
    %167 = arith.mulf %166, %160 : vector<1x2560xf32>
    %168 = arith.addf %159, %167 : vector<1x2560xf32>
    %169 = vector.extract_strided_slice %61 {offsets = [10, 0], sizes = [1, 2560], strides = [1, 1]} : vector<20x2560xf32> to vector<1x2560xf32>
    %170 = vector.extract_strided_slice %64 {offsets = [0, 10], sizes = [1, 1], strides = [1, 1]} : vector<2x22xf32> to vector<1x1xf32>
    %171 = vector.broadcast %170 : vector<1x1xf32> to vector<1x2560xf32>
    %172 = arith.mulf %171, %169 : vector<1x2560xf32>
    %173 = arith.addf %164, %172 : vector<1x2560xf32>
    %174 = vector.extract_strided_slice %64 {offsets = [1, 10], sizes = [1, 1], strides = [1, 1]} : vector<2x22xf32> to vector<1x1xf32>
    %175 = vector.broadcast %174 : vector<1x1xf32> to vector<1x2560xf32>
    %176 = arith.mulf %175, %169 : vector<1x2560xf32>
    %177 = arith.addf %168, %176 : vector<1x2560xf32>
    %178 = vector.extract_strided_slice %61 {offsets = [11, 0], sizes = [1, 2560], strides = [1, 1]} : vector<20x2560xf32> to vector<1x2560xf32>
    %179 = vector.extract_strided_slice %64 {offsets = [0, 11], sizes = [1, 1], strides = [1, 1]} : vector<2x22xf32> to vector<1x1xf32>
    %180 = vector.broadcast %179 : vector<1x1xf32> to vector<1x2560xf32>
    %181 = arith.mulf %180, %178 : vector<1x2560xf32>
    %182 = arith.addf %173, %181 : vector<1x2560xf32>
    %183 = vector.extract_strided_slice %64 {offsets = [1, 11], sizes = [1, 1], strides = [1, 1]} : vector<2x22xf32> to vector<1x1xf32>
    %184 = vector.broadcast %183 : vector<1x1xf32> to vector<1x2560xf32>
    %185 = arith.mulf %184, %178 : vector<1x2560xf32>
    %186 = arith.addf %177, %185 : vector<1x2560xf32>
    %187 = vector.extract_strided_slice %61 {offsets = [12, 0], sizes = [1, 2560], strides = [1, 1]} : vector<20x2560xf32> to vector<1x2560xf32>
    %188 = vector.extract_strided_slice %64 {offsets = [0, 12], sizes = [1, 1], strides = [1, 1]} : vector<2x22xf32> to vector<1x1xf32>
    %189 = vector.broadcast %188 : vector<1x1xf32> to vector<1x2560xf32>
    %190 = arith.mulf %189, %187 : vector<1x2560xf32>
    %191 = arith.addf %182, %190 : vector<1x2560xf32>
    %192 = vector.extract_strided_slice %64 {offsets = [1, 12], sizes = [1, 1], strides = [1, 1]} : vector<2x22xf32> to vector<1x1xf32>
    %193 = vector.broadcast %192 : vector<1x1xf32> to vector<1x2560xf32>
    %194 = arith.mulf %193, %187 : vector<1x2560xf32>
    %195 = arith.addf %186, %194 : vector<1x2560xf32>
    %196 = vector.extract_strided_slice %61 {offsets = [13, 0], sizes = [1, 2560], strides = [1, 1]} : vector<20x2560xf32> to vector<1x2560xf32>
    %197 = vector.extract_strided_slice %64 {offsets = [0, 13], sizes = [1, 1], strides = [1, 1]} : vector<2x22xf32> to vector<1x1xf32>
    %198 = vector.broadcast %197 : vector<1x1xf32> to vector<1x2560xf32>
    %199 = arith.mulf %198, %196 : vector<1x2560xf32>
    %200 = arith.addf %191, %199 : vector<1x2560xf32>
    %201 = vector.extract_strided_slice %64 {offsets = [1, 13], sizes = [1, 1], strides = [1, 1]} : vector<2x22xf32> to vector<1x1xf32>
    %202 = vector.broadcast %201 : vector<1x1xf32> to vector<1x2560xf32>
    %203 = arith.mulf %202, %196 : vector<1x2560xf32>
    %204 = arith.addf %195, %203 : vector<1x2560xf32>
    %205 = vector.extract_strided_slice %61 {offsets = [14, 0], sizes = [1, 2560], strides = [1, 1]} : vector<20x2560xf32> to vector<1x2560xf32>
    %206 = vector.extract_strided_slice %64 {offsets = [0, 14], sizes = [1, 1], strides = [1, 1]} : vector<2x22xf32> to vector<1x1xf32>
    %207 = vector.broadcast %206 : vector<1x1xf32> to vector<1x2560xf32>
    %208 = arith.mulf %207, %205 : vector<1x2560xf32>
    %209 = arith.addf %200, %208 : vector<1x2560xf32>
    %210 = vector.extract_strided_slice %64 {offsets = [1, 14], sizes = [1, 1], strides = [1, 1]} : vector<2x22xf32> to vector<1x1xf32>
    %211 = vector.broadcast %210 : vector<1x1xf32> to vector<1x2560xf32>
    %212 = arith.mulf %211, %205 : vector<1x2560xf32>
    %213 = arith.addf %204, %212 : vector<1x2560xf32>
    %214 = vector.extract_strided_slice %61 {offsets = [15, 0], sizes = [1, 2560], strides = [1, 1]} : vector<20x2560xf32> to vector<1x2560xf32>
    %215 = vector.extract_strided_slice %64 {offsets = [0, 15], sizes = [1, 1], strides = [1, 1]} : vector<2x22xf32> to vector<1x1xf32>
    %216 = vector.broadcast %215 : vector<1x1xf32> to vector<1x2560xf32>
    %217 = arith.mulf %216, %214 : vector<1x2560xf32>
    %218 = arith.addf %209, %217 : vector<1x2560xf32>
    %219 = vector.extract_strided_slice %64 {offsets = [1, 15], sizes = [1, 1], strides = [1, 1]} : vector<2x22xf32> to vector<1x1xf32>
    %220 = vector.broadcast %219 : vector<1x1xf32> to vector<1x2560xf32>
    %221 = arith.mulf %220, %214 : vector<1x2560xf32>
    %222 = arith.addf %213, %221 : vector<1x2560xf32>
    %223 = vector.extract_strided_slice %61 {offsets = [16, 0], sizes = [1, 2560], strides = [1, 1]} : vector<20x2560xf32> to vector<1x2560xf32>
    %224 = vector.extract_strided_slice %64 {offsets = [0, 16], sizes = [1, 1], strides = [1, 1]} : vector<2x22xf32> to vector<1x1xf32>
    %225 = vector.broadcast %224 : vector<1x1xf32> to vector<1x2560xf32>
    %226 = arith.mulf %225, %223 : vector<1x2560xf32>
    %227 = arith.addf %218, %226 : vector<1x2560xf32>
    %228 = vector.extract_strided_slice %64 {offsets = [1, 16], sizes = [1, 1], strides = [1, 1]} : vector<2x22xf32> to vector<1x1xf32>
    %229 = vector.broadcast %228 : vector<1x1xf32> to vector<1x2560xf32>
    %230 = arith.mulf %229, %223 : vector<1x2560xf32>
    %231 = arith.addf %222, %230 : vector<1x2560xf32>
    %232 = vector.extract_strided_slice %61 {offsets = [17, 0], sizes = [1, 2560], strides = [1, 1]} : vector<20x2560xf32> to vector<1x2560xf32>
    %233 = vector.extract_strided_slice %64 {offsets = [0, 17], sizes = [1, 1], strides = [1, 1]} : vector<2x22xf32> to vector<1x1xf32>
    %234 = vector.broadcast %233 : vector<1x1xf32> to vector<1x2560xf32>
    %235 = arith.mulf %234, %232 : vector<1x2560xf32>
    %236 = arith.addf %227, %235 : vector<1x2560xf32>
    %237 = vector.extract_strided_slice %64 {offsets = [1, 17], sizes = [1, 1], strides = [1, 1]} : vector<2x22xf32> to vector<1x1xf32>
    %238 = vector.broadcast %237 : vector<1x1xf32> to vector<1x2560xf32>
    %239 = arith.mulf %238, %232 : vector<1x2560xf32>
    %240 = arith.addf %231, %239 : vector<1x2560xf32>
    %241 = vector.extract_strided_slice %61 {offsets = [18, 0], sizes = [1, 2560], strides = [1, 1]} : vector<20x2560xf32> to vector<1x2560xf32>
    %242 = vector.extract_strided_slice %64 {offsets = [0, 18], sizes = [1, 1], strides = [1, 1]} : vector<2x22xf32> to vector<1x1xf32>
    %243 = vector.broadcast %242 : vector<1x1xf32> to vector<1x2560xf32>
    %244 = arith.mulf %243, %241 : vector<1x2560xf32>
    %245 = arith.addf %236, %244 : vector<1x2560xf32>
    %246 = vector.extract_strided_slice %64 {offsets = [1, 18], sizes = [1, 1], strides = [1, 1]} : vector<2x22xf32> to vector<1x1xf32>
    %247 = vector.broadcast %246 : vector<1x1xf32> to vector<1x2560xf32>
    %248 = arith.mulf %247, %241 : vector<1x2560xf32>
    %249 = arith.addf %240, %248 : vector<1x2560xf32>
    %250 = vector.extract_strided_slice %61 {offsets = [19, 0], sizes = [1, 2560], strides = [1, 1]} : vector<20x2560xf32> to vector<1x2560xf32>
    %251 = vector.extract_strided_slice %64 {offsets = [0, 19], sizes = [1, 1], strides = [1, 1]} : vector<2x22xf32> to vector<1x1xf32>
    %252 = vector.broadcast %251 : vector<1x1xf32> to vector<1x2560xf32>
    %253 = arith.mulf %252, %250 : vector<1x2560xf32>
    %254 = arith.addf %245, %253 : vector<1x2560xf32>
    %255 = vector.extract_strided_slice %64 {offsets = [1, 19], sizes = [1, 1], strides = [1, 1]} : vector<2x22xf32> to vector<1x1xf32>
    %256 = vector.broadcast %255 : vector<1x1xf32> to vector<1x2560xf32>
    %257 = arith.mulf %256, %250 : vector<1x2560xf32>
    %258 = arith.addf %249, %257 : vector<1x2560xf32>
    %cst_18 = arith.constant 5.000000e-01 : f32
    %259 = vector.broadcast %cst_18 : f32 to vector<1x2560xf32>
    %260 = arith.mulf %259, %254 : vector<1x2560xf32>
    %261 = math.tanh %260 : vector<1x2560xf32>
    %cst_19 = arith.constant 5.000000e-01 : f32
    %262 = vector.broadcast %cst_19 : f32 to vector<1x2560xf32>
    %263 = arith.mulf %262, %261 : vector<1x2560xf32>
    %cst_20 = arith.constant 5.000000e-01 : f32
    %264 = vector.broadcast %cst_20 : f32 to vector<1x2560xf32>
    %265 = arith.addf %263, %264 : vector<1x2560xf32>
    %266 = arith.mulf %265, %65 : vector<1x2560xf32>
    %cst_21 = arith.constant 5.000000e-01 : f32
    %267 = vector.broadcast %cst_21 : f32 to vector<1x2560xf32>
    %268 = arith.mulf %267, %258 : vector<1x2560xf32>
    %269 = math.tanh %268 : vector<1x2560xf32>
    %cst_22 = arith.constant 5.000000e-01 : f32
    %270 = vector.broadcast %cst_22 : f32 to vector<1x2560xf32>
    %271 = arith.mulf %270, %269 : vector<1x2560xf32>
    %cst_23 = arith.constant 5.000000e-01 : f32
    %272 = vector.broadcast %cst_23 : f32 to vector<1x2560xf32>
    %273 = arith.addf %271, %272 : vector<1x2560xf32>
    %274 = arith.mulf %273, %66 : vector<1x2560xf32>
    %275 = arith.subf %266, %274 : vector<1x2560xf32>
    %c0_24 = arith.constant 0 : index
    %c0_25 = arith.constant 0 : index
    %276 = vector.load %arg8[%c0_24, %c0_25] : memref<3x2560xf32, #tpu.memory_space<vmem>>, vector<1x2560xf32>
    tpu.vector_store %arg8[%c0_24, %c0_25], %254 {strides = array<i32>} : memref<3x2560xf32, #tpu.memory_space<vmem>>, vector<1x2560xf32>,
    %c1 = arith.constant 1 : index
    %c0_26 = arith.constant 0 : index
    %277 = vector.load %arg8[%c1, %c0_26] : memref<3x2560xf32, #tpu.memory_space<vmem>>, vector<1x2560xf32>
    tpu.vector_store %arg8[%c1, %c0_26], %258 {strides = array<i32>} : memref<3x2560xf32, #tpu.memory_space<vmem>>, vector<1x2560xf32>,
    %c2 = arith.constant 2 : index
    %c0_27 = arith.constant 0 : index
    %278 = vector.load %arg8[%c2, %c0_27] : memref<3x2560xf32, #tpu.memory_space<vmem>>, vector<1x2560xf32>
    tpu.vector_store %arg8[%c2, %c0_27], %275 {strides = array<i32>} : memref<3x2560xf32, #tpu.memory_space<vmem>>, vector<1x2560xf32>,
    return
  }
  func.func @transform_0(%arg0: i32) -> (i32, i32) {
    %c0_i32 = arith.constant 0 : i32
    %c0_i32_0 = arith.constant 0 : i32
    return %c0_i32, %arg0 : i32, i32
  }
  func.func @transform_1(%arg0: i32) -> (i32, i32) {
    %c0_i32 = arith.constant 0 : i32
    %c0_i32_0 = arith.constant 0 : i32
    return %c0_i32, %arg0 : i32, i32
  }
  func.func @transform_2(%arg0: i32) -> (i32, i32) {
    %c0_i32 = arith.constant 0 : i32
    %c0_i32_0 = arith.constant 0 : i32
    return %c0_i32, %arg0 : i32, i32
  }
  func.func @transform_3(%arg0: i32) -> (i32, i32) {
    %c0_i32 = arith.constant 0 : i32
    %c0_i32_0 = arith.constant 0 : i32
    %c0_i32_1 = arith.constant 0 : i32
    return %c0_i32, %c0_i32_0 : i32, i32
  }
  func.func @transform_4(%arg0: i32) -> (i32, i32) {
    %c0_i32 = arith.constant 0 : i32
    %c0_i32_0 = arith.constant 0 : i32
    %c0_i32_1 = arith.constant 0 : i32
    return %c0_i32, %c0_i32_0 : i32, i32
  }
  func.func @transform_5(%arg0: i32) -> (i32, i32) {
    %c0_i32 = arith.constant 0 : i32
    %c0_i32_0 = arith.constant 0 : i32
    return %c0_i32, %arg0 : i32, i32
  }
  func.func @transform_6(%arg0: i32) -> (i32, i32) {
    %c0_i32 = arith.constant 0 : i32
    %c0_i32_0 = arith.constant 0 : i32
    return %c0_i32, %arg0 : i32, i32
  }
  func.func @transform_7(%arg0: i32) -> (i32, i32) {
    %c0_i32 = arith.constant 0 : i32
    %c0_i32_0 = arith.constant 0 : i32
    return %c0_i32, %arg0 : i32, i32
  }
}

</mosaic_0001>

<llo_original>
// kernel: metalearner_forward.1
$region0: #{metalearner_forward.1}
  #allocation0 [shape = 'u32[]', space=smem, size = 0x4, offset = 0x4, fixed_abs, tag = 'smem constant byte address 0x4 - core index']
  #allocation1 [shape = 'u32[144,128]{1,0:T(1,128)}', space=vmem, size = 0x12000, scoped, tag = 'internal scratch']
  %s0 = inlined_call_operand.vmem [shape: f32[2,5000], index: 0, kind: input, shape index: {}]
  %s1 = inlined_call_operand.vmem [shape: f32[1,5000], index: 1, kind: input, shape index: {}]
  %s2 = inlined_call_operand.vmem [shape: f32[1,5000], index: 2, kind: input, shape index: {}]
  %s3 = inlined_call_operand.vmem [shape: f32[20,9], index: 3, kind: input, shape index: {}]
  %s4 = inlined_call_operand.vmem [shape: f32[2,22], index: 4, kind: input, shape index: {}]
  %s5 = inlined_call_operand.hbm [shape: f32[20,5000], index: 5, kind: output, shape index: {0}]
  %s6 = inlined_call_operand.hbm [shape: f32[20,5000], index: 6, kind: output, shape index: {1}]
  %s7 = inlined_call_operand.vmem [shape: f32[3,5000], index: 7, kind: output, shape index: {2}]
  %8 = xla_tuple %s5, %s6, %s7
  %s9 = sld [smem:[#allocation0]]
  $region69: #{metalearner_forward.1} parent=0
    _
  %s11 = ssub.s32 1, %s9
  %s12 = scalar_select 0, %s11, %s9
  $region1: #{metalearner_forward.1} parent=0
    #allocation2 [shape = 'u8[491520]{0}', space=vmem, size = 0x78000, scoped, tag = 'output window, operand 0']
    #allocation3 [shape = 's32[2]{0}', space=sflag, size = 0x8, scoped, tag = 'scoped memory for metalearner_forward.1']
    #allocation4 [shape = 'u8[491520]{0}', space=vmem, size = 0x78000, scoped, tag = 'output window, operand 1']
    #allocation5 [shape = 's32[2]{0}', space=sflag, size = 0x8, scoped, tag = 'scoped memory for metalearner_forward.1']
    %13 = vsyncpa [#allocation3], 0
    %s14 = scalar_lea.sflag [#allocation3], 1
    %15 = vsyncpa %s14, 0
    %16 = vsyncpa [#allocation5], 0
    %s17 = scalar_lea.sflag [#allocation5], 1
    %18 = vsyncpa %s17, 0
    loop: start=0, step=1, limit=4
    $region2: #{metalearner_forward.1} parent=1 // loop_pre_header
      _
    $region3: #{metalearner_forward.1} parent=1 // loop_header
      %s20 = sphi 0, %s24
      %p21 = scmp.ge.s32.totalorder %s20, 4
      %s30 = sphi 0, %s32
      %s33 = sphi 0, %s30
      %s34 = sphi 0, %s33
      %s50 = sphi 0, %s34
      %s56 = sphi 0, %s58
      %s59 = sphi 0, %s56
      %s60 = sphi 0, %s59
      %s76 = sphi 0, %s60
      %s82 = sphi 0, %s84
      %s85 = sphi 0, %s82
      %s86 = sphi 0, %s85
      %s102 = sphi 0, %s86
      %s106 = sphi 0, %s106
      %s108 = sphi 0, %s106
      %s109 = sphi 0, %s108
      %s123 = sphi 0, %s109
      %s127 = sphi 0, %s127
      %s129 = sphi 0, %s127
      %s130 = sphi 0, %s129
      %s144 = sphi 0, %s130
      %s150 = sphi 0, %s152
      %s153 = sphi 0, %s150
      %s154 = sphi 0, %s153
      %s170 = sphi 0, %s154
      %s176 = sphi 0, %s178
      %s179 = sphi 0, %s176
      %s180 = sphi 0, %s179
      %s196 = sphi 0, %s180
      %s202 = sphi 0, %s204
      %s205 = sphi 0, %s202
      %s206 = sphi 0, %s205
      %s222 = sphi 0, %s206
    $region4: #{metalearner_forward.1} parent=1 // loop_header_branch
      %23 = sbr.rel (%p21) target = $region8
    $region5: #{metalearner_forward.1} parent=1 // loop_body
      %s25 = ssub.s32 %s20, 1
      %s26 = ssub.s32 %s20, 2
      %s27 = sadd.s32 %s20, 1
      %s28 = ssub.s32 %s20, %s27
      %p29 = scmp.eq.s32.totalorder %s28, 0
      %s31 = sadd.s32 %s30, 1
      %s32 = scalar_select %p29, %s30, %s31
      %p35 = pneg %p29
      %p36 = scmp.eq.s32.totalorder %s20, 1
      %p37 = por %p35, %p36
      %p38 = scmp.ne.s32.totalorder %s30, %s33
      %p39 = scmp.eq.s32.totalorder %s20, 0
      %p40 = por %p38, %p39
      %p41 = scmp.ne.s32.totalorder %s30, %s33
      %p42 = scmp.eq.s32.totalorder %s25, 1
      %p43 = por %p41, %p42
      %p44 = scmp.ne.s32.totalorder %s33, %s34
      %p45 = scmp.eq.s32.totalorder %s25, 0
      %p46 = por %p44, %p45
      %p47 = scmp.ne.s32.totalorder %s33, %s34
      %p48 = scmp.eq.s32.totalorder %s26, 1
      %p49 = por %p47, %p48
      %p51 = scmp.ne.s32.totalorder %s34, %s50
      %p52 = scmp.eq.s32.totalorder %s26, 0
      %p53 = por %p51, %p52
      %s54 = ssub.s32 %s20, %s27
      %p55 = scmp.eq.s32.totalorder %s54, 0
      %s57 = sadd.s32 %s56, 1
      %s58 = scalar_select %p55, %s56, %s57
      %p61 = pneg %p55
      %p62 = scmp.eq.s32.totalorder %s20, 1
      %p63 = por %p61, %p62
      %p64 = scmp.ne.s32.totalorder %s56, %s59
      %p65 = scmp.eq.s32.totalorder %s20, 0
      %p66 = por %p64, %p65
      %p67 = scmp.ne.s32.totalorder %s56, %s59
      %p68 = scmp.eq.s32.totalorder %s25, 1
      %p69 = por %p67, %p68
      %p70 = scmp.ne.s32.totalorder %s59, %s60
      %p71 = scmp.eq.s32.totalorder %s25, 0
      %p72 = por %p70, %p71
      %p73 = scmp.ne.s32.totalorder %s59, %s60
      %p74 = scmp.eq.s32.totalorder %s26, 1
      %p75 = por %p73, %p74
      %p77 = scmp.ne.s32.totalorder %s60, %s76
      %p78 = scmp.eq.s32.totalorder %s26, 0
      %p79 = por %p77, %p78
      %s80 = ssub.s32 %s20, %s27
      %p81 = scmp.eq.s32.totalorder %s80, 0
      %s83 = sadd.s32 %s82, 1
      %s84 = scalar_select %p81, %s82, %s83
      %p87 = pneg %p81
      %p88 = scmp.eq.s32.totalorder %s20, 1
      %p89 = por %p87, %p88
      %p90 = scmp.ne.s32.totalorder %s82, %s85
      %p91 = scmp.eq.s32.totalorder %s20, 0
      %p92 = por %p90, %p91
      %p93 = scmp.ne.s32.totalorder %s82, %s85
      %p94 = scmp.eq.s32.totalorder %s25, 1
      %p95 = por %p93, %p94
      %p96 = scmp.ne.s32.totalorder %s85, %s86
      %p97 = scmp.eq.s32.totalorder %s25, 0
      %p98 = por %p96, %p97
      %p99 = scmp.ne.s32.totalorder %s85, %s86
      %p100 = scmp.eq.s32.totalorder %s26, 1
      %p101 = por %p99, %p100
      %p103 = scmp.ne.s32.totalorder %s86, %s102
      %p104 = scmp.eq.s32.totalorder %s26, 0
      %p105 = por %p103, %p104
      %s107 = sadd.s32 %s106, 1
      %p110 = scmp.eq.s32.totalorder %s20, 1
      %p111 = scmp.ne.s32.totalorder %s106, %s108
      %p112 = scmp.eq.s32.totalorder %s20, 0
      %p113 = por %p111, %p112
      %p114 = scmp.ne.s32.totalorder %s106, %s108
      %p115 = scmp.eq.s32.totalorder %s25, 1
      %p116 = por %p114, %p115
      %p117 = scmp.ne.s32.totalorder %s108, %s109
      %p118 = scmp.eq.s32.totalorder %s25, 0
      %p119 = por %p117, %p118
      %p120 = scmp.ne.s32.totalorder %s108, %s109
      %p121 = scmp.eq.s32.totalorder %s26, 1
      %p122 = por %p120, %p121
      %p124 = scmp.ne.s32.totalorder %s109, %s123
      %p125 = scmp.eq.s32.totalorder %s26, 0
      %p126 = por %p124, %p125
      %s128 = sadd.s32 %s127, 1
      %p131 = scmp.eq.s32.totalorder %s20, 1
      %p132 = scmp.ne.s32.totalorder %s127, %s129
      %p133 = scmp.eq.s32.totalorder %s20, 0
      %p134 = por %p132, %p133
      %p135 = scmp.ne.s32.totalorder %s127, %s129
      %p136 = scmp.eq.s32.totalorder %s25, 1
      %p137 = por %p135, %p136
      %p138 = scmp.ne.s32.totalorder %s129, %s130
      %p139 = scmp.eq.s32.totalorder %s25, 0
      %p140 = por %p138, %p139
      %p141 = scmp.ne.s32.totalorder %s129, %s130
      %p142 = scmp.eq.s32.totalorder %s26, 1
      %p143 = por %p141, %p142
      %p145 = scmp.ne.s32.totalorder %s130, %s144
      %p146 = scmp.eq.s32.totalorder %s26, 0
      %p147 = por %p145, %p146
      %s148 = ssub.s32 %s20, %s27
      %p149 = scmp.eq.s32.totalorder %s148, 0
      %s151 = sadd.s32 %s150, 1
      %s152 = scalar_select %p149, %s150, %s151
      %p155 = pneg %p149
      %p156 = scmp.eq.s32.totalorder %s20, 1
      %p157 = por %p155, %p156
      %p158 = scmp.ne.s32.totalorder %s150, %s153
      %p159 = scmp.eq.s32.totalorder %s20, 0
      %p160 = por %p158, %p159
      %p161 = scmp.ne.s32.totalorder %s150, %s153
      %p162 = scmp.eq.s32.totalorder %s25, 1
      %p163 = por %p161, %p162
      %p164 = scmp.ne.s32.totalorder %s153, %s154
      %p165 = scmp.eq.s32.totalorder %s25, 0
      %p166 = por %p164, %p165
      %p167 = scmp.ne.s32.totalorder %s153, %s154
      %p168 = scmp.eq.s32.totalorder %s26, 1
      %p169 = por %p167, %p168
      %p171 = scmp.ne.s32.totalorder %s154, %s170
      %p172 = scmp.eq.s32.totalorder %s26, 0
      %p173 = por %p171, %p172
      %s174 = ssub.s32 %s20, %s27
      %p175 = scmp.eq.s32.totalorder %s174, 0
      %s177 = sadd.s32 %s176, 1
      %s178 = scalar_select %p175, %s176, %s177
      %p181 = pneg %p175
      %p182 = scmp.eq.s32.totalorder %s20, 1
      %p183 = por %p181, %p182
      %p184 = scmp.ne.s32.totalorder %s176, %s179
      %p185 = scmp.eq.s32.totalorder %s20, 0
      %p186 = por %p184, %p185
      %p187 = scmp.ne.s32.totalorder %s176, %s179
      %p188 = scmp.eq.s32.totalorder %s25, 1
      %p189 = por %p187, %p188
      %p190 = scmp.ne.s32.totalorder %s179, %s180
      %p191 = scmp.eq.s32.totalorder %s25, 0
      %p192 = por %p190, %p191
      %p193 = scmp.ne.s32.totalorder %s179, %s180
      %p194 = scmp.eq.s32.totalorder %s26, 1
      %p195 = por %p193, %p194
      %p197 = scmp.ne.s32.totalorder %s180, %s196
      %p198 = scmp.eq.s32.totalorder %s26, 0
      %p199 = por %p197, %p198
      %s200 = ssub.s32 %s20, %s27
      %p201 = scmp.eq.s32.totalorder %s200, 0
      %s203 = sadd.s32 %s202, 1
      %s204 = scalar_select %p201, %s202, %s203
      %p207 = pneg %p201
      %p208 = scmp.eq.s32.totalorder %s20, 1
      %p209 = por %p207, %p208
      %p210 = scmp.ne.s32.totalorder %s202, %s205
      %p211 = scmp.eq.s32.totalorder %s20, 0
      %p212 = por %p210, %p211
      %p213 = scmp.ne.s32.totalorder %s202, %s205
      %p214 = scmp.eq.s32.totalorder %s25, 1
      %p215 = por %p213, %p214
      %p216 = scmp.ne.s32.totalorder %s205, %s206
      %p217 = scmp.eq.s32.totalorder %s25, 0
      %p218 = por %p216, %p217
      %p219 = scmp.ne.s32.totalorder %s205, %s206
      %p220 = scmp.eq.s32.totalorder %s26, 1
      %p221 = por %p219, %p220
      %p223 = scmp.ne.s32.totalorder %s206, %s222
      %p224 = scmp.eq.s32.totalorder %s26, 0
      %p225 = por %p223, %p224
      %p226 = scmp.le.s32.totalorder 1, %s20
      %p227 = scmp.lt.s32.totalorder %s20, 3
      %p228 = pnand %p226, %p227
      %p229 = pneg %p228
      // Predicated region
      $region9: #{metalearner_forward.1} parent=5 // pred_check
        _
      $region10: #{metalearner_forward.1} parent=5 // pred_check_branch
        %231 = sbr.rel (%p228) target = $region12
      $region11: #{metalearner_forward.1} parent=5 // pred_region
        %s232 = ssub.s32 %s20, 1
        // Predicated region
        $region13: #{metalearner_forward.1} parent=11 // pred_check
          %p233 = pneg %p119
        $region14: #{metalearner_forward.1} parent=11 // pred_check_branch
          %235 = sbr.rel (%p233) target = $region16
        $region15: #{metalearner_forward.1} parent=11 // pred_region
          _
        $region16: #{metalearner_forward.1} parent=11 // pred_fallthru
          _
        // Predicated region
        $region17: #{metalearner_forward.1} parent=11 // pred_check
          %p236 = pneg %p140
        $region18: #{metalearner_forward.1} parent=11 // pred_check_branch
          %238 = sbr.rel (%p236) target = $region20
        $region19: #{metalearner_forward.1} parent=11 // pred_region
          _
        $region20: #{metalearner_forward.1} parent=11 // pred_fallthru
          _
      $region12: #{metalearner_forward.1} parent=5 // pred_fallthru
        _
      %p239 = scmp.lt.s32.totalorder %s20, 2
      // Predicated region
      $region21: #{metalearner_forward.1} parent=5 // pred_check
        %p240 = pneg %p239
      $region22: #{metalearner_forward.1} parent=5 // pred_check_branch
        %242 = sbr.rel (%p240) target = $region24
      $region23: #{metalearner_forward.1} parent=5 // pred_region
        // Predicated region
        $region25: #{metalearner_forward.1} parent=23 // pred_check
          %p243 = pneg %p40
        $region26: #{metalearner_forward.1} parent=23 // pred_check_branch
          %245 = sbr.rel (%p243) target = $region28
        $region27: #{metalearner_forward.1} parent=23 // pred_region
          %s246 = smul.u32 20, %s20
          %p247 = scmp.lt.s32.totalorder %s246, 39
          %s248 = scalar_select %p247, %s246, 39
          %s249 = smul.addr %s248, 2
          %s250 = scalar_lea.vmem %s0, %s249
          %s251 = smul.u32 20, %s20
        $region28: #{metalearner_forward.1} parent=23 // pred_fallthru
          _
        // Predicated region
        $region29: #{metalearner_forward.1} parent=23 // pred_check
          %p252 = pneg %p66
        $region30: #{metalearner_forward.1} parent=23 // pred_check_branch
          %254 = sbr.rel (%p252) target = $region32
        $region31: #{metalearner_forward.1} parent=23 // pred_region
          %s255 = smul.u32 20, %s20
          %p256 = scmp.lt.s32.totalorder %s255, 39
          %s257 = scalar_select %p256, %s255, 39
          %s258 = scalar_lea.vmem %s1, %s257
          %s259 = smul.u32 20, %s20
        $region32: #{metalearner_forward.1} parent=23 // pred_fallthru
          _
        // Predicated region
        $region33: #{metalearner_forward.1} parent=23 // pred_check
          %p260 = pneg %p92
        $region34: #{metalearner_forward.1} parent=23 // pred_check_branch
          %262 = sbr.rel (%p260) target = $region36
        $region35: #{metalearner_forward.1} parent=23 // pred_region
          %s263 = smul.u32 20, %s20
          %p264 = scmp.lt.s32.totalorder %s263, 39
          %s265 = scalar_select %p264, %s263, 39
          %s266 = scalar_lea.vmem %s2, %s265
          %s267 = smul.u32 20, %s20
        $region36: #{metalearner_forward.1} parent=23 // pred_fallthru
          _
      $region24: #{metalearner_forward.1} parent=5 // pred_fallthru
        _
      %p268 = scmp.le.s32.totalorder 1, %s20
      %p269 = scmp.lt.s32.totalorder %s20, 3
      %p270 = pnand %p268, %p269
      %p271 = pneg %p270
      // Predicated region
      $region37: #{metalearner_forward.1} parent=5 // pred_check
        _
      $region38: #{metalearner_forward.1} parent=5 // pred_check_branch
        %273 = sbr.rel (%p270) target = $region40
      $region39: #{metalearner_forward.1} parent=5 // pred_region
        %s274 = ssub.s32 %s20, 1
        %s275 = smul.u32 20, %s25
        %p276 = scmp.lt.s32.totalorder %s275, 39
        %s277 = scalar_select %p276, %s275, 39
        %s278 = smul.addr %s277, 2
        %s279 = scalar_lea.vmem %s0, %s278
        %p280 = pneg %p46
        %p281 = pneg %p43
        %s282 = smul.u32 20, %s25
        %p283 = scmp.lt.s32.totalorder %s282, 39
        %s284 = scalar_select %p283, %s282, 39
        %s285 = scalar_lea.vmem %s1, %s284
        %p286 = pneg %p72
        %p287 = pneg %p69
        %s288 = smul.u32 20, %s25
        %p289 = scmp.lt.s32.totalorder %s288, 39
        %s290 = scalar_select %p289, %s288, 39
        %s291 = scalar_lea.vmem %s2, %s290
        %p292 = pneg %p98
        %p293 = pneg %p95
        %p294 = pneg %p119
        %p295 = pneg %p116
        %p296 = pneg %p140
        %p297 = pneg %p137
        %p298 = pneg %p166
        %p299 = pneg %p163
        %s300 = sand.u32 %s153, 1
        %s301 = scalar_lea.sflag [#allocation3], %s300
        %s302 = sand.u32 %s153, 1
        %s303 = smul.addr %s302, 480
        %s304 = scalar_lea.vmem [#allocation2], %s303
        %p305 = pneg %p192
        %p306 = pneg %p189
        %s307 = sand.u32 %s179, 1
        %s308 = scalar_lea.sflag [#allocation5], %s307
        %s309 = sand.u32 %s179, 1
        %s310 = smul.addr %s309, 480
        %s311 = scalar_lea.vmem [#allocation4], %s310
        %p312 = pneg %p218
        %p313 = pneg %p215
        %s314 = smul.u32 20, %s25
        %p315 = scmp.lt.s32.totalorder %s314, 39
        %s316 = scalar_select %p315, %s314, 39
        %s317 = smul.addr %s316, 4
        %s318 = scalar_lea.vmem %s7, %s317
        %s319 = smul.u32 20, %s25
        %p320 = scmp.lt.s32.totalorder %s319, 39
        %s321 = scalar_select %p320, %s319, 39
        %s322 = smul.addr %s321, 2
        %s323 = scalar_lea.vmem %s0, %s322
        %s324 = smul.u32 20, %s25
        %s325 = smul.u32 20, %s25
        %p326 = scmp.lt.s32.totalorder %s325, 39
        %s327 = scalar_select %p326, %s325, 39
        %s328 = scalar_lea.vmem %s1, %s327
        %s329 = smul.u32 20, %s25
        %s330 = smul.u32 20, %s25
        %p331 = scmp.lt.s32.totalorder %s330, 39
        %s332 = scalar_select %p331, %s330, 39
        %s333 = scalar_lea.vmem %s2, %s332
        %s334 = smul.u32 20, %s25
        %s335 = smul.u32 20, %s25
        %s336 = smul.u32 20, %s25
        %s337 = smul.u32 20, %s25
        %p338 = scmp.lt.s32.totalorder %s337, 39
        %s339 = scalar_select %p338, %s337, 39
        %s340 = smul.addr %s339, 4
        %s341 = scalar_lea.vmem %s7, %s340
        %s342 = smul.u32 20, %s25
        %v343 = vld [vmem:[%s323] sm:$0xff]
        %v344 = vld [vmem:[%s323 + $0x8] sm:$0xff]
        %v345 = vld [vmem:[%s323 + $0x10] sm:$0xff]
        %v346 = vld [vmem:[%s323 + $0x18] sm:$0xff]
        %v347 = vld [vmem:[%s323 + $0x20] sm:$0xff]
        %v348 = vld [vmem:[%s3] sm:$0xff]
        %v349 = vld [vmem:[%s3 + $0x8] sm:$0xff]
        %v350 = vld [vmem:[%s3 + $0x10] sm:$0xf]
        %352 = vset.pattern.permute.xlu0 0
        %353 = vperm.xlu0 %352, %v348
        %v354 = vpop.permute.xlu0 %353
        %357 = vset.pattern.permute.xlu0 0
        %358 = vperm.xlu0 %357, %v349
        %v359 = vpop.permute.xlu0 %358
        %362 = vset.pattern.permute.xlu0 0
        %363 = vperm.xlu0 %362, %v350
        %v364 = vpop.permute.xlu0 %363
        %v371 = vlaneseq
        %v372 = vshrl.u32 %v371, 7
        %v373 = vsub.s32 0, %v372
        %v374 = vrot.slane %v343, %v373
        %v375 = vlaneseq
        %v376 = vshrl.u32 %v375, 7
        %v377 = vsub.s32 2, %v376
        %v378 = vrot.slane %v343, %v377
        %v379 = vlaneseq
        %v380 = vshrl.u32 %v379, 7
        %v381 = vsub.s32 4, %v380
        %v382 = vrot.slane %v343, %v381
        %v383 = vlaneseq
        %v384 = vshrl.u32 %v383, 7
        %v385 = vsub.s32 6, %v384
        %v386 = vrot.slane %v343, %v385
        %v387 = vlaneseq
        %v388 = vshrl.u32 %v387, 7
        %v389 = vsub.s32 0, %v388
        %v390 = vrot.slane %v344, %v389
        %v391 = vlaneseq
        %v392 = vshrl.u32 %v391, 7
        %v393 = vsub.s32 2, %v392
        %v394 = vrot.slane %v344, %v393
        %v395 = vlaneseq
        %v396 = vshrl.u32 %v395, 7
        %v397 = vsub.s32 4, %v396
        %v398 = vrot.slane %v344, %v397
        %v399 = vlaneseq
        %v400 = vshrl.u32 %v399, 7
        %v401 = vsub.s32 6, %v400
        %v402 = vrot.slane %v344, %v401
        %v403 = vlaneseq
        %v404 = vshrl.u32 %v403, 7
        %v405 = vsub.s32 0, %v404
        %v406 = vrot.slane %v345, %v405
        %v407 = vlaneseq
        %v408 = vshrl.u32 %v407, 7
        %v409 = vsub.s32 2, %v408
        %v410 = vrot.slane %v345, %v409
        %v411 = vlaneseq
        %v412 = vshrl.u32 %v411, 7
        %v413 = vsub.s32 4, %v412
        %v414 = vrot.slane %v345, %v413
        %v415 = vlaneseq
        %v416 = vshrl.u32 %v415, 7
        %v417 = vsub.s32 6, %v416
        %v418 = vrot.slane %v345, %v417
        %v419 = vlaneseq
        %v420 = vshrl.u32 %v419, 7
        %v421 = vsub.s32 0, %v420
        %v422 = vrot.slane %v346, %v421
        %v423 = vlaneseq
        %v424 = vshrl.u32 %v423, 7
        %v425 = vsub.s32 2, %v424
        %v426 = vrot.slane %v346, %v425
        %v427 = vlaneseq
        %v428 = vshrl.u32 %v427, 7
        %v429 = vsub.s32 4, %v428
        %v430 = vrot.slane %v346, %v429
        %v431 = vlaneseq
        %v432 = vshrl.u32 %v431, 7
        %v433 = vsub.s32 6, %v432
        %v434 = vrot.slane %v346, %v433
        %v435 = vlaneseq
        %v436 = vshrl.u32 %v435, 7
        %v437 = vsub.s32 0, %v436
        %v438 = vrot.slane %v347, %v437
        %v439 = vlaneseq
        %v440 = vshrl.u32 %v439, 7
        %v441 = vsub.s32 2, %v440
        %v442 = vrot.slane %v347, %v441
        %v443 = vlaneseq
        %v444 = vshrl.u32 %v443, 7
        %v445 = vsub.s32 4, %v444
        %v446 = vrot.slane %v347, %v445
        %v447 = vlaneseq
        %v448 = vshrl.u32 %v447, 7
        %v449 = vsub.s32 6, %v448
        %v450 = vrot.slane %v347, %v449
        %v471 = vlaneseq
        %v472 = vshrl.u32 %v471, 7
        %v473 = vsub.s32 0, %v472
        %v474 = vrot.slane %v374, %v473
        %v475 = vlaneseq
        %v476 = vshrl.u32 %v475, 7
        %v477 = vsub.s32 0, %v476
        %v478 = vrot.slane %v378, %v477
        %v479 = vlaneseq
        %v480 = vshrl.u32 %v479, 7
        %v481 = vsub.s32 0, %v480
        %v482 = vrot.slane %v382, %v481
        %v483 = vlaneseq
        %v484 = vshrl.u32 %v483, 7
        %v485 = vsub.s32 0, %v484
        %v486 = vrot.slane %v386, %v485
        %v487 = vlaneseq
        %v488 = vshrl.u32 %v487, 7
        %v489 = vsub.s32 0, %v488
        %v490 = vrot.slane %v390, %v489
        %v491 = vlaneseq
        %v492 = vshrl.u32 %v491, 7
        %v493 = vsub.s32 0, %v492
        %v494 = vrot.slane %v394, %v493
        %v495 = vlaneseq
        %v496 = vshrl.u32 %v495, 7
        %v497 = vsub.s32 0, %v496
        %v498 = vrot.slane %v398, %v497
        %v499 = vlaneseq
        %v500 = vshrl.u32 %v499, 7
        %v501 = vsub.s32 0, %v500
        %v502 = vrot.slane %v402, %v501
        %v503 = vlaneseq
        %v504 = vshrl.u32 %v503, 7
        %v505 = vsub.s32 0, %v504
        %v506 = vrot.slane %v406, %v505
        %v507 = vlaneseq
        %v508 = vshrl.u32 %v507, 7
        %v509 = vsub.s32 0, %v508
        %v510 = vrot.slane %v410, %v509
        %v511 = vlaneseq
        %v512 = vshrl.u32 %v511, 7
        %v513 = vsub.s32 0, %v512
        %v514 = vrot.slane %v414, %v513
        %v515 = vlaneseq
        %v516 = vshrl.u32 %v515, 7
        %v517 = vsub.s32 0, %v516
        %v518 = vrot.slane %v418, %v517
        %v519 = vlaneseq
        %v520 = vshrl.u32 %v519, 7
        %v521 = vsub.s32 0, %v520
        %v522 = vrot.slane %v422, %v521
        %v523 = vlaneseq
        %v524 = vshrl.u32 %v523, 7
        %v525 = vsub.s32 0, %v524
        %v526 = vrot.slane %v426, %v525
        %v527 = vlaneseq
        %v528 = vshrl.u32 %v527, 7
        %v529 = vsub.s32 0, %v528
        %v530 = vrot.slane %v430, %v529
        %v531 = vlaneseq
        %v532 = vshrl.u32 %v531, 7
        %v533 = vsub.s32 0, %v532
        %v534 = vrot.slane %v434, %v533
        %v535 = vlaneseq
        %v536 = vshrl.u32 %v535, 7
        %v537 = vsub.s32 0, %v536
        %v538 = vrot.slane %v438, %v537
        %v539 = vlaneseq
        %v540 = vshrl.u32 %v539, 7
        %v541 = vsub.s32 0, %v540
        %v542 = vrot.slane %v442, %v541
        %v543 = vlaneseq
        %v544 = vshrl.u32 %v543, 7
        %v545 = vsub.s32 0, %v544
        %v546 = vrot.slane %v446, %v545
        %v547 = vlaneseq
        %v548 = vshrl.u32 %v547, 7
        %v549 = vsub.s32 0, %v548
        %v550 = vrot.slane %v450, %v549
        %v551 = vmul.f32 %v354, %v474
        %v552 = vmul.f32 %v354, %v478
        %v553 = vmul.f32 %v354, %v482
        %v554 = vmul.f32 %v354, %v486
        %v555 = vmul.f32 %v354, %v490
        %v556 = vmul.f32 %v354, %v494
        %v557 = vmul.f32 %v354, %v498
        %v558 = vmul.f32 %v354, %v502
        %v559 = vmul.f32 %v354, %v506
        %v560 = vmul.f32 %v354, %v510
        %v561 = vmul.f32 %v354, %v514
        %v562 = vmul.f32 %v354, %v518
        %v563 = vmul.f32 %v354, %v522
        %v564 = vmul.f32 %v354, %v526
        %v565 = vmul.f32 %v354, %v530
        %v566 = vmul.f32 %v354, %v534
        %v567 = vmul.f32 %v354, %v538
        %v568 = vmul.f32 %v354, %v542
        %v569 = vmul.f32 %v354, %v546
        %v570 = vmul.f32 %v354, %v550
        %v571 = vmul.f32 %v359, %v474
        %v572 = vmul.f32 %v359, %v478
        %v573 = vmul.f32 %v359, %v482
        %v574 = vmul.f32 %v359, %v486
        %v575 = vmul.f32 %v359, %v490
        %v576 = vmul.f32 %v359, %v494
        %v577 = vmul.f32 %v359, %v498
        %v578 = vmul.f32 %v359, %v502
        %v579 = vmul.f32 %v359, %v506
        %v580 = vmul.f32 %v359, %v510
        %v581 = vmul.f32 %v359, %v514
        %v582 = vmul.f32 %v359, %v518
        %v583 = vmul.f32 %v359, %v522
        %v584 = vmul.f32 %v359, %v526
        %v585 = vmul.f32 %v359, %v530
        %v586 = vmul.f32 %v359, %v534
        %v587 = vmul.f32 %v359, %v538
        %v588 = vmul.f32 %v359, %v542
        %v589 = vmul.f32 %v359, %v546
        %v590 = vmul.f32 %v359, %v550
        %v591 = vmul.f32 %v364, %v474
        %v592 = vmul.f32 %v364, %v478
        %v593 = vmul.f32 %v364, %v482
        %v594 = vmul.f32 %v364, %v486
        %v595 = vmul.f32 %v364, %v490
        %v596 = vmul.f32 %v364, %v494
        %v597 = vmul.f32 %v364, %v498
        %v598 = vmul.f32 %v364, %v502
        %v599 = vmul.f32 %v364, %v506
        %v600 = vmul.f32 %v364, %v510
        %v601 = vmul.f32 %v364, %v514
        %v602 = vmul.f32 %v364, %v518
        %v603 = vmul.f32 %v364, %v522
        %v604 = vmul.f32 %v364, %v526
        %v605 = vmul.f32 %v364, %v530
        %v606 = vmul.f32 %v364, %v534
        %v607 = vmul.f32 %v364, %v538
        %v608 = vmul.f32 %v364, %v542
        %v609 = vmul.f32 %v364, %v546
        %v610 = vmul.f32 %v364, %v550
        %611 = vset.pattern.permute.xlu0 2
        %612 = vperm.xlu0 %611, %v348
        %v613 = vpop.permute.xlu0 %612
        %615 = vset.pattern.permute.xlu0 2
        %616 = vperm.xlu0 %615, %v349
        %v617 = vpop.permute.xlu0 %616
        %619 = vset.pattern.permute.xlu0 2
        %620 = vperm.xlu0 %619, %v350
        %v621 = vpop.permute.xlu0 %620
        %v623 = vadd.f32 %v613, %v551
        %v624 = vadd.f32 %v613, %v552
        %v625 = vadd.f32 %v613, %v553
        %v626 = vadd.f32 %v613, %v554
        %v627 = vadd.f32 %v613, %v555
        %v628 = vadd.f32 %v613, %v556
        %v629 = vadd.f32 %v613, %v557
        %v630 = vadd.f32 %v613, %v558
        %v631 = vadd.f32 %v613, %v559
        %v632 = vadd.f32 %v613, %v560
        %v633 = vadd.f32 %v613, %v561
        %v634 = vadd.f32 %v613, %v562
        %v635 = vadd.f32 %v613, %v563
        %v636 = vadd.f32 %v613, %v564
        %v637 = vadd.f32 %v613, %v565
        %v638 = vadd.f32 %v613, %v566
        %v639 = vadd.f32 %v613, %v567
        %v640 = vadd.f32 %v613, %v568
        %v641 = vadd.f32 %v613, %v569
        %v642 = vadd.f32 %v613, %v570
        %v643 = vadd.f32 %v617, %v571
        %v644 = vadd.f32 %v617, %v572
        %v645 = vadd.f32 %v617, %v573
        %v646 = vadd.f32 %v617, %v574
        %v647 = vadd.f32 %v617, %v575
        %v648 = vadd.f32 %v617, %v576
        %v649 = vadd.f32 %v617, %v577
        %v650 = vadd.f32 %v617, %v578
        %v651 = vadd.f32 %v617, %v579
        %v652 = vadd.f32 %v617, %v580
        %v653 = vadd.f32 %v617, %v581
        %v654 = vadd.f32 %v617, %v582
        %v655 = vadd.f32 %v617, %v583
        %v656 = vadd.f32 %v617, %v584
        %v657 = vadd.f32 %v617, %v585
        %v658 = vadd.f32 %v617, %v586
        %v659 = vadd.f32 %v617, %v587
        %v660 = vadd.f32 %v617, %v588
        %v661 = vadd.f32 %v617, %v589
        %v662 = vadd.f32 %v617, %v590
        %v663 = vadd.f32 %v621, %v591
        %v664 = vadd.f32 %v621, %v592
        %v665 = vadd.f32 %v621, %v593
        %v666 = vadd.f32 %v621, %v594
        %v667 = vadd.f32 %v621, %v595
        %v668 = vadd.f32 %v621, %v596
        %v669 = vadd.f32 %v621, %v597
        %v670 = vadd.f32 %v621, %v598
        %v671 = vadd.f32 %v621, %v599
        %v672 = vadd.f32 %v621, %v600
        %v673 = vadd.f32 %v621, %v601
        %v674 = vadd.f32 %v621, %v602
        %v675 = vadd.f32 %v621, %v603
        %v676 = vadd.f32 %v621, %v604
        %v677 = vadd.f32 %v621, %v605
        %v678 = vadd.f32 %v621, %v606
        %v679 = vadd.f32 %v621, %v607
        %v680 = vadd.f32 %v621, %v608
        %v681 = vadd.f32 %v621, %v609
        %v682 = vadd.f32 %v621, %v610
        %683 = vset.pattern.permute.xlu0 1
        %684 = vperm.xlu0 %683, %v348
        %v685 = vpop.permute.xlu0 %684
        %687 = vset.pattern.permute.xlu0 1
        %688 = vperm.xlu0 %687, %v349
        %v689 = vpop.permute.xlu0 %688
        %691 = vset.pattern.permute.xlu0 1
        %692 = vperm.xlu0 %691, %v350
        %v693 = vpop.permute.xlu0 %692
        %v695 = vlaneseq
        %v696 = vshrl.u32 %v695, 7
        %v697 = vsub.s32 1, %v696
        %v698 = vrot.slane %v343, %v697
        %v699 = vlaneseq
        %v700 = vshrl.u32 %v699, 7
        %v701 = vsub.s32 3, %v700
        %v702 = vrot.slane %v343, %v701
        %v703 = vlaneseq
        %v704 = vshrl.u32 %v703, 7
        %v705 = vsub.s32 5, %v704
        %v706 = vrot.slane %v343, %v705
        %v707 = vlaneseq
        %v708 = vshrl.u32 %v707, 7
        %v709 = vsub.s32 7, %v708
        %v710 = vrot.slane %v343, %v709
        %v711 = vlaneseq
        %v712 = vshrl.u32 %v711, 7
        %v713 = vsub.s32 1, %v712
        %v714 = vrot.slane %v344, %v713
        %v715 = vlaneseq
        %v716 = vshrl.u32 %v715, 7
        %v717 = vsub.s32 3, %v716
        %v718 = vrot.slane %v344, %v717
        %v719 = vlaneseq
        %v720 = vshrl.u32 %v719, 7
        %v721 = vsub.s32 5, %v720
        %v722 = vrot.slane %v344, %v721
        %v723 = vlaneseq
        %v724 = vshrl.u32 %v723, 7
        %v725 = vsub.s32 7, %v724
        %v726 = vrot.slane %v344, %v725
        %v727 = vlaneseq
        %v728 = vshrl.u32 %v727, 7
        %v729 = vsub.s32 1, %v728
        %v730 = vrot.slane %v345, %v729
        %v731 = vlaneseq
        %v732 = vshrl.u32 %v731, 7
        %v733 = vsub.s32 3, %v732
        %v734 = vrot.slane %v345, %v733
        %v735 = vlaneseq
        %v736 = vshrl.u32 %v735, 7
        %v737 = vsub.s32 5, %v736
        %v738 = vrot.slane %v345, %v737
        %v739 = vlaneseq
        %v740 = vshrl.u32 %v739, 7
        %v741 = vsub.s32 7, %v740
        %v742 = vrot.slane %v345, %v741
        %v743 = vlaneseq
        %v744 = vshrl.u32 %v743, 7
        %v745 = vsub.s32 1, %v744
        %v746 = vrot.slane %v346, %v745
        %v747 = vlaneseq
        %v748 = vshrl.u32 %v747, 7
        %v749 = vsub.s32 3, %v748
        %v750 = vrot.slane %v346, %v749
        %v751 = vlaneseq
        %v752 = vshrl.u32 %v751, 7
        %v753 = vsub.s32 5, %v752
        %v754 = vrot.slane %v346, %v753
        %v755 = vlaneseq
        %v756 = vshrl.u32 %v755, 7
        %v757 = vsub.s32 7, %v756
        %v758 = vrot.slane %v346, %v757
        %v759 = vlaneseq
        %v760 = vshrl.u32 %v759, 7
        %v761 = vsub.s32 1, %v760
        %v762 = vrot.slane %v347, %v761
        %v763 = vlaneseq
        %v764 = vshrl.u32 %v763, 7
        %v765 = vsub.s32 3, %v764
        %v766 = vrot.slane %v347, %v765
        %v767 = vlaneseq
        %v768 = vshrl.u32 %v767, 7
        %v769 = vsub.s32 5, %v768
        %v770 = vrot.slane %v347, %v769
        %v771 = vlaneseq
        %v772 = vshrl.u32 %v771, 7
        %v773 = vsub.s32 7, %v772
        %v774 = vrot.slane %v347, %v773
        %v795 = vlaneseq
        %v796 = vshrl.u32 %v795, 7
        %v797 = vsub.s32 1, %v796
        %v798 = vrot.slane %v698, %v797
        %v799 = vlaneseq
        %v800 = vshrl.u32 %v799, 7
        %v801 = vsub.s32 1, %v800
        %v802 = vrot.slane %v702, %v801
        %v803 = vlaneseq
        %v804 = vshrl.u32 %v803, 7
        %v805 = vsub.s32 1, %v804
        %v806 = vrot.slane %v706, %v805
        %v807 = vlaneseq
        %v808 = vshrl.u32 %v807, 7
        %v809 = vsub.s32 1, %v808
        %v810 = vrot.slane %v710, %v809
        %v811 = vlaneseq
        %v812 = vshrl.u32 %v811, 7
        %v813 = vsub.s32 1, %v812
        %v814 = vrot.slane %v714, %v813
        %v815 = vlaneseq
        %v816 = vshrl.u32 %v815, 7
        %v817 = vsub.s32 1, %v816
        %v818 = vrot.slane %v718, %v817
        %v819 = vlaneseq
        %v820 = vshrl.u32 %v819, 7
        %v821 = vsub.s32 1, %v820
        %v822 = vrot.slane %v722, %v821
        %v823 = vlaneseq
        %v824 = vshrl.u32 %v823, 7
        %v825 = vsub.s32 1, %v824
        %v826 = vrot.slane %v726, %v825
        %v827 = vlaneseq
        %v828 = vshrl.u32 %v827, 7
        %v829 = vsub.s32 1, %v828
        %v830 = vrot.slane %v730, %v829
        %v831 = vlaneseq
        %v832 = vshrl.u32 %v831, 7
        %v833 = vsub.s32 1, %v832
        %v834 = vrot.slane %v734, %v833
        %v835 = vlaneseq
        %v836 = vshrl.u32 %v835, 7
        %v837 = vsub.s32 1, %v836
        %v838 = vrot.slane %v738, %v837
        %v839 = vlaneseq
        %v840 = vshrl.u32 %v839, 7
        %v841 = vsub.s32 1, %v840
        %v842 = vrot.slane %v742, %v841
        %v843 = vlaneseq
        %v844 = vshrl.u32 %v843, 7
        %v845 = vsub.s32 1, %v844
        %v846 = vrot.slane %v746, %v845
        %v847 = vlaneseq
        %v848 = vshrl.u32 %v847, 7
        %v849 = vsub.s32 1, %v848
        %v850 = vrot.slane %v750, %v849
        %v851 = vlaneseq
        %v852 = vshrl.u32 %v851, 7
        %v853 = vsub.s32 1, %v852
        %v854 = vrot.slane %v754, %v853
        %v855 = vlaneseq
        %v856 = vshrl.u32 %v855, 7
        %v857 = vsub.s32 1, %v856
        %v858 = vrot.slane %v758, %v857
        %v859 = vlaneseq
        %v860 = vshrl.u32 %v859, 7
        %v861 = vsub.s32 1, %v860
        %v862 = vrot.slane %v762, %v861
        %v863 = vlaneseq
        %v864 = vshrl.u32 %v863, 7
        %v865 = vsub.s32 1, %v864
        %v866 = vrot.slane %v766, %v865
        %v867 = vlaneseq
        %v868 = vshrl.u32 %v867, 7
        %v869 = vsub.s32 1, %v868
        %v870 = vrot.slane %v770, %v869
        %v871 = vlaneseq
        %v872 = vshrl.u32 %v871, 7
        %v873 = vsub.s32 1, %v872
        %v874 = vrot.slane %v774, %v873
        %v875 = vmul.f32 %v685, %v798
        %v876 = vmul.f32 %v685, %v802
        %v877 = vmul.f32 %v685, %v806
        %v878 = vmul.f32 %v685, %v810
        %v879 = vmul.f32 %v685, %v814
        %v880 = vmul.f32 %v685, %v818
        %v881 = vmul.f32 %v685, %v822
        %v882 = vmul.f32 %v685, %v826
        %v883 = vmul.f32 %v685, %v830
        %v884 = vmul.f32 %v685, %v834
        %v885 = vmul.f32 %v685, %v838
        %v886 = vmul.f32 %v685, %v842
        %v887 = vmul.f32 %v685, %v846
        %v888 = vmul.f32 %v685, %v850
        %v889 = vmul.f32 %v685, %v854
        %v890 = vmul.f32 %v685, %v858
        %v891 = vmul.f32 %v685, %v862
        %v892 = vmul.f32 %v685, %v866
        %v893 = vmul.f32 %v685, %v870
        %v894 = vmul.f32 %v685, %v874
        %v895 = vmul.f32 %v689, %v798
        %v896 = vmul.f32 %v689, %v802
        %v897 = vmul.f32 %v689, %v806
        %v898 = vmul.f32 %v689, %v810
        %v899 = vmul.f32 %v689, %v814
        %v900 = vmul.f32 %v689, %v818
        %v901 = vmul.f32 %v689, %v822
        %v902 = vmul.f32 %v689, %v826
        %v903 = vmul.f32 %v689, %v830
        %v904 = vmul.f32 %v689, %v834
        %v905 = vmul.f32 %v689, %v838
        %v906 = vmul.f32 %v689, %v842
        %v907 = vmul.f32 %v689, %v846
        %v908 = vmul.f32 %v689, %v850
        %v909 = vmul.f32 %v689, %v854
        %v910 = vmul.f32 %v689, %v858
        %v911 = vmul.f32 %v689, %v862
        %v912 = vmul.f32 %v689, %v866
        %v913 = vmul.f32 %v689, %v870
        %v914 = vmul.f32 %v689, %v874
        %v915 = vmul.f32 %v693, %v798
        %v916 = vmul.f32 %v693, %v802
        %v917 = vmul.f32 %v693, %v806
        %v918 = vmul.f32 %v693, %v810
        %v919 = vmul.f32 %v693, %v814
        %v920 = vmul.f32 %v693, %v818
        %v921 = vmul.f32 %v693, %v822
        %v922 = vmul.f32 %v693, %v826
        %v923 = vmul.f32 %v693, %v830
        %v924 = vmul.f32 %v693, %v834
        %v925 = vmul.f32 %v693, %v838
        %v926 = vmul.f32 %v693, %v842
        %v927 = vmul.f32 %v693, %v846
        %v928 = vmul.f32 %v693, %v850
        %v929 = vmul.f32 %v693, %v854
        %v930 = vmul.f32 %v693, %v858
        %v931 = vmul.f32 %v693, %v862
        %v932 = vmul.f32 %v693, %v866
        %v933 = vmul.f32 %v693, %v870
        %v934 = vmul.f32 %v693, %v874
        %v935 = vadd.f32 %v623, %v875
        %v936 = vadd.f32 %v624, %v876
        %v937 = vadd.f32 %v625, %v877
        %v938 = vadd.f32 %v626, %v878
        %v939 = vadd.f32 %v627, %v879
        %v940 = vadd.f32 %v628, %v880
        %v941 = vadd.f32 %v629, %v881
        %v942 = vadd.f32 %v630, %v882
        %v943 = vadd.f32 %v631, %v883
        %v944 = vadd.f32 %v632, %v884
        %v945 = vadd.f32 %v633, %v885
        %v946 = vadd.f32 %v634, %v886
        %v947 = vadd.f32 %v635, %v887
        %v948 = vadd.f32 %v636, %v888
        %v949 = vadd.f32 %v637, %v889
        %v950 = vadd.f32 %v638, %v890
        %v951 = vadd.f32 %v639, %v891
        %v952 = vadd.f32 %v640, %v892
        %v953 = vadd.f32 %v641, %v893
        %v954 = vadd.f32 %v642, %v894
        %v955 = vadd.f32 %v643, %v895
        %v956 = vadd.f32 %v644, %v896
        %v957 = vadd.f32 %v645, %v897
        %v958 = vadd.f32 %v646, %v898
        %v959 = vadd.f32 %v647, %v899
        %v960 = vadd.f32 %v648, %v900
        %v961 = vadd.f32 %v649, %v901
        %v962 = vadd.f32 %v650, %v902
        %v963 = vadd.f32 %v651, %v903
        %v964 = vadd.f32 %v652, %v904
        %v965 = vadd.f32 %v653, %v905
        %v966 = vadd.f32 %v654, %v906
        %v967 = vadd.f32 %v655, %v907
        %v968 = vadd.f32 %v656, %v908
        %v969 = vadd.f32 %v657, %v909
        %v970 = vadd.f32 %v658, %v910
        %v971 = vadd.f32 %v659, %v911
        %v972 = vadd.f32 %v660, %v912
        %v973 = vadd.f32 %v661, %v913
        %v974 = vadd.f32 %v662, %v914
        %v975 = vadd.f32 %v663, %v915
        %v976 = vadd.f32 %v664, %v916
        %v977 = vadd.f32 %v665, %v917
        %v978 = vadd.f32 %v666, %v918
        %v979 = vadd.f32 %v667, %v919
        %v980 = vadd.f32 %v668, %v920
        %v981 = vadd.f32 %v669, %v921
        %v982 = vadd.f32 %v670, %v922
        %v983 = vadd.f32 %v671, %v923
        %v984 = vadd.f32 %v672, %v924
        %v985 = vadd.f32 %v673, %v925
        %v986 = vadd.f32 %v674, %v926
        %v987 = vadd.f32 %v675, %v927
        %v988 = vadd.f32 %v676, %v928
        %v989 = vadd.f32 %v677, %v929
        %v990 = vadd.f32 %v678, %v930
        %v991 = vadd.f32 %v679, %v931
        %v992 = vadd.f32 %v680, %v932
        %v993 = vadd.f32 %v681, %v933
        %v994 = vadd.f32 %v682, %v934
        %v995 = vmul.f32 %v935, 0.5
        %v996 = vmul.f32 %v936, 0.5
        %v997 = vmul.f32 %v937, 0.5
        %v998 = vmul.f32 %v938, 0.5
        %v999 = vmul.f32 %v939, 0.5
        %v1000 = vmul.f32 %v940, 0.5
        %v1001 = vmul.f32 %v941, 0.5
        %v1002 = vmul.f32 %v942, 0.5
        %v1003 = vmul.f32 %v943, 0.5
        %v1004 = vmul.f32 %v944, 0.5
        %v1005 = vmul.f32 %v945, 0.5
        %v1006 = vmul.f32 %v946, 0.5
        %v1007 = vmul.f32 %v947, 0.5
        %v1008 = vmul.f32 %v948, 0.5
        %v1009 = vmul.f32 %v949, 0.5
        %v1010 = vmul.f32 %v950, 0.5
        %v1011 = vmul.f32 %v951, 0.5
        %v1012 = vmul.f32 %v952, 0.5
        %v1013 = vmul.f32 %v953, 0.5
        %v1014 = vmul.f32 %v954, 0.5
        %v1015 = vmul.f32 %v955, 0.5
        %v1016 = vmul.f32 %v956, 0.5
        %v1017 = vmul.f32 %v957, 0.5
        %v1018 = vmul.f32 %v958, 0.5
        %v1019 = vmul.f32 %v959, 0.5
        %v1020 = vmul.f32 %v960, 0.5
        %v1021 = vmul.f32 %v961, 0.5
        %v1022 = vmul.f32 %v962, 0.5
        %v1023 = vmul.f32 %v963, 0.5
        %v1024 = vmul.f32 %v964, 0.5
        %v1025 = vmul.f32 %v965, 0.5
        %v1026 = vmul.f32 %v966, 0.5
        %v1027 = vmul.f32 %v967, 0.5
        %v1028 = vmul.f32 %v968, 0.5
        %v1029 = vmul.f32 %v969, 0.5
        %v1030 = vmul.f32 %v970, 0.5
        %v1031 = vmul.f32 %v971, 0.5
        %v1032 = vmul.f32 %v972, 0.5
        %v1033 = vmul.f32 %v973, 0.5
        %v1034 = vmul.f32 %v974, 0.5
        %v1035 = vmul.f32 %v975, 0.5
        %v1036 = vmul.f32 %v976, 0.5
        %v1037 = vmul.f32 %v977, 0.5
        %v1038 = vmul.f32 %v978, 0.5
        %v1039 = vmul.f32 %v979, 0.5
        %v1040 = vmul.f32 %v980, 0.5
        %v1041 = vmul.f32 %v981, 0.5
        %v1042 = vmul.f32 %v982, 0.5
        %v1043 = vmul.f32 %v983, 0.5
        %v1044 = vmul.f32 %v984, 0.5
        %v1045 = vmul.f32 %v985, 0.5
        %v1046 = vmul.f32 %v986, 0.5
        %v1047 = vmul.f32 %v987, 0.5
        %v1048 = vmul.f32 %v988, 0.5
        %v1049 = vmul.f32 %v989, 0.5
        %v1050 = vmul.f32 %v990, 0.5
        %v1051 = vmul.f32 %v991, 0.5
        %v1052 = vmul.f32 %v992, 0.5
        %v1053 = vmul.f32 %v993, 0.5
        %v1054 = vmul.f32 %v994, 0.5
        %v1055 = vtanh.pop %v995
        %v1056 = vtanh.pop %v996
        %v1057 = vtanh.pop %v997
        %v1058 = vtanh.pop %v998
        %v1059 = vtanh.pop %v999
        %v1060 = vtanh.pop %v1000
        %v1061 = vtanh.pop %v1001
        %v1062 = vtanh.pop %v1002
        %v1063 = vtanh.pop %v1003
        %v1064 = vtanh.pop %v1004
        %v1065 = vtanh.pop %v1005
        %v1066 = vtanh.pop %v1006
        %v1067 = vtanh.pop %v1007
        %v1068 = vtanh.pop %v1008
        %v1069 = vtanh.pop %v1009
        %v1070 = vtanh.pop %v1010
        %v1071 = vtanh.pop %v1011
        %v1072 = vtanh.pop %v1012
        %v1073 = vtanh.pop %v1013
        %v1074 = vtanh.pop %v1014
        %v1075 = vtanh.pop %v1015
        %v1076 = vtanh.pop %v1016
        %v1077 = vtanh.pop %v1017
        %v1078 = vtanh.pop %v1018
        %v1079 = vtanh.pop %v1019
        %v1080 = vtanh.pop %v1020
        %v1081 = vtanh.pop %v1021
        %v1082 = vtanh.pop %v1022
        %v1083 = vtanh.pop %v1023
        %v1084 = vtanh.pop %v1024
        %v1085 = vtanh.pop %v1025
        %v1086 = vtanh.pop %v1026
        %v1087 = vtanh.pop %v1027
        %v1088 = vtanh.pop %v1028
        %v1089 = vtanh.pop %v1029
        %v1090 = vtanh.pop %v1030
        %v1091 = vtanh.pop %v1031
        %v1092 = vtanh.pop %v1032
        %v1093 = vtanh.pop %v1033
        %v1094 = vtanh.pop %v1034
        %v1095 = vtanh.pop %v1035
        %v1096 = vtanh.pop %v1036
        %v1097 = vtanh.pop %v1037
        %v1098 = vtanh.pop %v1038
        %v1099 = vtanh.pop %v1039
        %v1100 = vtanh.pop %v1040
        %v1101 = vtanh.pop %v1041
        %v1102 = vtanh.pop %v1042
        %v1103 = vtanh.pop %v1043
        %v1104 = vtanh.pop %v1044
        %v1105 = vtanh.pop %v1045
        %v1106 = vtanh.pop %v1046
        %v1107 = vtanh.pop %v1047
        %v1108 = vtanh.pop %v1048
        %v1109 = vtanh.pop %v1049
        %v1110 = vtanh.pop %v1050
        %v1111 = vtanh.pop %v1051
        %v1112 = vtanh.pop %v1052
        %v1113 = vtanh.pop %v1053
        %v1114 = vtanh.pop %v1054
        %v1115 = vmul.f32 %v1055, 0.5
        %v1116 = vmul.f32 %v1056, 0.5
        %v1117 = vmul.f32 %v1057, 0.5
        %v1118 = vmul.f32 %v1058, 0.5
        %v1119 = vmul.f32 %v1059, 0.5
        %v1120 = vmul.f32 %v1060, 0.5
        %v1121 = vmul.f32 %v1061, 0.5
        %v1122 = vmul.f32 %v1062, 0.5
        %v1123 = vmul.f32 %v1063, 0.5
        %v1124 = vmul.f32 %v1064, 0.5
        %v1125 = vmul.f32 %v1065, 0.5
        %v1126 = vmul.f32 %v1066, 0.5
        %v1127 = vmul.f32 %v1067, 0.5
        %v1128 = vmul.f32 %v1068, 0.5
        %v1129 = vmul.f32 %v1069, 0.5
        %v1130 = vmul.f32 %v1070, 0.5
        %v1131 = vmul.f32 %v1071, 0.5
        %v1132 = vmul.f32 %v1072, 0.5
        %v1133 = vmul.f32 %v1073, 0.5
        %v1134 = vmul.f32 %v1074, 0.5
        %v1135 = vmul.f32 %v1075, 0.5
        %v1136 = vmul.f32 %v1076, 0.5
        %v1137 = vmul.f32 %v1077, 0.5
        %v1138 = vmul.f32 %v1078, 0.5
        %v1139 = vmul.f32 %v1079, 0.5
        %v1140 = vmul.f32 %v1080, 0.5
        %v1141 = vmul.f32 %v1081, 0.5
        %v1142 = vmul.f32 %v1082, 0.5
        %v1143 = vmul.f32 %v1083, 0.5
        %v1144 = vmul.f32 %v1084, 0.5
        %v1145 = vmul.f32 %v1085, 0.5
        %v1146 = vmul.f32 %v1086, 0.5
        %v1147 = vmul.f32 %v1087, 0.5
        %v1148 = vmul.f32 %v1088, 0.5
        %v1149 = vmul.f32 %v1089, 0.5
        %v1150 = vmul.f32 %v1090, 0.5
        %v1151 = vmul.f32 %v1091, 0.5
        %v1152 = vmul.f32 %v1092, 0.5
        %v1153 = vmul.f32 %v1093, 0.5
        %v1154 = vmul.f32 %v1094, 0.5
        %v1155 = vmul.f32 %v1095, 0.5
        %v1156 = vmul.f32 %v1096, 0.5
        %v1157 = vmul.f32 %v1097, 0.5
        %v1158 = vmul.f32 %v1098, 0.5
        %v1159 = vmul.f32 %v1099, 0.5
        %v1160 = vmul.f32 %v1100, 0.5
        %v1161 = vmul.f32 %v1101, 0.5
        %v1162 = vmul.f32 %v1102, 0.5
        %v1163 = vmul.f32 %v1103, 0.5
        %v1164 = vmul.f32 %v1104, 0.5
        %v1165 = vmul.f32 %v1105, 0.5
        %v1166 = vmul.f32 %v1106, 0.5
        %v1167 = vmul.f32 %v1107, 0.5
        %v1168 = vmul.f32 %v1108, 0.5
        %v1169 = vmul.f32 %v1109, 0.5
        %v1170 = vmul.f32 %v1110, 0.5
        %v1171 = vmul.f32 %v1111, 0.5
        %v1172 = vmul.f32 %v1112, 0.5
        %v1173 = vmul.f32 %v1113, 0.5
        %v1174 = vmul.f32 %v1114, 0.5
        %v1175 = vadd.f32 %v1115, 0.5
        %v1176 = vadd.f32 %v1116, 0.5
        %v1177 = vadd.f32 %v1117, 0.5
        %v1178 = vadd.f32 %v1118, 0.5
        %v1179 = vadd.f32 %v1119, 0.5
        %v1180 = vadd.f32 %v1120, 0.5
        %v1181 = vadd.f32 %v1121, 0.5
        %v1182 = vadd.f32 %v1122, 0.5
        %v1183 = vadd.f32 %v1123, 0.5
        %v1184 = vadd.f32 %v1124, 0.5
        %v1185 = vadd.f32 %v1125, 0.5
        %v1186 = vadd.f32 %v1126, 0.5
        %v1187 = vadd.f32 %v1127, 0.5
        %v1188 = vadd.f32 %v1128, 0.5
        %v1189 = vadd.f32 %v1129, 0.5
        %v1190 = vadd.f32 %v1130, 0.5
        %v1191 = vadd.f32 %v1131, 0.5
        %v1192 = vadd.f32 %v1132, 0.5
        %v1193 = vadd.f32 %v1133, 0.5
        %v1194 = vadd.f32 %v1134, 0.5
        %v1195 = vadd.f32 %v1135, 0.5
        %v1196 = vadd.f32 %v1136, 0.5
        %v1197 = vadd.f32 %v1137, 0.5
        %v1198 = vadd.f32 %v1138, 0.5
        %v1199 = vadd.f32 %v1139, 0.5
        %v1200 = vadd.f32 %v1140, 0.5
        %v1201 = vadd.f32 %v1141, 0.5
        %v1202 = vadd.f32 %v1142, 0.5
        %v1203 = vadd.f32 %v1143, 0.5
        %v1204 = vadd.f32 %v1144, 0.5
        %v1205 = vadd.f32 %v1145, 0.5
        %v1206 = vadd.f32 %v1146, 0.5
        %v1207 = vadd.f32 %v1147, 0.5
        %v1208 = vadd.f32 %v1148, 0.5
        %v1209 = vadd.f32 %v1149, 0.5
        %v1210 = vadd.f32 %v1150, 0.5
        %v1211 = vadd.f32 %v1151, 0.5
        %v1212 = vadd.f32 %v1152, 0.5
        %v1213 = vadd.f32 %v1153, 0.5
        %v1214 = vadd.f32 %v1154, 0.5
        %v1215 = vadd.f32 %v1155, 0.5
        %v1216 = vadd.f32 %v1156, 0.5
        %v1217 = vadd.f32 %v1157, 0.5
        %v1218 = vadd.f32 %v1158, 0.5
        %v1219 = vadd.f32 %v1159, 0.5
        %v1220 = vadd.f32 %v1160, 0.5
        %v1221 = vadd.f32 %v1161, 0.5
        %v1222 = vadd.f32 %v1162, 0.5
        %v1223 = vadd.f32 %v1163, 0.5
        %v1224 = vadd.f32 %v1164, 0.5
        %v1225 = vadd.f32 %v1165, 0.5
        %v1226 = vadd.f32 %v1166, 0.5
        %v1227 = vadd.f32 %v1167, 0.5
        %v1228 = vadd.f32 %v1168, 0.5
        %v1229 = vadd.f32 %v1169, 0.5
        %v1230 = vadd.f32 %v1170, 0.5
        %v1231 = vadd.f32 %v1171, 0.5
        %v1232 = vadd.f32 %v1172, 0.5
        %v1233 = vadd.f32 %v1173, 0.5
        %v1234 = vadd.f32 %v1174, 0.5
        %1235 = vset.pattern.permute.xlu0 3
        %1236 = vperm.xlu0 %1235, %v348
        %v1237 = vpop.permute.xlu0 %1236
        %1239 = vset.pattern.permute.xlu0 3
        %1240 = vperm.xlu0 %1239, %v349
        %v1241 = vpop.permute.xlu0 %1240
        %1243 = vset.pattern.permute.xlu0 3
        %1244 = vperm.xlu0 %1243, %v350
        %v1245 = vpop.permute.xlu0 %1244
        %v1247 = vmul.f32 %v1237, %v474
        %v1248 = vmul.f32 %v1237, %v478
        %v1249 = vmul.f32 %v1237, %v482
        %v1250 = vmul.f32 %v1237, %v486
        %v1251 = vmul.f32 %v1237, %v490
        %v1252 = vmul.f32 %v1237, %v494
        %v1253 = vmul.f32 %v1237, %v498
        %v1254 = vmul.f32 %v1237, %v502
        %v1255 = vmul.f32 %v1237, %v506
        %v1256 = vmul.f32 %v1237, %v510
        %v1257 = vmul.f32 %v1237, %v514
        %v1258 = vmul.f32 %v1237, %v518
        %v1259 = vmul.f32 %v1237, %v522
        %v1260 = vmul.f32 %v1237, %v526
        %v1261 = vmul.f32 %v1237, %v530
        %v1262 = vmul.f32 %v1237, %v534
        %v1263 = vmul.f32 %v1237, %v538
        %v1264 = vmul.f32 %v1237, %v542
        %v1265 = vmul.f32 %v1237, %v546
        %v1266 = vmul.f32 %v1237, %v550
        %v1267 = vmul.f32 %v1241, %v474
        %v1268 = vmul.f32 %v1241, %v478
        %v1269 = vmul.f32 %v1241, %v482
        %v1270 = vmul.f32 %v1241, %v486
        %v1271 = vmul.f32 %v1241, %v490
        %v1272 = vmul.f32 %v1241, %v494
        %v1273 = vmul.f32 %v1241, %v498
        %v1274 = vmul.f32 %v1241, %v502
        %v1275 = vmul.f32 %v1241, %v506
        %v1276 = vmul.f32 %v1241, %v510
        %v1277 = vmul.f32 %v1241, %v514
        %v1278 = vmul.f32 %v1241, %v518
        %v1279 = vmul.f32 %v1241, %v522
        %v1280 = vmul.f32 %v1241, %v526
        %v1281 = vmul.f32 %v1241, %v530
        %v1282 = vmul.f32 %v1241, %v534
        %v1283 = vmul.f32 %v1241, %v538
        %v1284 = vmul.f32 %v1241, %v542
        %v1285 = vmul.f32 %v1241, %v546
        %v1286 = vmul.f32 %v1241, %v550
        %v1287 = vmul.f32 %v1245, %v474
        %v1288 = vmul.f32 %v1245, %v478
        %v1289 = vmul.f32 %v1245, %v482
        %v1290 = vmul.f32 %v1245, %v486
        %v1291 = vmul.f32 %v1245, %v490
        %v1292 = vmul.f32 %v1245, %v494
        %v1293 = vmul.f32 %v1245, %v498
        %v1294 = vmul.f32 %v1245, %v502
        %v1295 = vmul.f32 %v1245, %v506
        %v1296 = vmul.f32 %v1245, %v510
        %v1297 = vmul.f32 %v1245, %v514
        %v1298 = vmul.f32 %v1245, %v518
        %v1299 = vmul.f32 %v1245, %v522
        %v1300 = vmul.f32 %v1245, %v526
        %v1301 = vmul.f32 %v1245, %v530
        %v1302 = vmul.f32 %v1245, %v534
        %v1303 = vmul.f32 %v1245, %v538
        %v1304 = vmul.f32 %v1245, %v542
        %v1305 = vmul.f32 %v1245, %v546
        %v1306 = vmul.f32 %v1245, %v550
        %1307 = vset.pattern.permute.xlu0 5
        %1308 = vperm.xlu0 %1307, %v348
        %v1309 = vpop.permute.xlu0 %1308
        %1311 = vset.pattern.permute.xlu0 5
        %1312 = vperm.xlu0 %1311, %v349
        %v1313 = vpop.permute.xlu0 %1312
        %1315 = vset.pattern.permute.xlu0 5
        %1316 = vperm.xlu0 %1315, %v350
        %v1317 = vpop.permute.xlu0 %1316
        %v1319 = vadd.f32 %v1309, %v1247
        %v1320 = vadd.f32 %v1309, %v1248
        %v1321 = vadd.f32 %v1309, %v1249
        %v1322 = vadd.f32 %v1309, %v1250
        %v1323 = vadd.f32 %v1309, %v1251
        %v1324 = vadd.f32 %v1309, %v1252
        %v1325 = vadd.f32 %v1309, %v1253
        %v1326 = vadd.f32 %v1309, %v1254
        %v1327 = vadd.f32 %v1309, %v1255
        %v1328 = vadd.f32 %v1309, %v1256
        %v1329 = vadd.f32 %v1309, %v1257
        %v1330 = vadd.f32 %v1309, %v1258
        %v1331 = vadd.f32 %v1309, %v1259
        %v1332 = vadd.f32 %v1309, %v1260
        %v1333 = vadd.f32 %v1309, %v1261
        %v1334 = vadd.f32 %v1309, %v1262
        %v1335 = vadd.f32 %v1309, %v1263
        %v1336 = vadd.f32 %v1309, %v1264
        %v1337 = vadd.f32 %v1309, %v1265
        %v1338 = vadd.f32 %v1309, %v1266
        %v1339 = vadd.f32 %v1313, %v1267
        %v1340 = vadd.f32 %v1313, %v1268
        %v1341 = vadd.f32 %v1313, %v1269
        %v1342 = vadd.f32 %v1313, %v1270
        %v1343 = vadd.f32 %v1313, %v1271
        %v1344 = vadd.f32 %v1313, %v1272
        %v1345 = vadd.f32 %v1313, %v1273
        %v1346 = vadd.f32 %v1313, %v1274
        %v1347 = vadd.f32 %v1313, %v1275
        %v1348 = vadd.f32 %v1313, %v1276
        %v1349 = vadd.f32 %v1313, %v1277
        %v1350 = vadd.f32 %v1313, %v1278
        %v1351 = vadd.f32 %v1313, %v1279
        %v1352 = vadd.f32 %v1313, %v1280
        %v1353 = vadd.f32 %v1313, %v1281
        %v1354 = vadd.f32 %v1313, %v1282
        %v1355 = vadd.f32 %v1313, %v1283
        %v1356 = vadd.f32 %v1313, %v1284
        %v1357 = vadd.f32 %v1313, %v1285
        %v1358 = vadd.f32 %v1313, %v1286
        %v1359 = vadd.f32 %v1317, %v1287
        %v1360 = vadd.f32 %v1317, %v1288
        %v1361 = vadd.f32 %v1317, %v1289
        %v1362 = vadd.f32 %v1317, %v1290
        %v1363 = vadd.f32 %v1317, %v1291
        %v1364 = vadd.f32 %v1317, %v1292
        %v1365 = vadd.f32 %v1317, %v1293
        %v1366 = vadd.f32 %v1317, %v1294
        %v1367 = vadd.f32 %v1317, %v1295
        %v1368 = vadd.f32 %v1317, %v1296
        %v1369 = vadd.f32 %v1317, %v1297
        %v1370 = vadd.f32 %v1317, %v1298
        %v1371 = vadd.f32 %v1317, %v1299
        %v1372 = vadd.f32 %v1317, %v1300
        %v1373 = vadd.f32 %v1317, %v1301
        %v1374 = vadd.f32 %v1317, %v1302
        %v1375 = vadd.f32 %v1317, %v1303
        %v1376 = vadd.f32 %v1317, %v1304
        %v1377 = vadd.f32 %v1317, %v1305
        %v1378 = vadd.f32 %v1317, %v1306
        %1379 = vset.pattern.permute.xlu0 4
        %1380 = vperm.xlu0 %1379, %v348
        %v1381 = vpop.permute.xlu0 %1380
        %1383 = vset.pattern.permute.xlu0 4
        %1384 = vperm.xlu0 %1383, %v349
        %v1385 = vpop.permute.xlu0 %1384
        %1387 = vset.pattern.permute.xlu0 4
        %1388 = vperm.xlu0 %1387, %v350
        %v1389 = vpop.permute.xlu0 %1388
        %v1391 = vmul.f32 %v1381, %v798
        %v1392 = vmul.f32 %v1381, %v802
        %v1393 = vmul.f32 %v1381, %v806
        %v1394 = vmul.f32 %v1381, %v810
        %v1395 = vmul.f32 %v1381, %v814
        %v1396 = vmul.f32 %v1381, %v818
        %v1397 = vmul.f32 %v1381, %v822
        %v1398 = vmul.f32 %v1381, %v826
        %v1399 = vmul.f32 %v1381, %v830
        %v1400 = vmul.f32 %v1381, %v834
        %v1401 = vmul.f32 %v1381, %v838
        %v1402 = vmul.f32 %v1381, %v842
        %v1403 = vmul.f32 %v1381, %v846
        %v1404 = vmul.f32 %v1381, %v850
        %v1405 = vmul.f32 %v1381, %v854
        %v1406 = vmul.f32 %v1381, %v858
        %v1407 = vmul.f32 %v1381, %v862
        %v1408 = vmul.f32 %v1381, %v866
        %v1409 = vmul.f32 %v1381, %v870
        %v1410 = vmul.f32 %v1381, %v874
        %v1411 = vmul.f32 %v1385, %v798
        %v1412 = vmul.f32 %v1385, %v802
        %v1413 = vmul.f32 %v1385, %v806
        %v1414 = vmul.f32 %v1385, %v810
        %v1415 = vmul.f32 %v1385, %v814
        %v1416 = vmul.f32 %v1385, %v818
        %v1417 = vmul.f32 %v1385, %v822
        %v1418 = vmul.f32 %v1385, %v826
        %v1419 = vmul.f32 %v1385, %v830
        %v1420 = vmul.f32 %v1385, %v834
        %v1421 = vmul.f32 %v1385, %v838
        %v1422 = vmul.f32 %v1385, %v842
        %v1423 = vmul.f32 %v1385, %v846
        %v1424 = vmul.f32 %v1385, %v850
        %v1425 = vmul.f32 %v1385, %v854
        %v1426 = vmul.f32 %v1385, %v858
        %v1427 = vmul.f32 %v1385, %v862
        %v1428 = vmul.f32 %v1385, %v866
        %v1429 = vmul.f32 %v1385, %v870
        %v1430 = vmul.f32 %v1385, %v874
        %v1431 = vmul.f32 %v1389, %v798
        %v1432 = vmul.f32 %v1389, %v802
        %v1433 = vmul.f32 %v1389, %v806
        %v1434 = vmul.f32 %v1389, %v810
        %v1435 = vmul.f32 %v1389, %v814
        %v1436 = vmul.f32 %v1389, %v818
        %v1437 = vmul.f32 %v1389, %v822
        %v1438 = vmul.f32 %v1389, %v826
        %v1439 = vmul.f32 %v1389, %v830
        %v1440 = vmul.f32 %v1389, %v834
        %v1441 = vmul.f32 %v1389, %v838
        %v1442 = vmul.f32 %v1389, %v842
        %v1443 = vmul.f32 %v1389, %v846
        %v1444 = vmul.f32 %v1389, %v850
        %v1445 = vmul.f32 %v1389, %v854
        %v1446 = vmul.f32 %v1389, %v858
        %v1447 = vmul.f32 %v1389, %v862
        %v1448 = vmul.f32 %v1389, %v866
        %v1449 = vmul.f32 %v1389, %v870
        %v1450 = vmul.f32 %v1389, %v874
        %v1451 = vadd.f32 %v1319, %v1391
        %v1452 = vadd.f32 %v1320, %v1392
        %v1453 = vadd.f32 %v1321, %v1393
        %v1454 = vadd.f32 %v1322, %v1394
        %v1455 = vadd.f32 %v1323, %v1395
        %v1456 = vadd.f32 %v1324, %v1396
        %v1457 = vadd.f32 %v1325, %v1397
        %v1458 = vadd.f32 %v1326, %v1398
        %v1459 = vadd.f32 %v1327, %v1399
        %v1460 = vadd.f32 %v1328, %v1400
        %v1461 = vadd.f32 %v1329, %v1401
        %v1462 = vadd.f32 %v1330, %v1402
        %v1463 = vadd.f32 %v1331, %v1403
        %v1464 = vadd.f32 %v1332, %v1404
        %v1465 = vadd.f32 %v1333, %v1405
        %v1466 = vadd.f32 %v1334, %v1406
        %v1467 = vadd.f32 %v1335, %v1407
        %v1468 = vadd.f32 %v1336, %v1408
        %v1469 = vadd.f32 %v1337, %v1409
        %v1470 = vadd.f32 %v1338, %v1410
        %v1471 = vadd.f32 %v1339, %v1411
        %v1472 = vadd.f32 %v1340, %v1412
        %v1473 = vadd.f32 %v1341, %v1413
        %v1474 = vadd.f32 %v1342, %v1414
        %v1475 = vadd.f32 %v1343, %v1415
        %v1476 = vadd.f32 %v1344, %v1416
        %v1477 = vadd.f32 %v1345, %v1417
        %v1478 = vadd.f32 %v1346, %v1418
        %v1479 = vadd.f32 %v1347, %v1419
        %v1480 = vadd.f32 %v1348, %v1420
        %v1481 = vadd.f32 %v1349, %v1421
        %v1482 = vadd.f32 %v1350, %v1422
        %v1483 = vadd.f32 %v1351, %v1423
        %v1484 = vadd.f32 %v1352, %v1424
        %v1485 = vadd.f32 %v1353, %v1425
        %v1486 = vadd.f32 %v1354, %v1426
        %v1487 = vadd.f32 %v1355, %v1427
        %v1488 = vadd.f32 %v1356, %v1428
        %v1489 = vadd.f32 %v1357, %v1429
        %v1490 = vadd.f32 %v1358, %v1430
        %v1491 = vadd.f32 %v1359, %v1431
        %v1492 = vadd.f32 %v1360, %v1432
        %v1493 = vadd.f32 %v1361, %v1433
        %v1494 = vadd.f32 %v1362, %v1434
        %v1495 = vadd.f32 %v1363, %v1435
        %v1496 = vadd.f32 %v1364, %v1436
        %v1497 = vadd.f32 %v1365, %v1437
        %v1498 = vadd.f32 %v1366, %v1438
        %v1499 = vadd.f32 %v1367, %v1439
        %v1500 = vadd.f32 %v1368, %v1440
        %v1501 = vadd.f32 %v1369, %v1441
        %v1502 = vadd.f32 %v1370, %v1442
        %v1503 = vadd.f32 %v1371, %v1443
        %v1504 = vadd.f32 %v1372, %v1444
        %v1505 = vadd.f32 %v1373, %v1445
        %v1506 = vadd.f32 %v1374, %v1446
        %v1507 = vadd.f32 %v1375, %v1447
        %v1508 = vadd.f32 %v1376, %v1448
        %v1509 = vadd.f32 %v1377, %v1449
        %v1510 = vadd.f32 %v1378, %v1450
        %v1511 = vtanh.pop %v1451
        %v1512 = vtanh.pop %v1452
        %v1513 = vtanh.pop %v1453
        %v1514 = vtanh.pop %v1454
        %v1515 = vtanh.pop %v1455
        %v1516 = vtanh.pop %v1456
        %v1517 = vtanh.pop %v1457
        %v1518 = vtanh.pop %v1458
        %v1519 = vtanh.pop %v1459
        %v1520 = vtanh.pop %v1460
        %v1521 = vtanh.pop %v1461
        %v1522 = vtanh.pop %v1462
        %v1523 = vtanh.pop %v1463
        %v1524 = vtanh.pop %v1464
        %v1525 = vtanh.pop %v1465
        %v1526 = vtanh.pop %v1466
        %v1527 = vtanh.pop %v1467
        %v1528 = vtanh.pop %v1468
        %v1529 = vtanh.pop %v1469
        %v1530 = vtanh.pop %v1470
        %v1531 = vtanh.pop %v1471
        %v1532 = vtanh.pop %v1472
        %v1533 = vtanh.pop %v1473
        %v1534 = vtanh.pop %v1474
        %v1535 = vtanh.pop %v1475
        %v1536 = vtanh.pop %v1476
        %v1537 = vtanh.pop %v1477
        %v1538 = vtanh.pop %v1478
        %v1539 = vtanh.pop %v1479
        %v1540 = vtanh.pop %v1480
        %v1541 = vtanh.pop %v1481
        %v1542 = vtanh.pop %v1482
        %v1543 = vtanh.pop %v1483
        %v1544 = vtanh.pop %v1484
        %v1545 = vtanh.pop %v1485
        %v1546 = vtanh.pop %v1486
        %v1547 = vtanh.pop %v1487
        %v1548 = vtanh.pop %v1488
        %v1549 = vtanh.pop %v1489
        %v1550 = vtanh.pop %v1490
        %v1551 = vtanh.pop %v1491
        %v1552 = vtanh.pop %v1492
        %v1553 = vtanh.pop %v1493
        %v1554 = vtanh.pop %v1494
        %v1555 = vtanh.pop %v1495
        %v1556 = vtanh.pop %v1496
        %v1557 = vtanh.pop %v1497
        %v1558 = vtanh.pop %v1498
        %v1559 = vtanh.pop %v1499
        %v1560 = vtanh.pop %v1500
        %v1561 = vtanh.pop %v1501
        %v1562 = vtanh.pop %v1502
        %v1563 = vtanh.pop %v1503
        %v1564 = vtanh.pop %v1504
        %v1565 = vtanh.pop %v1505
        %v1566 = vtanh.pop %v1506
        %v1567 = vtanh.pop %v1507
        %v1568 = vtanh.pop %v1508
        %v1569 = vtanh.pop %v1509
        %v1570 = vtanh.pop %v1510
        %1571 = vset.pattern.permute.xlu0 6
        %1572 = vperm.xlu0 %1571, %v348
        %v1573 = vpop.permute.xlu0 %1572
        %1575 = vset.pattern.permute.xlu0 6
        %1576 = vperm.xlu0 %1575, %v349
        %v1577 = vpop.permute.xlu0 %1576
        %1579 = vset.pattern.permute.xlu0 6
        %1580 = vperm.xlu0 %1579, %v350
        %v1581 = vpop.permute.xlu0 %1580
        %v1583 = vmul.f32 %v1573, %v474
        %v1584 = vmul.f32 %v1573, %v478
        %v1585 = vmul.f32 %v1573, %v482
        %v1586 = vmul.f32 %v1573, %v486
        %v1587 = vmul.f32 %v1573, %v490
        %v1588 = vmul.f32 %v1573, %v494
        %v1589 = vmul.f32 %v1573, %v498
        %v1590 = vmul.f32 %v1573, %v502
        %v1591 = vmul.f32 %v1573, %v506
        %v1592 = vmul.f32 %v1573, %v510
        %v1593 = vmul.f32 %v1573, %v514
        %v1594 = vmul.f32 %v1573, %v518
        %v1595 = vmul.f32 %v1573, %v522
        %v1596 = vmul.f32 %v1573, %v526
        %v1597 = vmul.f32 %v1573, %v530
        %v1598 = vmul.f32 %v1573, %v534
        %v1599 = vmul.f32 %v1573, %v538
        %v1600 = vmul.f32 %v1573, %v542
        %v1601 = vmul.f32 %v1573, %v546
        %v1602 = vmul.f32 %v1573, %v550
        %v1603 = vmul.f32 %v1577, %v474
        %v1604 = vmul.f32 %v1577, %v478
        %v1605 = vmul.f32 %v1577, %v482
        %v1606 = vmul.f32 %v1577, %v486
        %v1607 = vmul.f32 %v1577, %v490
        %v1608 = vmul.f32 %v1577, %v494
        %v1609 = vmul.f32 %v1577, %v498
        %v1610 = vmul.f32 %v1577, %v502
        %v1611 = vmul.f32 %v1577, %v506
        %v1612 = vmul.f32 %v1577, %v510
        %v1613 = vmul.f32 %v1577, %v514
        %v1614 = vmul.f32 %v1577, %v518
        %v1615 = vmul.f32 %v1577, %v522
        %v1616 = vmul.f32 %v1577, %v526
        %v1617 = vmul.f32 %v1577, %v530
        %v1618 = vmul.f32 %v1577, %v534
        %v1619 = vmul.f32 %v1577, %v538
        %v1620 = vmul.f32 %v1577, %v542
        %v1621 = vmul.f32 %v1577, %v546
        %v1622 = vmul.f32 %v1577, %v550
        %v1623 = vmul.f32 %v1581, %v474
        %v1624 = vmul.f32 %v1581, %v478
        %v1625 = vmul.f32 %v1581, %v482
        %v1626 = vmul.f32 %v1581, %v486
        %v1627 = vmul.f32 %v1581, %v490
        %v1628 = vmul.f32 %v1581, %v494
        %v1629 = vmul.f32 %v1581, %v498
        %v1630 = vmul.f32 %v1581, %v502
        %v1631 = vmul.f32 %v1581, %v506
        %v1632 = vmul.f32 %v1581, %v510
        %v1633 = vmul.f32 %v1581, %v514
        %v1634 = vmul.f32 %v1581, %v518
        %v1635 = vmul.f32 %v1581, %v522
        %v1636 = vmul.f32 %v1581, %v526
        %v1637 = vmul.f32 %v1581, %v530
        %v1638 = vmul.f32 %v1581, %v534
        %v1639 = vmul.f32 %v1581, %v538
        %v1640 = vmul.f32 %v1581, %v542
        %v1641 = vmul.f32 %v1581, %v546
        %v1642 = vmul.f32 %v1581, %v550
        %1643 = vset.pattern.permute.xlu0 8
        %1644 = vperm.xlu0 %1643, %v348
        %v1645 = vpop.permute.xlu0 %1644
        %1647 = vset.pattern.permute.xlu0 8
        %1648 = vperm.xlu0 %1647, %v349
        %v1649 = vpop.permute.xlu0 %1648
        %1651 = vset.pattern.permute.xlu0 8
        %1652 = vperm.xlu0 %1651, %v350
        %v1653 = vpop.permute.xlu0 %1652
        %v1655 = vadd.f32 %v1645, %v1583
        %v1656 = vadd.f32 %v1645, %v1584
        %v1657 = vadd.f32 %v1645, %v1585
        %v1658 = vadd.f32 %v1645, %v1586
        %v1659 = vadd.f32 %v1645, %v1587
        %v1660 = vadd.f32 %v1645, %v1588
        %v1661 = vadd.f32 %v1645, %v1589
        %v1662 = vadd.f32 %v1645, %v1590
        %v1663 = vadd.f32 %v1645, %v1591
        %v1664 = vadd.f32 %v1645, %v1592
        %v1665 = vadd.f32 %v1645, %v1593
        %v1666 = vadd.f32 %v1645, %v1594
        %v1667 = vadd.f32 %v1645, %v1595
        %v1668 = vadd.f32 %v1645, %v1596
        %v1669 = vadd.f32 %v1645, %v1597
        %v1670 = vadd.f32 %v1645, %v1598
        %v1671 = vadd.f32 %v1645, %v1599
        %v1672 = vadd.f32 %v1645, %v1600
        %v1673 = vadd.f32 %v1645, %v1601
        %v1674 = vadd.f32 %v1645, %v1602
        %v1675 = vadd.f32 %v1649, %v1603
        %v1676 = vadd.f32 %v1649, %v1604
        %v1677 = vadd.f32 %v1649, %v1605
        %v1678 = vadd.f32 %v1649, %v1606
        %v1679 = vadd.f32 %v1649, %v1607
        %v1680 = vadd.f32 %v1649, %v1608
        %v1681 = vadd.f32 %v1649, %v1609
        %v1682 = vadd.f32 %v1649, %v1610
        %v1683 = vadd.f32 %v1649, %v1611
        %v1684 = vadd.f32 %v1649, %v1612
        %v1685 = vadd.f32 %v1649, %v1613
        %v1686 = vadd.f32 %v1649, %v1614
        %v1687 = vadd.f32 %v1649, %v1615
        %v1688 = vadd.f32 %v1649, %v1616
        %v1689 = vadd.f32 %v1649, %v1617
        %v1690 = vadd.f32 %v1649, %v1618
        %v1691 = vadd.f32 %v1649, %v1619
        %v1692 = vadd.f32 %v1649, %v1620
        %v1693 = vadd.f32 %v1649, %v1621
        %v1694 = vadd.f32 %v1649, %v1622
        %v1695 = vadd.f32 %v1653, %v1623
        %v1696 = vadd.f32 %v1653, %v1624
        %v1697 = vadd.f32 %v1653, %v1625
        %v1698 = vadd.f32 %v1653, %v1626
        %v1699 = vadd.f32 %v1653, %v1627
        %v1700 = vadd.f32 %v1653, %v1628
        %v1701 = vadd.f32 %v1653, %v1629
        %v1702 = vadd.f32 %v1653, %v1630
        %v1703 = vadd.f32 %v1653, %v1631
        %v1704 = vadd.f32 %v1653, %v1632
        %v1705 = vadd.f32 %v1653, %v1633
        %v1706 = vadd.f32 %v1653, %v1634
        %v1707 = vadd.f32 %v1653, %v1635
        %v1708 = vadd.f32 %v1653, %v1636
        %v1709 = vadd.f32 %v1653, %v1637
        %v1710 = vadd.f32 %v1653, %v1638
        %v1711 = vadd.f32 %v1653, %v1639
        %v1712 = vadd.f32 %v1653, %v1640
        %v1713 = vadd.f32 %v1653, %v1641
        %v1714 = vadd.f32 %v1653, %v1642
        %1715 = vset.pattern.permute.xlu0 7
        %1716 = vperm.xlu0 %1715, %v348
        %v1717 = vpop.permute.xlu0 %1716
        %1719 = vset.pattern.permute.xlu0 7
        %1720 = vperm.xlu0 %1719, %v349
        %v1721 = vpop.permute.xlu0 %1720
        %1723 = vset.pattern.permute.xlu0 7
        %1724 = vperm.xlu0 %1723, %v350
        %v1725 = vpop.permute.xlu0 %1724
        %v1727 = vmul.f32 %v1717, %v798
        %v1728 = vmul.f32 %v1717, %v802
        %v1729 = vmul.f32 %v1717, %v806
        %v1730 = vmul.f32 %v1717, %v810
        %v1731 = vmul.f32 %v1717, %v814
        %v1732 = vmul.f32 %v1717, %v818
        %v1733 = vmul.f32 %v1717, %v822
        %v1734 = vmul.f32 %v1717, %v826
        %v1735 = vmul.f32 %v1717, %v830
        %v1736 = vmul.f32 %v1717, %v834
        %v1737 = vmul.f32 %v1717, %v838
        %v1738 = vmul.f32 %v1717, %v842
        %v1739 = vmul.f32 %v1717, %v846
        %v1740 = vmul.f32 %v1717, %v850
        %v1741 = vmul.f32 %v1717, %v854
        %v1742 = vmul.f32 %v1717, %v858
        %v1743 = vmul.f32 %v1717, %v862
        %v1744 = vmul.f32 %v1717, %v866
        %v1745 = vmul.f32 %v1717, %v870
        %v1746 = vmul.f32 %v1717, %v874
        %v1747 = vmul.f32 %v1721, %v798
        %v1748 = vmul.f32 %v1721, %v802
        %v1749 = vmul.f32 %v1721, %v806
        %v1750 = vmul.f32 %v1721, %v810
        %v1751 = vmul.f32 %v1721, %v814
        %v1752 = vmul.f32 %v1721, %v818
        %v1753 = vmul.f32 %v1721, %v822
        %v1754 = vmul.f32 %v1721, %v826
        %v1755 = vmul.f32 %v1721, %v830
        %v1756 = vmul.f32 %v1721, %v834
        %v1757 = vmul.f32 %v1721, %v838
        %v1758 = vmul.f32 %v1721, %v842
        %v1759 = vmul.f32 %v1721, %v846
        %v1760 = vmul.f32 %v1721, %v850
        %v1761 = vmul.f32 %v1721, %v854
        %v1762 = vmul.f32 %v1721, %v858
        %v1763 = vmul.f32 %v1721, %v862
        %v1764 = vmul.f32 %v1721, %v866
        %v1765 = vmul.f32 %v1721, %v870
        %v1766 = vmul.f32 %v1721, %v874
        %v1767 = vmul.f32 %v1725, %v798
        %v1768 = vmul.f32 %v1725, %v802
        %v1769 = vmul.f32 %v1725, %v806
        %v1770 = vmul.f32 %v1725, %v810
        %v1771 = vmul.f32 %v1725, %v814
        %v1772 = vmul.f32 %v1725, %v818
        %v1773 = vmul.f32 %v1725, %v822
        %v1774 = vmul.f32 %v1725, %v826
        %v1775 = vmul.f32 %v1725, %v830
        %v1776 = vmul.f32 %v1725, %v834
        %v1777 = vmul.f32 %v1725, %v838
        %v1778 = vmul.f32 %v1725, %v842
        %v1779 = vmul.f32 %v1725, %v846
        %v1780 = vmul.f32 %v1725, %v850
        %v1781 = vmul.f32 %v1725, %v854
        %v1782 = vmul.f32 %v1725, %v858
        %v1783 = vmul.f32 %v1725, %v862
        %v1784 = vmul.f32 %v1725, %v866
        %v1785 = vmul.f32 %v1725, %v870
        %v1786 = vmul.f32 %v1725, %v874
        %v1787 = vadd.f32 %v1655, %v1727
        %v1788 = vadd.f32 %v1656, %v1728
        %v1789 = vadd.f32 %v1657, %v1729
        %v1790 = vadd.f32 %v1658, %v1730
        %v1791 = vadd.f32 %v1659, %v1731
        %v1792 = vadd.f32 %v1660, %v1732
        %v1793 = vadd.f32 %v1661, %v1733
        %v1794 = vadd.f32 %v1662, %v1734
        %v1795 = vadd.f32 %v1663, %v1735
        %v1796 = vadd.f32 %v1664, %v1736
        %v1797 = vadd.f32 %v1665, %v1737
        %v1798 = vadd.f32 %v1666, %v1738
        %v1799 = vadd.f32 %v1667, %v1739
        %v1800 = vadd.f32 %v1668, %v1740
        %v1801 = vadd.f32 %v1669, %v1741
        %v1802 = vadd.f32 %v1670, %v1742
        %v1803 = vadd.f32 %v1671, %v1743
        %v1804 = vadd.f32 %v1672, %v1744
        %v1805 = vadd.f32 %v1673, %v1745
        %v1806 = vadd.f32 %v1674, %v1746
        %v1807 = vadd.f32 %v1675, %v1747
        %v1808 = vadd.f32 %v1676, %v1748
        %v1809 = vadd.f32 %v1677, %v1749
        %v1810 = vadd.f32 %v1678, %v1750
        %v1811 = vadd.f32 %v1679, %v1751
        %v1812 = vadd.f32 %v1680, %v1752
        %v1813 = vadd.f32 %v1681, %v1753
        %v1814 = vadd.f32 %v1682, %v1754
        %v1815 = vadd.f32 %v1683, %v1755
        %v1816 = vadd.f32 %v1684, %v1756
        %v1817 = vadd.f32 %v1685, %v1757
        %v1818 = vadd.f32 %v1686, %v1758
        %v1819 = vadd.f32 %v1687, %v1759
        %v1820 = vadd.f32 %v1688, %v1760
        %v1821 = vadd.f32 %v1689, %v1761
        %v1822 = vadd.f32 %v1690, %v1762
        %v1823 = vadd.f32 %v1691, %v1763
        %v1824 = vadd.f32 %v1692, %v1764
        %v1825 = vadd.f32 %v1693, %v1765
        %v1826 = vadd.f32 %v1694, %v1766
        %v1827 = vadd.f32 %v1695, %v1767
        %v1828 = vadd.f32 %v1696, %v1768
        %v1829 = vadd.f32 %v1697, %v1769
        %v1830 = vadd.f32 %v1698, %v1770
        %v1831 = vadd.f32 %v1699, %v1771
        %v1832 = vadd.f32 %v1700, %v1772
        %v1833 = vadd.f32 %v1701, %v1773
        %v1834 = vadd.f32 %v1702, %v1774
        %v1835 = vadd.f32 %v1703, %v1775
        %v1836 = vadd.f32 %v1704, %v1776
        %v1837 = vadd.f32 %v1705, %v1777
        %v1838 = vadd.f32 %v1706, %v1778
        %v1839 = vadd.f32 %v1707, %v1779
        %v1840 = vadd.f32 %v1708, %v1780
        %v1841 = vadd.f32 %v1709, %v1781
        %v1842 = vadd.f32 %v1710, %v1782
        %v1843 = vadd.f32 %v1711, %v1783
        %v1844 = vadd.f32 %v1712, %v1784
        %v1845 = vadd.f32 %v1713, %v1785
        %v1846 = vadd.f32 %v1714, %v1786
        %v1847 = vmul.f32 %v1787, 0.5
        %v1848 = vmul.f32 %v1788, 0.5
        %v1849 = vmul.f32 %v1789, 0.5
        %v1850 = vmul.f32 %v1790, 0.5
        %v1851 = vmul.f32 %v1791, 0.5
        %v1852 = vmul.f32 %v1792, 0.5
        %v1853 = vmul.f32 %v1793, 0.5
        %v1854 = vmul.f32 %v1794, 0.5
        %v1855 = vmul.f32 %v1795, 0.5
        %v1856 = vmul.f32 %v1796, 0.5
        %v1857 = vmul.f32 %v1797, 0.5
        %v1858 = vmul.f32 %v1798, 0.5
        %v1859 = vmul.f32 %v1799, 0.5
        %v1860 = vmul.f32 %v1800, 0.5
        %v1861 = vmul.f32 %v1801, 0.5
        %v1862 = vmul.f32 %v1802, 0.5
        %v1863 = vmul.f32 %v1803, 0.5
        %v1864 = vmul.f32 %v1804, 0.5
        %v1865 = vmul.f32 %v1805, 0.5
        %v1866 = vmul.f32 %v1806, 0.5
        %v1867 = vmul.f32 %v1807, 0.5
        %v1868 = vmul.f32 %v1808, 0.5
        %v1869 = vmul.f32 %v1809, 0.5
        %v1870 = vmul.f32 %v1810, 0.5
        %v1871 = vmul.f32 %v1811, 0.5
        %v1872 = vmul.f32 %v1812, 0.5
        %v1873 = vmul.f32 %v1813, 0.5
        %v1874 = vmul.f32 %v1814, 0.5
        %v1875 = vmul.f32 %v1815, 0.5
        %v1876 = vmul.f32 %v1816, 0.5
        %v1877 = vmul.f32 %v1817, 0.5
        %v1878 = vmul.f32 %v1818, 0.5
        %v1879 = vmul.f32 %v1819, 0.5
        %v1880 = vmul.f32 %v1820, 0.5
        %v1881 = vmul.f32 %v1821, 0.5
        %v1882 = vmul.f32 %v1822, 0.5
        %v1883 = vmul.f32 %v1823, 0.5
        %v1884 = vmul.f32 %v1824, 0.5
        %v1885 = vmul.f32 %v1825, 0.5
        %v1886 = vmul.f32 %v1826, 0.5
        %v1887 = vmul.f32 %v1827, 0.5
        %v1888 = vmul.f32 %v1828, 0.5
        %v1889 = vmul.f32 %v1829, 0.5
        %v1890 = vmul.f32 %v1830, 0.5
        %v1891 = vmul.f32 %v1831, 0.5
        %v1892 = vmul.f32 %v1832, 0.5
        %v1893 = vmul.f32 %v1833, 0.5
        %v1894 = vmul.f32 %v1834, 0.5
        %v1895 = vmul.f32 %v1835, 0.5
        %v1896 = vmul.f32 %v1836, 0.5
        %v1897 = vmul.f32 %v1837, 0.5
        %v1898 = vmul.f32 %v1838, 0.5
        %v1899 = vmul.f32 %v1839, 0.5
        %v1900 = vmul.f32 %v1840, 0.5
        %v1901 = vmul.f32 %v1841, 0.5
        %v1902 = vmul.f32 %v1842, 0.5
        %v1903 = vmul.f32 %v1843, 0.5
        %v1904 = vmul.f32 %v1844, 0.5
        %v1905 = vmul.f32 %v1845, 0.5
        %v1906 = vmul.f32 %v1846, 0.5
        %v1907 = vtanh.pop %v1847
        %v1908 = vtanh.pop %v1848
        %v1909 = vtanh.pop %v1849
        %v1910 = vtanh.pop %v1850
        %v1911 = vtanh.pop %v1851
        %v1912 = vtanh.pop %v1852
        %v1913 = vtanh.pop %v1853
        %v1914 = vtanh.pop %v1854
        %v1915 = vtanh.pop %v1855
        %v1916 = vtanh.pop %v1856
        %v1917 = vtanh.pop %v1857
        %v1918 = vtanh.pop %v1858
        %v1919 = vtanh.pop %v1859
        %v1920 = vtanh.pop %v1860
        %v1921 = vtanh.pop %v1861
        %v1922 = vtanh.pop %v1862
        %v1923 = vtanh.pop %v1863
        %v1924 = vtanh.pop %v1864
        %v1925 = vtanh.pop %v1865
        %v1926 = vtanh.pop %v1866
        %v1927 = vtanh.pop %v1867
        %v1928 = vtanh.pop %v1868
        %v1929 = vtanh.pop %v1869
        %v1930 = vtanh.pop %v1870
        %v1931 = vtanh.pop %v1871
        %v1932 = vtanh.pop %v1872
        %v1933 = vtanh.pop %v1873
        %v1934 = vtanh.pop %v1874
        %v1935 = vtanh.pop %v1875
        %v1936 = vtanh.pop %v1876
        %v1937 = vtanh.pop %v1877
        %v1938 = vtanh.pop %v1878
        %v1939 = vtanh.pop %v1879
        %v1940 = vtanh.pop %v1880
        %v1941 = vtanh.pop %v1881
        %v1942 = vtanh.pop %v1882
        %v1943 = vtanh.pop %v1883
        %v1944 = vtanh.pop %v1884
        %v1945 = vtanh.pop %v1885
        %v1946 = vtanh.pop %v1886
        %v1947 = vtanh.pop %v1887
        %v1948 = vtanh.pop %v1888
        %v1949 = vtanh.pop %v1889
        %v1950 = vtanh.pop %v1890
        %v1951 = vtanh.pop %v1891
        %v1952 = vtanh.pop %v1892
        %v1953 = vtanh.pop %v1893
        %v1954 = vtanh.pop %v1894
        %v1955 = vtanh.pop %v1895
        %v1956 = vtanh.pop %v1896
        %v1957 = vtanh.pop %v1897
        %v1958 = vtanh.pop %v1898
        %v1959 = vtanh.pop %v1899
        %v1960 = vtanh.pop %v1900
        %v1961 = vtanh.pop %v1901
        %v1962 = vtanh.pop %v1902
        %v1963 = vtanh.pop %v1903
        %v1964 = vtanh.pop %v1904
        %v1965 = vtanh.pop %v1905
        %v1966 = vtanh.pop %v1906
        %v1967 = vmul.f32 %v1907, 0.5
        %v1968 = vmul.f32 %v1908, 0.5
        %v1969 = vmul.f32 %v1909, 0.5
        %v1970 = vmul.f32 %v1910, 0.5
        %v1971 = vmul.f32 %v1911, 0.5
        %v1972 = vmul.f32 %v1912, 0.5
        %v1973 = vmul.f32 %v1913, 0.5
        %v1974 = vmul.f32 %v1914, 0.5
        %v1975 = vmul.f32 %v1915, 0.5
        %v1976 = vmul.f32 %v1916, 0.5
        %v1977 = vmul.f32 %v1917, 0.5
        %v1978 = vmul.f32 %v1918, 0.5
        %v1979 = vmul.f32 %v1919, 0.5
        %v1980 = vmul.f32 %v1920, 0.5
        %v1981 = vmul.f32 %v1921, 0.5
        %v1982 = vmul.f32 %v1922, 0.5
        %v1983 = vmul.f32 %v1923, 0.5
        %v1984 = vmul.f32 %v1924, 0.5
        %v1985 = vmul.f32 %v1925, 0.5
        %v1986 = vmul.f32 %v1926, 0.5
        %v1987 = vmul.f32 %v1927, 0.5
        %v1988 = vmul.f32 %v1928, 0.5
        %v1989 = vmul.f32 %v1929, 0.5
        %v1990 = vmul.f32 %v1930, 0.5
        %v1991 = vmul.f32 %v1931, 0.5
        %v1992 = vmul.f32 %v1932, 0.5
        %v1993 = vmul.f32 %v1933, 0.5
        %v1994 = vmul.f32 %v1934, 0.5
        %v1995 = vmul.f32 %v1935, 0.5
        %v1996 = vmul.f32 %v1936, 0.5
        %v1997 = vmul.f32 %v1937, 0.5
        %v1998 = vmul.f32 %v1938, 0.5
        %v1999 = vmul.f32 %v1939, 0.5
        %v2000 = vmul.f32 %v1940, 0.5
        %v2001 = vmul.f32 %v1941, 0.5
        %v2002 = vmul.f32 %v1942, 0.5
        %v2003 = vmul.f32 %v1943, 0.5
        %v2004 = vmul.f32 %v1944, 0.5
        %v2005 = vmul.f32 %v1945, 0.5
        %v2006 = vmul.f32 %v1946, 0.5
        %v2007 = vmul.f32 %v1947, 0.5
        %v2008 = vmul.f32 %v1948, 0.5
        %v2009 = vmul.f32 %v1949, 0.5
        %v2010 = vmul.f32 %v1950, 0.5
        %v2011 = vmul.f32 %v1951, 0.5
        %v2012 = vmul.f32 %v1952, 0.5
        %v2013 = vmul.f32 %v1953, 0.5
        %v2014 = vmul.f32 %v1954, 0.5
        %v2015 = vmul.f32 %v1955, 0.5
        %v2016 = vmul.f32 %v1956, 0.5
        %v2017 = vmul.f32 %v1957, 0.5
        %v2018 = vmul.f32 %v1958, 0.5
        %v2019 = vmul.f32 %v1959, 0.5
        %v2020 = vmul.f32 %v1960, 0.5
        %v2021 = vmul.f32 %v1961, 0.5
        %v2022 = vmul.f32 %v1962, 0.5
        %v2023 = vmul.f32 %v1963, 0.5
        %v2024 = vmul.f32 %v1964, 0.5
        %v2025 = vmul.f32 %v1965, 0.5
        %v2026 = vmul.f32 %v1966, 0.5
        %v2027 = vadd.f32 %v1967, 0.5
        %v2028 = vadd.f32 %v1968, 0.5
        %v2029 = vadd.f32 %v1969, 0.5
        %v2030 = vadd.f32 %v1970, 0.5
        %v2031 = vadd.f32 %v1971, 0.5
        %v2032 = vadd.f32 %v1972, 0.5
        %v2033 = vadd.f32 %v1973, 0.5
        %v2034 = vadd.f32 %v1974, 0.5
        %v2035 = vadd.f32 %v1975, 0.5
        %v2036 = vadd.f32 %v1976, 0.5
        %v2037 = vadd.f32 %v1977, 0.5
        %v2038 = vadd.f32 %v1978, 0.5
        %v2039 = vadd.f32 %v1979, 0.5
        %v2040 = vadd.f32 %v1980, 0.5
        %v2041 = vadd.f32 %v1981, 0.5
        %v2042 = vadd.f32 %v1982, 0.5
        %v2043 = vadd.f32 %v1983, 0.5
        %v2044 = vadd.f32 %v1984, 0.5
        %v2045 = vadd.f32 %v1985, 0.5
        %v2046 = vadd.f32 %v1986, 0.5
        %v2047 = vadd.f32 %v1987, 0.5
        %v2048 = vadd.f32 %v1988, 0.5
        %v2049 = vadd.f32 %v1989, 0.5
        %v2050 = vadd.f32 %v1990, 0.5
        %v2051 = vadd.f32 %v1991, 0.5
        %v2052 = vadd.f32 %v1992, 0.5
        %v2053 = vadd.f32 %v1993, 0.5
        %v2054 = vadd.f32 %v1994, 0.5
        %v2055 = vadd.f32 %v1995, 0.5
        %v2056 = vadd.f32 %v1996, 0.5
        %v2057 = vadd.f32 %v1997, 0.5
        %v2058 = vadd.f32 %v1998, 0.5
        %v2059 = vadd.f32 %v1999, 0.5
        %v2060 = vadd.f32 %v2000, 0.5
        %v2061 = vadd.f32 %v2001, 0.5
        %v2062 = vadd.f32 %v2002, 0.5
        %v2063 = vadd.f32 %v2003, 0.5
        %v2064 = vadd.f32 %v2004, 0.5
        %v2065 = vadd.f32 %v2005, 0.5
        %v2066 = vadd.f32 %v2006, 0.5
        %v2067 = vadd.f32 %v2007, 0.5
        %v2068 = vadd.f32 %v2008, 0.5
        %v2069 = vadd.f32 %v2009, 0.5
        %v2070 = vadd.f32 %v2010, 0.5
        %v2071 = vadd.f32 %v2011, 0.5
        %v2072 = vadd.f32 %v2012, 0.5
        %v2073 = vadd.f32 %v2013, 0.5
        %v2074 = vadd.f32 %v2014, 0.5
        %v2075 = vadd.f32 %v2015, 0.5
        %v2076 = vadd.f32 %v2016, 0.5
        %v2077 = vadd.f32 %v2017, 0.5
        %v2078 = vadd.f32 %v2018, 0.5
        %v2079 = vadd.f32 %v2019, 0.5
        %v2080 = vadd.f32 %v2020, 0.5
        %v2081 = vadd.f32 %v2021, 0.5
        %v2082 = vadd.f32 %v2022, 0.5
        %v2083 = vadd.f32 %v2023, 0.5
        %v2084 = vadd.f32 %v2024, 0.5
        %v2085 = vadd.f32 %v2025, 0.5
        %v2086 = vadd.f32 %v2026, 0.5
        %v2087 = vmul.f32 %v1175, %v1511
        %v2088 = vmul.f32 %v1176, %v1512
        %v2089 = vmul.f32 %v1177, %v1513
        %v2090 = vmul.f32 %v1178, %v1514
        %v2091 = vmul.f32 %v1179, %v1515
        %v2092 = vmul.f32 %v1180, %v1516
        %v2093 = vmul.f32 %v1181, %v1517
        %v2094 = vmul.f32 %v1182, %v1518
        %v2095 = vmul.f32 %v1183, %v1519
        %v2096 = vmul.f32 %v1184, %v1520
        %v2097 = vmul.f32 %v1185, %v1521
        %v2098 = vmul.f32 %v1186, %v1522
        %v2099 = vmul.f32 %v1187, %v1523
        %v2100 = vmul.f32 %v1188, %v1524
        %v2101 = vmul.f32 %v1189, %v1525
        %v2102 = vmul.f32 %v1190, %v1526
        %v2103 = vmul.f32 %v1191, %v1527
        %v2104 = vmul.f32 %v1192, %v1528
        %v2105 = vmul.f32 %v1193, %v1529
        %v2106 = vmul.f32 %v1194, %v1530
        %v2107 = vmul.f32 %v1195, %v1531
        %v2108 = vmul.f32 %v1196, %v1532
        %v2109 = vmul.f32 %v1197, %v1533
        %v2110 = vmul.f32 %v1198, %v1534
        %v2111 = vmul.f32 %v1199, %v1535
        %v2112 = vmul.f32 %v1200, %v1536
        %v2113 = vmul.f32 %v1201, %v1537
        %v2114 = vmul.f32 %v1202, %v1538
        %v2115 = vmul.f32 %v1203, %v1539
        %v2116 = vmul.f32 %v1204, %v1540
        %v2117 = vmul.f32 %v1205, %v1541
        %v2118 = vmul.f32 %v1206, %v1542
        %v2119 = vmul.f32 %v1207, %v1543
        %v2120 = vmul.f32 %v1208, %v1544
        %v2121 = vmul.f32 %v1209, %v1545
        %v2122 = vmul.f32 %v1210, %v1546
        %v2123 = vmul.f32 %v1211, %v1547
        %v2124 = vmul.f32 %v1212, %v1548
        %v2125 = vmul.f32 %v1213, %v1549
        %v2126 = vmul.f32 %v1214, %v1550
        %v2127 = vmul.f32 %v1215, %v1551
        %v2128 = vmul.f32 %v1216, %v1552
        %v2129 = vmul.f32 %v1217, %v1553
        %v2130 = vmul.f32 %v1218, %v1554
        %v2131 = vmul.f32 %v1219, %v1555
        %v2132 = vmul.f32 %v1220, %v1556
        %v2133 = vmul.f32 %v1221, %v1557
        %v2134 = vmul.f32 %v1222, %v1558
        %v2135 = vmul.f32 %v1223, %v1559
        %v2136 = vmul.f32 %v1224, %v1560
        %v2137 = vmul.f32 %v1225, %v1561
        %v2138 = vmul.f32 %v1226, %v1562
        %v2139 = vmul.f32 %v1227, %v1563
        %v2140 = vmul.f32 %v1228, %v1564
        %v2141 = vmul.f32 %v1229, %v1565
        %v2142 = vmul.f32 %v1230, %v1566
        %v2143 = vmul.f32 %v1231, %v1567
        %v2144 = vmul.f32 %v1232, %v1568
        %v2145 = vmul.f32 %v1233, %v1569
        %v2146 = vmul.f32 %v1234, %v1570
        %v2147 = vtanh.pop %v2087
        %v2148 = vtanh.pop %v2088
        %v2149 = vtanh.pop %v2089
        %v2150 = vtanh.pop %v2090
        %v2151 = vtanh.pop %v2091
        %v2152 = vtanh.pop %v2092
        %v2153 = vtanh.pop %v2093
        %v2154 = vtanh.pop %v2094
        %v2155 = vtanh.pop %v2095
        %v2156 = vtanh.pop %v2096
        %v2157 = vtanh.pop %v2097
        %v2158 = vtanh.pop %v2098
        %v2159 = vtanh.pop %v2099
        %v2160 = vtanh.pop %v2100
        %v2161 = vtanh.pop %v2101
        %v2162 = vtanh.pop %v2102
        %v2163 = vtanh.pop %v2103
        %v2164 = vtanh.pop %v2104
        %v2165 = vtanh.pop %v2105
        %v2166 = vtanh.pop %v2106
        %v2167 = vtanh.pop %v2107
        %v2168 = vtanh.pop %v2108
        %v2169 = vtanh.pop %v2109
        %v2170 = vtanh.pop %v2110
        %v2171 = vtanh.pop %v2111
        %v2172 = vtanh.pop %v2112
        %v2173 = vtanh.pop %v2113
        %v2174 = vtanh.pop %v2114
        %v2175 = vtanh.pop %v2115
        %v2176 = vtanh.pop %v2116
        %v2177 = vtanh.pop %v2117
        %v2178 = vtanh.pop %v2118
        %v2179 = vtanh.pop %v2119
        %v2180 = vtanh.pop %v2120
        %v2181 = vtanh.pop %v2121
        %v2182 = vtanh.pop %v2122
        %v2183 = vtanh.pop %v2123
        %v2184 = vtanh.pop %v2124
        %v2185 = vtanh.pop %v2125
        %v2186 = vtanh.pop %v2126
        %v2187 = vtanh.pop %v2127
        %v2188 = vtanh.pop %v2128
        %v2189 = vtanh.pop %v2129
        %v2190 = vtanh.pop %v2130
        %v2191 = vtanh.pop %v2131
        %v2192 = vtanh.pop %v2132
        %v2193 = vtanh.pop %v2133
        %v2194 = vtanh.pop %v2134
        %v2195 = vtanh.pop %v2135
        %v2196 = vtanh.pop %v2136
        %v2197 = vtanh.pop %v2137
        %v2198 = vtanh.pop %v2138
        %v2199 = vtanh.pop %v2139
        %v2200 = vtanh.pop %v2140
        %v2201 = vtanh.pop %v2141
        %v2202 = vtanh.pop %v2142
        %v2203 = vtanh.pop %v2143
        %v2204 = vtanh.pop %v2144
        %v2205 = vtanh.pop %v2145
        %v2206 = vtanh.pop %v2146
        %v2207 = vmul.f32 %v2027, %v2147
        %v2208 = vmul.f32 %v2028, %v2148
        %v2209 = vmul.f32 %v2029, %v2149
        %v2210 = vmul.f32 %v2030, %v2150
        %v2211 = vmul.f32 %v2031, %v2151
        %v2212 = vmul.f32 %v2032, %v2152
        %v2213 = vmul.f32 %v2033, %v2153
        %v2214 = vmul.f32 %v2034, %v2154
        %v2215 = vmul.f32 %v2035, %v2155
        %v2216 = vmul.f32 %v2036, %v2156
        %v2217 = vmul.f32 %v2037, %v2157
        %v2218 = vmul.f32 %v2038, %v2158
        %v2219 = vmul.f32 %v2039, %v2159
        %v2220 = vmul.f32 %v2040, %v2160
        %v2221 = vmul.f32 %v2041, %v2161
        %v2222 = vmul.f32 %v2042, %v2162
        %v2223 = vmul.f32 %v2043, %v2163
        %v2224 = vmul.f32 %v2044, %v2164
        %v2225 = vmul.f32 %v2045, %v2165
        %v2226 = vmul.f32 %v2046, %v2166
        %v2227 = vmul.f32 %v2047, %v2167
        %v2228 = vmul.f32 %v2048, %v2168
        %v2229 = vmul.f32 %v2049, %v2169
        %v2230 = vmul.f32 %v2050, %v2170
        %v2231 = vmul.f32 %v2051, %v2171
        %v2232 = vmul.f32 %v2052, %v2172
        %v2233 = vmul.f32 %v2053, %v2173
        %v2234 = vmul.f32 %v2054, %v2174
        %v2235 = vmul.f32 %v2055, %v2175
        %v2236 = vmul.f32 %v2056, %v2176
        %v2237 = vmul.f32 %v2057, %v2177
        %v2238 = vmul.f32 %v2058, %v2178
        %v2239 = vmul.f32 %v2059, %v2179
        %v2240 = vmul.f32 %v2060, %v2180
        %v2241 = vmul.f32 %v2061, %v2181
        %v2242 = vmul.f32 %v2062, %v2182
        %v2243 = vmul.f32 %v2063, %v2183
        %v2244 = vmul.f32 %v2064, %v2184
        %v2245 = vmul.f32 %v2065, %v2185
        %v2246 = vmul.f32 %v2066, %v2186
        %v2247 = vmul.f32 %v2067, %v2187
        %v2248 = vmul.f32 %v2068, %v2188
        %v2249 = vmul.f32 %v2069, %v2189
        %v2250 = vmul.f32 %v2070, %v2190
        %v2251 = vmul.f32 %v2071, %v2191
        %v2252 = vmul.f32 %v2072, %v2192
        %v2253 = vmul.f32 %v2073, %v2193
        %v2254 = vmul.f32 %v2074, %v2194
        %v2255 = vmul.f32 %v2075, %v2195
        %v2256 = vmul.f32 %v2076, %v2196
        %v2257 = vmul.f32 %v2077, %v2197
        %v2258 = vmul.f32 %v2078, %v2198
        %v2259 = vmul.f32 %v2079, %v2199
        %v2260 = vmul.f32 %v2080, %v2200
        %v2261 = vmul.f32 %v2081, %v2201
        %v2262 = vmul.f32 %v2082, %v2202
        %v2263 = vmul.f32 %v2083, %v2203
        %v2264 = vmul.f32 %v2084, %v2204
        %v2265 = vmul.f32 %v2085, %v2205
        %v2266 = vmul.f32 %v2086, %v2206
        %2267 = vst [vmem:[%s304] sm:$0xff] %v2207
        %2268 = vst [vmem:[%s304 + $0x8] sm:$0xff] %v2208
        %2269 = vst [vmem:[%s304 + $0x10] sm:$0xff] %v2209
        %2270 = vst [vmem:[%s304 + $0x18] sm:$0xff] %v2210
        %2271 = vst [vmem:[%s304 + $0x20] sm:$0xff] %v2211
        %2272 = vst [vmem:[%s304 + $0x28] sm:$0xff] %v2212
        %2273 = vst [vmem:[%s304 + $0x30] sm:$0xff] %v2213
        %2274 = vst [vmem:[%s304 + $0x38] sm:$0xff] %v2214
        %2275 = vst [vmem:[%s304 + $0x40] sm:$0xff] %v2215
        %2276 = vst [vmem:[%s304 + $0x48] sm:$0xff] %v2216
        %2277 = vst [vmem:[%s304 + $0x50] sm:$0xff] %v2217
        %2278 = vst [vmem:[%s304 + $0x58] sm:$0xff] %v2218
        %2279 = vst [vmem:[%s304 + $0x60] sm:$0xff] %v2219
        %2280 = vst [vmem:[%s304 + $0x68] sm:$0xff] %v2220
        %2281 = vst [vmem:[%s304 + $0x70] sm:$0xff] %v2221
        %2282 = vst [vmem:[%s304 + $0x78] sm:$0xff] %v2222
        %2283 = vst [vmem:[%s304 + $0x80] sm:$0xff] %v2223
        %2284 = vst [vmem:[%s304 + $0x88] sm:$0xff] %v2224
        %2285 = vst [vmem:[%s304 + $0x90] sm:$0xff] %v2225
        %2286 = vst [vmem:[%s304 + $0x98] sm:$0xff] %v2226
        %2287 = vst [vmem:[%s304 + $0xa0] sm:$0xff] %v2227
        %2288 = vst [vmem:[%s304 + $0xa8] sm:$0xff] %v2228
        %2289 = vst [vmem:[%s304 + $0xb0] sm:$0xff] %v2229
        %2290 = vst [vmem:[%s304 + $0xb8] sm:$0xff] %v2230
        %2291 = vst [vmem:[%s304 + $0xc0] sm:$0xff] %v2231
        %2292 = vst [vmem:[%s304 + $0xc8] sm:$0xff] %v2232
        %2293 = vst [vmem:[%s304 + $0xd0] sm:$0xff] %v2233
        %2294 = vst [vmem:[%s304 + $0xd8] sm:$0xff] %v2234
        %2295 = vst [vmem:[%s304 + $0xe0] sm:$0xff] %v2235
        %2296 = vst [vmem:[%s304 + $0xe8] sm:$0xff] %v2236
        %2297 = vst [vmem:[%s304 + $0xf0] sm:$0xff] %v2237
        %2298 = vst [vmem:[%s304 + $0xf8] sm:$0xff] %v2238
        %2299 = vst [vmem:[%s304 + $0x100] sm:$0xff] %v2239
        %2300 = vst [vmem:[%s304 + $0x108] sm:$0xff] %v2240
        %2301 = vst [vmem:[%s304 + $0x110] sm:$0xff] %v2241
        %2302 = vst [vmem:[%s304 + $0x118] sm:$0xff] %v2242
        %2303 = vst [vmem:[%s304 + $0x120] sm:$0xff] %v2243
        %2304 = vst [vmem:[%s304 + $0x128] sm:$0xff] %v2244
        %2305 = vst [vmem:[%s304 + $0x130] sm:$0xff] %v2245
        %2306 = vst [vmem:[%s304 + $0x138] sm:$0xff] %v2246
        %2307 = vst [vmem:[%s304 + $0x140] sm:$0xf] %v2247
        %2308 = vst [vmem:[%s304 + $0x148] sm:$0xf] %v2248
        %2309 = vst [vmem:[%s304 + $0x150] sm:$0xf] %v2249
        %2310 = vst [vmem:[%s304 + $0x158] sm:$0xf] %v2250
        %2311 = vst [vmem:[%s304 + $0x160] sm:$0xf] %v2251
        %2312 = vst [vmem:[%s304 + $0x168] sm:$0xf] %v2252
        %2313 = vst [vmem:[%s304 + $0x170] sm:$0xf] %v2253
        %2314 = vst [vmem:[%s304 + $0x178] sm:$0xf] %v2254
        %2315 = vst [vmem:[%s304 + $0x180] sm:$0xf] %v2255
        %2316 = vst [vmem:[%s304 + $0x188] sm:$0xf] %v2256
        %2317 = vst [vmem:[%s304 + $0x190] sm:$0xf] %v2257
        %2318 = vst [vmem:[%s304 + $0x198] sm:$0xf] %v2258
        %2319 = vst [vmem:[%s304 + $0x1a0] sm:$0xf] %v2259
        %2320 = vst [vmem:[%s304 + $0x1a8] sm:$0xf] %v2260
        %2321 = vst [vmem:[%s304 + $0x1b0] sm:$0xf] %v2261
        %2322 = vst [vmem:[%s304 + $0x1b8] sm:$0xf] %v2262
        %2323 = vst [vmem:[%s304 + $0x1c0] sm:$0xf] %v2263
        %2324 = vst [vmem:[%s304 + $0x1c8] sm:$0xf] %v2264
        %2325 = vst [vmem:[%s304 + $0x1d0] sm:$0xf] %v2265
        %2326 = vst [vmem:[%s304 + $0x1d8] sm:$0xf] %v2266
        %2327 = vst [vmem:[%s311] sm:$0xff] %v2087
        %2328 = vst [vmem:[%s311 + $0x8] sm:$0xff] %v2088
        %2329 = vst [vmem:[%s311 + $0x10] sm:$0xff] %v2089
        %2330 = vst [vmem:[%s311 + $0x18] sm:$0xff] %v2090
        %2331 = vst [vmem:[%s311 + $0x20] sm:$0xff] %v2091
        %2332 = vst [vmem:[%s311 + $0x28] sm:$0xff] %v2092
        %2333 = vst [vmem:[%s311 + $0x30] sm:$0xff] %v2093
        %2334 = vst [vmem:[%s311 + $0x38] sm:$0xff] %v2094
        %2335 = vst [vmem:[%s311 + $0x40] sm:$0xff] %v2095
        %2336 = vst [vmem:[%s311 + $0x48] sm:$0xff] %v2096
        %2337 = vst [vmem:[%s311 + $0x50] sm:$0xff] %v2097
        %2338 = vst [vmem:[%s311 + $0x58] sm:$0xff] %v2098
        %2339 = vst [vmem:[%s311 + $0x60] sm:$0xff] %v2099
        %2340 = vst [vmem:[%s311 + $0x68] sm:$0xff] %v2100
        %2341 = vst [vmem:[%s311 + $0x70] sm:$0xff] %v2101
        %2342 = vst [vmem:[%s311 + $0x78] sm:$0xff] %v2102
        %2343 = vst [vmem:[%s311 + $0x80] sm:$0xff] %v2103
        %2344 = vst [vmem:[%s311 + $0x88] sm:$0xff] %v2104
        %2345 = vst [vmem:[%s311 + $0x90] sm:$0xff] %v2105
        %2346 = vst [vmem:[%s311 + $0x98] sm:$0xff] %v2106
        %2347 = vst [vmem:[%s311 + $0xa0] sm:$0xff] %v2107
        %2348 = vst [vmem:[%s311 + $0xa8] sm:$0xff] %v2108
        %2349 = vst [vmem:[%s311 + $0xb0] sm:$0xff] %v2109
        %2350 = vst [vmem:[%s311 + $0xb8] sm:$0xff] %v2110
        %2351 = vst [vmem:[%s311 + $0xc0] sm:$0xff] %v2111
        %2352 = vst [vmem:[%s311 + $0xc8] sm:$0xff] %v2112
        %2353 = vst [vmem:[%s311 + $0xd0] sm:$0xff] %v2113
        %2354 = vst [vmem:[%s311 + $0xd8] sm:$0xff] %v2114
        %2355 = vst [vmem:[%s311 + $0xe0] sm:$0xff] %v2115
        %2356 = vst [vmem:[%s311 + $0xe8] sm:$0xff] %v2116
        %2357 = vst [vmem:[%s311 + $0xf0] sm:$0xff] %v2117
        %2358 = vst [vmem:[%s311 + $0xf8] sm:$0xff] %v2118
        %2359 = vst [vmem:[%s311 + $0x100] sm:$0xff] %v2119
        %2360 = vst [vmem:[%s311 + $0x108] sm:$0xff] %v2120
        %2361 = vst [vmem:[%s311 + $0x110] sm:$0xff] %v2121
        %2362 = vst [vmem:[%s311 + $0x118] sm:$0xff] %v2122
        %2363 = vst [vmem:[%s311 + $0x120] sm:$0xff] %v2123
        %2364 = vst [vmem:[%s311 + $0x128] sm:$0xff] %v2124
        %2365 = vst [vmem:[%s311 + $0x130] sm:$0xff] %v2125
        %2366 = vst [vmem:[%s311 + $0x138] sm:$0xff] %v2126
        %2367 = vst [vmem:[%s311 + $0x140] sm:$0xf] %v2127
        %2368 = vst [vmem:[%s311 + $0x148] sm:$0xf] %v2128
        %2369 = vst [vmem:[%s311 + $0x150] sm:$0xf] %v2129
        %2370 = vst [vmem:[%s311 + $0x158] sm:$0xf] %v2130
        %2371 = vst [vmem:[%s311 + $0x160] sm:$0xf] %v2131
        %2372 = vst [vmem:[%s311 + $0x168] sm:$0xf] %v2132
        %2373 = vst [vmem:[%s311 + $0x170] sm:$0xf] %v2133
        %2374 = vst [vmem:[%s311 + $0x178] sm:$0xf] %v2134
        %2375 = vst [vmem:[%s311 + $0x180] sm:$0xf] %v2135
        %2376 = vst [vmem:[%s311 + $0x188] sm:$0xf] %v2136
        %2377 = vst [vmem:[%s311 + $0x190] sm:$0xf] %v2137
        %2378 = vst [vmem:[%s311 + $0x198] sm:$0xf] %v2138
        %2379 = vst [vmem:[%s311 + $0x1a0] sm:$0xf] %v2139
        %2380 = vst [vmem:[%s311 + $0x1a8] sm:$0xf] %v2140
        %2381 = vst [vmem:[%s311 + $0x1b0] sm:$0xf] %v2141
        %2382 = vst [vmem:[%s311 + $0x1b8] sm:$0xf] %v2142
        %2383 = vst [vmem:[%s311 + $0x1c0] sm:$0xf] %v2143
        %2384 = vst [vmem:[%s311 + $0x1c8] sm:$0xf] %v2144
        %2385 = vst [vmem:[%s311 + $0x1d0] sm:$0xf] %v2145
        %2386 = vst [vmem:[%s311 + $0x1d8] sm:$0xf] %v2146
        %v2387 = vld [vmem:[%s4] sm:$0x3]
        %v2388 = vld [vmem:[%s333] sm:$0xff]
        %v2389 = vld [vmem:[%s333 + $0x8] sm:$0xff]
        %v2390 = vld [vmem:[%s333 + $0x10] sm:$0xf]
        %v2391 = vld [vmem:[%s328] sm:$0xff]
        %v2392 = vld [vmem:[%s328 + $0x8] sm:$0xff]
        %v2393 = vld [vmem:[%s328 + $0x10] sm:$0xf]
        %2395 = vset.pattern.permute.xlu0 20
        %2396 = vperm.xlu0 %2395, %v2387
        %v2397 = vpop.permute.xlu0 %2396
        %v2402 = vlaneseq
        %v2403 = vshrl.u32 %v2402, 7
        %v2404 = vsub.s32 0, %v2403
        %v2405 = vrot.slane %v2388, %v2404
        %v2406 = vlaneseq
        %v2407 = vshrl.u32 %v2406, 7
        %v2408 = vsub.s32 1, %v2407
        %v2409 = vrot.slane %v2388, %v2408
        %v2410 = vlaneseq
        %v2411 = vshrl.u32 %v2410, 7
        %v2412 = vsub.s32 2, %v2411
        %v2413 = vrot.slane %v2388, %v2412
        %v2414 = vlaneseq
        %v2415 = vshrl.u32 %v2414, 7
        %v2416 = vsub.s32 3, %v2415
        %v2417 = vrot.slane %v2388, %v2416
        %v2418 = vlaneseq
        %v2419 = vshrl.u32 %v2418, 7
        %v2420 = vsub.s32 4, %v2419
        %v2421 = vrot.slane %v2388, %v2420
        %v2422 = vlaneseq
        %v2423 = vshrl.u32 %v2422, 7
        %v2424 = vsub.s32 5, %v2423
        %v2425 = vrot.slane %v2388, %v2424
        %v2426 = vlaneseq
        %v2427 = vshrl.u32 %v2426, 7
        %v2428 = vsub.s32 6, %v2427
        %v2429 = vrot.slane %v2388, %v2428
        %v2430 = vlaneseq
        %v2431 = vshrl.u32 %v2430, 7
        %v2432 = vsub.s32 7, %v2431
        %v2433 = vrot.slane %v2388, %v2432
        %v2434 = vlaneseq
        %v2435 = vshrl.u32 %v2434, 7
        %v2436 = vsub.s32 0, %v2435
        %v2437 = vrot.slane %v2389, %v2436
        %v2438 = vlaneseq
        %v2439 = vshrl.u32 %v2438, 7
        %v2440 = vsub.s32 1, %v2439
        %v2441 = vrot.slane %v2389, %v2440
        %v2442 = vlaneseq
        %v2443 = vshrl.u32 %v2442, 7
        %v2444 = vsub.s32 2, %v2443
        %v2445 = vrot.slane %v2389, %v2444
        %v2446 = vlaneseq
        %v2447 = vshrl.u32 %v2446, 7
        %v2448 = vsub.s32 3, %v2447
        %v2449 = vrot.slane %v2389, %v2448
        %v2450 = vlaneseq
        %v2451 = vshrl.u32 %v2450, 7
        %v2452 = vsub.s32 4, %v2451
        %v2453 = vrot.slane %v2389, %v2452
        %v2454 = vlaneseq
        %v2455 = vshrl.u32 %v2454, 7
        %v2456 = vsub.s32 5, %v2455
        %v2457 = vrot.slane %v2389, %v2456
        %v2458 = vlaneseq
        %v2459 = vshrl.u32 %v2458, 7
        %v2460 = vsub.s32 6, %v2459
        %v2461 = vrot.slane %v2389, %v2460
        %v2462 = vlaneseq
        %v2463 = vshrl.u32 %v2462, 7
        %v2464 = vsub.s32 7, %v2463
        %v2465 = vrot.slane %v2389, %v2464
        %v2466 = vlaneseq
        %v2467 = vshrl.u32 %v2466, 7
        %v2468 = vsub.s32 0, %v2467
        %v2469 = vrot.slane %v2390, %v2468
        %v2470 = vlaneseq
        %v2471 = vshrl.u32 %v2470, 7
        %v2472 = vsub.s32 1, %v2471
        %v2473 = vrot.slane %v2390, %v2472
        %v2474 = vlaneseq
        %v2475 = vshrl.u32 %v2474, 7
        %v2476 = vsub.s32 2, %v2475
        %v2477 = vrot.slane %v2390, %v2476
        %v2478 = vlaneseq
        %v2479 = vshrl.u32 %v2478, 7
        %v2480 = vsub.s32 3, %v2479
        %v2481 = vrot.slane %v2390, %v2480
        %v2502 = vmul.f32 %v2397, %v2405
        %v2503 = vmul.f32 %v2397, %v2409
        %v2504 = vmul.f32 %v2397, %v2413
        %v2505 = vmul.f32 %v2397, %v2417
        %v2506 = vmul.f32 %v2397, %v2421
        %v2507 = vmul.f32 %v2397, %v2425
        %v2508 = vmul.f32 %v2397, %v2429
        %v2509 = vmul.f32 %v2397, %v2433
        %v2510 = vmul.f32 %v2397, %v2437
        %v2511 = vmul.f32 %v2397, %v2441
        %v2512 = vmul.f32 %v2397, %v2445
        %v2513 = vmul.f32 %v2397, %v2449
        %v2514 = vmul.f32 %v2397, %v2453
        %v2515 = vmul.f32 %v2397, %v2457
        %v2516 = vmul.f32 %v2397, %v2461
        %v2517 = vmul.f32 %v2397, %v2465
        %v2518 = vmul.f32 %v2397, %v2469
        %v2519 = vmul.f32 %v2397, %v2473
        %v2520 = vmul.f32 %v2397, %v2477
        %v2521 = vmul.f32 %v2397, %v2481
        %2522 = vset.pattern.permute.xlu0 21
        %2523 = vperm.xlu0 %2522, %v2387
        %v2524 = vpop.permute.xlu0 %2523
        %v2526 = vadd.f32 %v2502, %v2524
        %v2527 = vadd.f32 %v2503, %v2524
        %v2528 = vadd.f32 %v2504, %v2524
        %v2529 = vadd.f32 %v2505, %v2524
        %v2530 = vadd.f32 %v2506, %v2524
        %v2531 = vadd.f32 %v2507, %v2524
        %v2532 = vadd.f32 %v2508, %v2524
        %v2533 = vadd.f32 %v2509, %v2524
        %v2534 = vadd.f32 %v2510, %v2524
        %v2535 = vadd.f32 %v2511, %v2524
        %v2536 = vadd.f32 %v2512, %v2524
        %v2537 = vadd.f32 %v2513, %v2524
        %v2538 = vadd.f32 %v2514, %v2524
        %v2539 = vadd.f32 %v2515, %v2524
        %v2540 = vadd.f32 %v2516, %v2524
        %v2541 = vadd.f32 %v2517, %v2524
        %v2542 = vadd.f32 %v2518, %v2524
        %v2543 = vadd.f32 %v2519, %v2524
        %v2544 = vadd.f32 %v2520, %v2524
        %v2545 = vadd.f32 %v2521, %v2524
        %2546 = vset.pattern.permute.xlu0 0
        %2547 = vperm.xlu0 %2546, %v2387
        %v2548 = vpop.permute.xlu0 %2547
        %v2550 = vmul.f32 %v2548, %v2207
        %v2551 = vmul.f32 %v2548, %v2208
        %v2552 = vmul.f32 %v2548, %v2209
        %v2553 = vmul.f32 %v2548, %v2210
        %v2554 = vmul.f32 %v2548, %v2211
        %v2555 = vmul.f32 %v2548, %v2212
        %v2556 = vmul.f32 %v2548, %v2213
        %v2557 = vmul.f32 %v2548, %v2214
        %v2558 = vmul.f32 %v2548, %v2215
        %v2559 = vmul.f32 %v2548, %v2216
        %v2560 = vmul.f32 %v2548, %v2217
        %v2561 = vmul.f32 %v2548, %v2218
        %v2562 = vmul.f32 %v2548, %v2219
        %v2563 = vmul.f32 %v2548, %v2220
        %v2564 = vmul.f32 %v2548, %v2221
        %v2565 = vmul.f32 %v2548, %v2222
        %v2566 = vmul.f32 %v2548, %v2223
        %v2567 = vmul.f32 %v2548, %v2224
        %v2568 = vmul.f32 %v2548, %v2225
        %v2569 = vmul.f32 %v2548, %v2226
        %v2570 = vadd.f32 %v2526, %v2550
        %v2571 = vadd.f32 %v2527, %v2551
        %v2572 = vadd.f32 %v2528, %v2552
        %v2573 = vadd.f32 %v2529, %v2553
        %v2574 = vadd.f32 %v2530, %v2554
        %v2575 = vadd.f32 %v2531, %v2555
        %v2576 = vadd.f32 %v2532, %v2556
        %v2577 = vadd.f32 %v2533, %v2557
        %v2578 = vadd.f32 %v2534, %v2558
        %v2579 = vadd.f32 %v2535, %v2559
        %v2580 = vadd.f32 %v2536, %v2560
        %v2581 = vadd.f32 %v2537, %v2561
        %v2582 = vadd.f32 %v2538, %v2562
        %v2583 = vadd.f32 %v2539, %v2563
        %v2584 = vadd.f32 %v2540, %v2564
        %v2585 = vadd.f32 %v2541, %v2565
        %v2586 = vadd.f32 %v2542, %v2566
        %v2587 = vadd.f32 %v2543, %v2567
        %v2588 = vadd.f32 %v2544, %v2568
        %v2589 = vadd.f32 %v2545, %v2569
        %v2610 = vrot.slane %v2207, 7
        %v2611 = vrot.slane %v2208, 7
        %v2612 = vrot.slane %v2209, 7
        %v2613 = vrot.slane %v2210, 7
        %v2614 = vrot.slane %v2211, 7
        %v2615 = vrot.slane %v2212, 7
        %v2616 = vrot.slane %v2213, 7
        %v2617 = vrot.slane %v2214, 7
        %v2618 = vrot.slane %v2215, 7
        %v2619 = vrot.slane %v2216, 7
        %v2620 = vrot.slane %v2217, 7
        %v2621 = vrot.slane %v2218, 7
        %v2622 = vrot.slane %v2219, 7
        %v2623 = vrot.slane %v2220, 7
        %v2624 = vrot.slane %v2221, 7
        %v2625 = vrot.slane %v2222, 7
        %v2626 = vrot.slane %v2223, 7
        %v2627 = vrot.slane %v2224, 7
        %v2628 = vrot.slane %v2225, 7
        %v2629 = vrot.slane %v2226, 7
        %v2650 = vmul.f32 %v2548, %v2610
        %v2651 = vmul.f32 %v2548, %v2611
        %v2652 = vmul.f32 %v2548, %v2612
        %v2653 = vmul.f32 %v2548, %v2613
        %v2654 = vmul.f32 %v2548, %v2614
        %v2655 = vmul.f32 %v2548, %v2615
        %v2656 = vmul.f32 %v2548, %v2616
        %v2657 = vmul.f32 %v2548, %v2617
        %v2658 = vmul.f32 %v2548, %v2618
        %v2659 = vmul.f32 %v2548, %v2619
        %v2660 = vmul.f32 %v2548, %v2620
        %v2661 = vmul.f32 %v2548, %v2621
        %v2662 = vmul.f32 %v2548, %v2622
        %v2663 = vmul.f32 %v2548, %v2623
        %v2664 = vmul.f32 %v2548, %v2624
        %v2665 = vmul.f32 %v2548, %v2625
        %v2666 = vmul.f32 %v2548, %v2626
        %v2667 = vmul.f32 %v2548, %v2627
        %v2668 = vmul.f32 %v2548, %v2628
        %v2669 = vmul.f32 %v2548, %v2629
        %v2670 = vadd.f32 %v2526, %v2650
        %v2671 = vadd.f32 %v2527, %v2651
        %v2672 = vadd.f32 %v2528, %v2652
        %v2673 = vadd.f32 %v2529, %v2653
        %v2674 = vadd.f32 %v2530, %v2654
        %v2675 = vadd.f32 %v2531, %v2655
        %v2676 = vadd.f32 %v2532, %v2656
        %v2677 = vadd.f32 %v2533, %v2657
        %v2678 = vadd.f32 %v2534, %v2658
        %v2679 = vadd.f32 %v2535, %v2659
        %v2680 = vadd.f32 %v2536, %v2660
        %v2681 = vadd.f32 %v2537, %v2661
        %v2682 = vadd.f32 %v2538, %v2662
        %v2683 = vadd.f32 %v2539, %v2663
        %v2684 = vadd.f32 %v2540, %v2664
        %v2685 = vadd.f32 %v2541, %v2665
        %v2686 = vadd.f32 %v2542, %v2666
        %v2687 = vadd.f32 %v2543, %v2667
        %v2688 = vadd.f32 %v2544, %v2668
        %v2689 = vadd.f32 %v2545, %v2669
        %2690 = vset.pattern.permute.xlu0 1
        %2691 = vperm.xlu0 %2690, %v2387
        %v2692 = vpop.permute.xlu0 %2691
        %v2694 = vrot.slane %v2207, 1
        %v2695 = vrot.slane %v2208, 1
        %v2696 = vrot.slane %v2209, 1
        %v2697 = vrot.slane %v2210, 1
        %v2698 = vrot.slane %v2211, 1
        %v2699 = vrot.slane %v2212, 1
        %v2700 = vrot.slane %v2213, 1
        %v2701 = vrot.slane %v2214, 1
        %v2702 = vrot.slane %v2215, 1
        %v2703 = vrot.slane %v2216, 1
        %v2704 = vrot.slane %v2217, 1
        %v2705 = vrot.slane %v2218, 1
        %v2706 = vrot.slane %v2219, 1
        %v2707 = vrot.slane %v2220, 1
        %v2708 = vrot.slane %v2221, 1
        %v2709 = vrot.slane %v2222, 1
        %v2710 = vrot.slane %v2223, 1
        %v2711 = vrot.slane %v2224, 1
        %v2712 = vrot.slane %v2225, 1
        %v2713 = vrot.slane %v2226, 1
        %v2734 = vmul.f32 %v2692, %v2694
        %v2735 = vmul.f32 %v2692, %v2695
        %v2736 = vmul.f32 %v2692, %v2696
        %v2737 = vmul.f32 %v2692, %v2697
        %v2738 = vmul.f32 %v2692, %v2698
        %v2739 = vmul.f32 %v2692, %v2699
        %v2740 = vmul.f32 %v2692, %v2700
        %v2741 = vmul.f32 %v2692, %v2701
        %v2742 = vmul.f32 %v2692, %v2702
        %v2743 = vmul.f32 %v2692, %v2703
        %v2744 = vmul.f32 %v2692, %v2704
        %v2745 = vmul.f32 %v2692, %v2705
        %v2746 = vmul.f32 %v2692, %v2706
        %v2747 = vmul.f32 %v2692, %v2707
        %v2748 = vmul.f32 %v2692, %v2708
        %v2749 = vmul.f32 %v2692, %v2709
        %v2750 = vmul.f32 %v2692, %v2710
        %v2751 = vmul.f32 %v2692, %v2711
        %v2752 = vmul.f32 %v2692, %v2712
        %v2753 = vmul.f32 %v2692, %v2713
        %v2754 = vadd.f32 %v2570, %v2734
        %v2755 = vadd.f32 %v2571, %v2735
        %v2756 = vadd.f32 %v2572, %v2736
        %v2757 = vadd.f32 %v2573, %v2737
        %v2758 = vadd.f32 %v2574, %v2738
        %v2759 = vadd.f32 %v2575, %v2739
        %v2760 = vadd.f32 %v2576, %v2740
        %v2761 = vadd.f32 %v2577, %v2741
        %v2762 = vadd.f32 %v2578, %v2742
        %v2763 = vadd.f32 %v2579, %v2743
        %v2764 = vadd.f32 %v2580, %v2744
        %v2765 = vadd.f32 %v2581, %v2745
        %v2766 = vadd.f32 %v2582, %v2746
        %v2767 = vadd.f32 %v2583, %v2747
        %v2768 = vadd.f32 %v2584, %v2748
        %v2769 = vadd.f32 %v2585, %v2749
        %v2770 = vadd.f32 %v2586, %v2750
        %v2771 = vadd.f32 %v2587, %v2751
        %v2772 = vadd.f32 %v2588, %v2752
        %v2773 = vadd.f32 %v2589, %v2753
        %v2774 = vmul.f32 %v2692, %v2207
        %v2775 = vmul.f32 %v2692, %v2208
        %v2776 = vmul.f32 %v2692, %v2209
        %v2777 = vmul.f32 %v2692, %v2210
        %v2778 = vmul.f32 %v2692, %v2211
        %v2779 = vmul.f32 %v2692, %v2212
        %v2780 = vmul.f32 %v2692, %v2213
        %v2781 = vmul.f32 %v2692, %v2214
        %v2782 = vmul.f32 %v2692, %v2215
        %v2783 = vmul.f32 %v2692, %v2216
        %v2784 = vmul.f32 %v2692, %v2217
        %v2785 = vmul.f32 %v2692, %v2218
        %v2786 = vmul.f32 %v2692, %v2219
        %v2787 = vmul.f32 %v2692, %v2220
        %v2788 = vmul.f32 %v2692, %v2221
        %v2789 = vmul.f32 %v2692, %v2222
        %v2790 = vmul.f32 %v2692, %v2223
        %v2791 = vmul.f32 %v2692, %v2224
        %v2792 = vmul.f32 %v2692, %v2225
        %v2793 = vmul.f32 %v2692, %v2226
        %v2794 = vadd.f32 %v2670, %v2774
        %v2795 = vadd.f32 %v2671, %v2775
        %v2796 = vadd.f32 %v2672, %v2776
        %v2797 = vadd.f32 %v2673, %v2777
        %v2798 = vadd.f32 %v2674, %v2778
        %v2799 = vadd.f32 %v2675, %v2779
        %v2800 = vadd.f32 %v2676, %v2780
        %v2801 = vadd.f32 %v2677, %v2781
        %v2802 = vadd.f32 %v2678, %v2782
        %v2803 = vadd.f32 %v2679, %v2783
        %v2804 = vadd.f32 %v2680, %v2784
        %v2805 = vadd.f32 %v2681, %v2785
        %v2806 = vadd.f32 %v2682, %v2786
        %v2807 = vadd.f32 %v2683, %v2787
        %v2808 = vadd.f32 %v2684, %v2788
        %v2809 = vadd.f32 %v2685, %v2789
        %v2810 = vadd.f32 %v2686, %v2790
        %v2811 = vadd.f32 %v2687, %v2791
        %v2812 = vadd.f32 %v2688, %v2792
        %v2813 = vadd.f32 %v2689, %v2793
        %2814 = vset.pattern.permute.xlu0 2
        %2815 = vperm.xlu0 %2814, %v2387
        %v2816 = vpop.permute.xlu0 %2815
        %v2818 = vrot.slane %v2207, 2
        %v2819 = vrot.slane %v2208, 2
        %v2820 = vrot.slane %v2209, 2
        %v2821 = vrot.slane %v2210, 2
        %v2822 = vrot.slane %v2211, 2
        %v2823 = vrot.slane %v2212, 2
        %v2824 = vrot.slane %v2213, 2
        %v2825 = vrot.slane %v2214, 2
        %v2826 = vrot.slane %v2215, 2
        %v2827 = vrot.slane %v2216, 2
        %v2828 = vrot.slane %v2217, 2
        %v2829 = vrot.slane %v2218, 2
        %v2830 = vrot.slane %v2219, 2
        %v2831 = vrot.slane %v2220, 2
        %v2832 = vrot.slane %v2221, 2
        %v2833 = vrot.slane %v2222, 2
        %v2834 = vrot.slane %v2223, 2
        %v2835 = vrot.slane %v2224, 2
        %v2836 = vrot.slane %v2225, 2
        %v2837 = vrot.slane %v2226, 2
        %v2858 = vmul.f32 %v2816, %v2818
        %v2859 = vmul.f32 %v2816, %v2819
        %v2860 = vmul.f32 %v2816, %v2820
        %v2861 = vmul.f32 %v2816, %v2821
        %v2862 = vmul.f32 %v2816, %v2822
        %v2863 = vmul.f32 %v2816, %v2823
        %v2864 = vmul.f32 %v2816, %v2824
        %v2865 = vmul.f32 %v2816, %v2825
        %v2866 = vmul.f32 %v2816, %v2826
        %v2867 = vmul.f32 %v2816, %v2827
        %v2868 = vmul.f32 %v2816, %v2828
        %v2869 = vmul.f32 %v2816, %v2829
        %v2870 = vmul.f32 %v2816, %v2830
        %v2871 = vmul.f32 %v2816, %v2831
        %v2872 = vmul.f32 %v2816, %v2832
        %v2873 = vmul.f32 %v2816, %v2833
        %v2874 = vmul.f32 %v2816, %v2834
        %v2875 = vmul.f32 %v2816, %v2835
        %v2876 = vmul.f32 %v2816, %v2836
        %v2877 = vmul.f32 %v2816, %v2837
        %v2878 = vadd.f32 %v2754, %v2858
        %v2879 = vadd.f32 %v2755, %v2859
        %v2880 = vadd.f32 %v2756, %v2860
        %v2881 = vadd.f32 %v2757, %v2861
        %v2882 = vadd.f32 %v2758, %v2862
        %v2883 = vadd.f32 %v2759, %v2863
        %v2884 = vadd.f32 %v2760, %v2864
        %v2885 = vadd.f32 %v2761, %v2865
        %v2886 = vadd.f32 %v2762, %v2866
        %v2887 = vadd.f32 %v2763, %v2867
        %v2888 = vadd.f32 %v2764, %v2868
        %v2889 = vadd.f32 %v2765, %v2869
        %v2890 = vadd.f32 %v2766, %v2870
        %v2891 = vadd.f32 %v2767, %v2871
        %v2892 = vadd.f32 %v2768, %v2872
        %v2893 = vadd.f32 %v2769, %v2873
        %v2894 = vadd.f32 %v2770, %v2874
        %v2895 = vadd.f32 %v2771, %v2875
        %v2896 = vadd.f32 %v2772, %v2876
        %v2897 = vadd.f32 %v2773, %v2877
        %v2898 = vmul.f32 %v2816, %v2694
        %v2899 = vmul.f32 %v2816, %v2695
        %v2900 = vmul.f32 %v2816, %v2696
        %v2901 = vmul.f32 %v2816, %v2697
        %v2902 = vmul.f32 %v2816, %v2698
        %v2903 = vmul.f32 %v2816, %v2699
        %v2904 = vmul.f32 %v2816, %v2700
        %v2905 = vmul.f32 %v2816, %v2701
        %v2906 = vmul.f32 %v2816, %v2702
        %v2907 = vmul.f32 %v2816, %v2703
        %v2908 = vmul.f32 %v2816, %v2704
        %v2909 = vmul.f32 %v2816, %v2705
        %v2910 = vmul.f32 %v2816, %v2706
        %v2911 = vmul.f32 %v2816, %v2707
        %v2912 = vmul.f32 %v2816, %v2708
        %v2913 = vmul.f32 %v2816, %v2709
        %v2914 = vmul.f32 %v2816, %v2710
        %v2915 = vmul.f32 %v2816, %v2711
        %v2916 = vmul.f32 %v2816, %v2712
        %v2917 = vmul.f32 %v2816, %v2713
        %v2918 = vadd.f32 %v2794, %v2898
        %v2919 = vadd.f32 %v2795, %v2899
        %v2920 = vadd.f32 %v2796, %v2900
        %v2921 = vadd.f32 %v2797, %v2901
        %v2922 = vadd.f32 %v2798, %v2902
        %v2923 = vadd.f32 %v2799, %v2903
        %v2924 = vadd.f32 %v2800, %v2904
        %v2925 = vadd.f32 %v2801, %v2905
        %v2926 = vadd.f32 %v2802, %v2906
        %v2927 = vadd.f32 %v2803, %v2907
        %v2928 = vadd.f32 %v2804, %v2908
        %v2929 = vadd.f32 %v2805, %v2909
        %v2930 = vadd.f32 %v2806, %v2910
        %v2931 = vadd.f32 %v2807, %v2911
        %v2932 = vadd.f32 %v2808, %v2912
        %v2933 = vadd.f32 %v2809, %v2913
        %v2934 = vadd.f32 %v2810, %v2914
        %v2935 = vadd.f32 %v2811, %v2915
        %v2936 = vadd.f32 %v2812, %v2916
        %v2937 = vadd.f32 %v2813, %v2917
        %2938 = vset.pattern.permute.xlu0 3
        %2939 = vperm.xlu0 %2938, %v2387
        %v2940 = vpop.permute.xlu0 %2939
        %v2942 = vrot.slane %v2207, 3
        %v2943 = vrot.slane %v2208, 3
        %v2944 = vrot.slane %v2209, 3
        %v2945 = vrot.slane %v2210, 3
        %v2946 = vrot.slane %v2211, 3
        %v2947 = vrot.slane %v2212, 3
        %v2948 = vrot.slane %v2213, 3
        %v2949 = vrot.slane %v2214, 3
        %v2950 = vrot.slane %v2215, 3
        %v2951 = vrot.slane %v2216, 3
        %v2952 = vrot.slane %v2217, 3
        %v2953 = vrot.slane %v2218, 3
        %v2954 = vrot.slane %v2219, 3
        %v2955 = vrot.slane %v2220, 3
        %v2956 = vrot.slane %v2221, 3
        %v2957 = vrot.slane %v2222, 3
        %v2958 = vrot.slane %v2223, 3
        %v2959 = vrot.slane %v2224, 3
        %v2960 = vrot.slane %v2225, 3
        %v2961 = vrot.slane %v2226, 3
        %v2982 = vmul.f32 %v2940, %v2942
        %v2983 = vmul.f32 %v2940, %v2943
        %v2984 = vmul.f32 %v2940, %v2944
        %v2985 = vmul.f32 %v2940, %v2945
        %v2986 = vmul.f32 %v2940, %v2946
        %v2987 = vmul.f32 %v2940, %v2947
        %v2988 = vmul.f32 %v2940, %v2948
        %v2989 = vmul.f32 %v2940, %v2949
        %v2990 = vmul.f32 %v2940, %v2950
        %v2991 = vmul.f32 %v2940, %v2951
        %v2992 = vmul.f32 %v2940, %v2952
        %v2993 = vmul.f32 %v2940, %v2953
        %v2994 = vmul.f32 %v2940, %v2954
        %v2995 = vmul.f32 %v2940, %v2955
        %v2996 = vmul.f32 %v2940, %v2956
        %v2997 = vmul.f32 %v2940, %v2957
        %v2998 = vmul.f32 %v2940, %v2958
        %v2999 = vmul.f32 %v2940, %v2959
        %v3000 = vmul.f32 %v2940, %v2960
        %v3001 = vmul.f32 %v2940, %v2961
        %v3002 = vadd.f32 %v2878, %v2982
        %v3003 = vadd.f32 %v2879, %v2983
        %v3004 = vadd.f32 %v2880, %v2984
        %v3005 = vadd.f32 %v2881, %v2985
        %v3006 = vadd.f32 %v2882, %v2986
        %v3007 = vadd.f32 %v2883, %v2987
        %v3008 = vadd.f32 %v2884, %v2988
        %v3009 = vadd.f32 %v2885, %v2989
        %v3010 = vadd.f32 %v2886, %v2990
        %v3011 = vadd.f32 %v2887, %v2991
        %v3012 = vadd.f32 %v2888, %v2992
        %v3013 = vadd.f32 %v2889, %v2993
        %v3014 = vadd.f32 %v2890, %v2994
        %v3015 = vadd.f32 %v2891, %v2995
        %v3016 = vadd.f32 %v2892, %v2996
        %v3017 = vadd.f32 %v2893, %v2997
        %v3018 = vadd.f32 %v2894, %v2998
        %v3019 = vadd.f32 %v2895, %v2999
        %v3020 = vadd.f32 %v2896, %v3000
        %v3021 = vadd.f32 %v2897, %v3001
        %v3022 = vmul.f32 %v2940, %v2818
        %v3023 = vmul.f32 %v2940, %v2819
        %v3024 = vmul.f32 %v2940, %v2820
        %v3025 = vmul.f32 %v2940, %v2821
        %v3026 = vmul.f32 %v2940, %v2822
        %v3027 = vmul.f32 %v2940, %v2823
        %v3028 = vmul.f32 %v2940, %v2824
        %v3029 = vmul.f32 %v2940, %v2825
        %v3030 = vmul.f32 %v2940, %v2826
        %v3031 = vmul.f32 %v2940, %v2827
        %v3032 = vmul.f32 %v2940, %v2828
        %v3033 = vmul.f32 %v2940, %v2829
        %v3034 = vmul.f32 %v2940, %v2830
        %v3035 = vmul.f32 %v2940, %v2831
        %v3036 = vmul.f32 %v2940, %v2832
        %v3037 = vmul.f32 %v2940, %v2833
        %v3038 = vmul.f32 %v2940, %v2834
        %v3039 = vmul.f32 %v2940, %v2835
        %v3040 = vmul.f32 %v2940, %v2836
        %v3041 = vmul.f32 %v2940, %v2837
        %v3042 = vadd.f32 %v2918, %v3022
        %v3043 = vadd.f32 %v2919, %v3023
        %v3044 = vadd.f32 %v2920, %v3024
        %v3045 = vadd.f32 %v2921, %v3025
        %v3046 = vadd.f32 %v2922, %v3026
        %v3047 = vadd.f32 %v2923, %v3027
        %v3048 = vadd.f32 %v2924, %v3028
        %v3049 = vadd.f32 %v2925, %v3029
        %v3050 = vadd.f32 %v2926, %v3030
        %v3051 = vadd.f32 %v2927, %v3031
        %v3052 = vadd.f32 %v2928, %v3032
        %v3053 = vadd.f32 %v2929, %v3033
        %v3054 = vadd.f32 %v2930, %v3034
        %v3055 = vadd.f32 %v2931, %v3035
        %v3056 = vadd.f32 %v2932, %v3036
        %v3057 = vadd.f32 %v2933, %v3037
        %v3058 = vadd.f32 %v2934, %v3038
        %v3059 = vadd.f32 %v2935, %v3039
        %v3060 = vadd.f32 %v2936, %v3040
        %v3061 = vadd.f32 %v2937, %v3041
        %3062 = vset.pattern.permute.xlu0 4
        %3063 = vperm.xlu0 %3062, %v2387
        %v3064 = vpop.permute.xlu0 %3063
        %v3066 = vrot.slane %v2207, 4
        %v3067 = vrot.slane %v2208, 4
        %v3068 = vrot.slane %v2209, 4
        %v3069 = vrot.slane %v2210, 4
        %v3070 = vrot.slane %v2211, 4
        %v3071 = vrot.slane %v2212, 4
        %v3072 = vrot.slane %v2213, 4
        %v3073 = vrot.slane %v2214, 4
        %v3074 = vrot.slane %v2215, 4
        %v3075 = vrot.slane %v2216, 4
        %v3076 = vrot.slane %v2217, 4
        %v3077 = vrot.slane %v2218, 4
        %v3078 = vrot.slane %v2219, 4
        %v3079 = vrot.slane %v2220, 4
        %v3080 = vrot.slane %v2221, 4
        %v3081 = vrot.slane %v2222, 4
        %v3082 = vrot.slane %v2223, 4
        %v3083 = vrot.slane %v2224, 4
        %v3084 = vrot.slane %v2225, 4
        %v3085 = vrot.slane %v2226, 4
        %v3106 = vmul.f32 %v3064, %v3066
        %v3107 = vmul.f32 %v3064, %v3067
        %v3108 = vmul.f32 %v3064, %v3068
        %v3109 = vmul.f32 %v3064, %v3069
        %v3110 = vmul.f32 %v3064, %v3070
        %v3111 = vmul.f32 %v3064, %v3071
        %v3112 = vmul.f32 %v3064, %v3072
        %v3113 = vmul.f32 %v3064, %v3073
        %v3114 = vmul.f32 %v3064, %v3074
        %v3115 = vmul.f32 %v3064, %v3075
        %v3116 = vmul.f32 %v3064, %v3076
        %v3117 = vmul.f32 %v3064, %v3077
        %v3118 = vmul.f32 %v3064, %v3078
        %v3119 = vmul.f32 %v3064, %v3079
        %v3120 = vmul.f32 %v3064, %v3080
        %v3121 = vmul.f32 %v3064, %v3081
        %v3122 = vmul.f32 %v3064, %v3082
        %v3123 = vmul.f32 %v3064, %v3083
        %v3124 = vmul.f32 %v3064, %v3084
        %v3125 = vmul.f32 %v3064, %v3085
        %v3126 = vadd.f32 %v3002, %v3106
        %v3127 = vadd.f32 %v3003, %v3107
        %v3128 = vadd.f32 %v3004, %v3108
        %v3129 = vadd.f32 %v3005, %v3109
        %v3130 = vadd.f32 %v3006, %v3110
        %v3131 = vadd.f32 %v3007, %v3111
        %v3132 = vadd.f32 %v3008, %v3112
        %v3133 = vadd.f32 %v3009, %v3113
        %v3134 = vadd.f32 %v3010, %v3114
        %v3135 = vadd.f32 %v3011, %v3115
        %v3136 = vadd.f32 %v3012, %v3116
        %v3137 = vadd.f32 %v3013, %v3117
        %v3138 = vadd.f32 %v3014, %v3118
        %v3139 = vadd.f32 %v3015, %v3119
        %v3140 = vadd.f32 %v3016, %v3120
        %v3141 = vadd.f32 %v3017, %v3121
        %v3142 = vadd.f32 %v3018, %v3122
        %v3143 = vadd.f32 %v3019, %v3123
        %v3144 = vadd.f32 %v3020, %v3124
        %v3145 = vadd.f32 %v3021, %v3125
        %v3146 = vmul.f32 %v3064, %v2942
        %v3147 = vmul.f32 %v3064, %v2943
        %v3148 = vmul.f32 %v3064, %v2944
        %v3149 = vmul.f32 %v3064, %v2945
        %v3150 = vmul.f32 %v3064, %v2946
        %v3151 = vmul.f32 %v3064, %v2947
        %v3152 = vmul.f32 %v3064, %v2948
        %v3153 = vmul.f32 %v3064, %v2949
        %v3154 = vmul.f32 %v3064, %v2950
        %v3155 = vmul.f32 %v3064, %v2951
        %v3156 = vmul.f32 %v3064, %v2952
        %v3157 = vmul.f32 %v3064, %v2953
        %v3158 = vmul.f32 %v3064, %v2954
        %v3159 = vmul.f32 %v3064, %v2955
        %v3160 = vmul.f32 %v3064, %v2956
        %v3161 = vmul.f32 %v3064, %v2957
        %v3162 = vmul.f32 %v3064, %v2958
        %v3163 = vmul.f32 %v3064, %v2959
        %v3164 = vmul.f32 %v3064, %v2960
        %v3165 = vmul.f32 %v3064, %v2961
        %v3166 = vadd.f32 %v3042, %v3146
        %v3167 = vadd.f32 %v3043, %v3147
        %v3168 = vadd.f32 %v3044, %v3148
        %v3169 = vadd.f32 %v3045, %v3149
        %v3170 = vadd.f32 %v3046, %v3150
        %v3171 = vadd.f32 %v3047, %v3151
        %v3172 = vadd.f32 %v3048, %v3152
        %v3173 = vadd.f32 %v3049, %v3153
        %v3174 = vadd.f32 %v3050, %v3154
        %v3175 = vadd.f32 %v3051, %v3155
        %v3176 = vadd.f32 %v3052, %v3156
        %v3177 = vadd.f32 %v3053, %v3157
        %v3178 = vadd.f32 %v3054, %v3158
        %v3179 = vadd.f32 %v3055, %v3159
        %v3180 = vadd.f32 %v3056, %v3160
        %v3181 = vadd.f32 %v3057, %v3161
        %v3182 = vadd.f32 %v3058, %v3162
        %v3183 = vadd.f32 %v3059, %v3163
        %v3184 = vadd.f32 %v3060, %v3164
        %v3185 = vadd.f32 %v3061, %v3165
        %3186 = vset.pattern.permute.xlu0 5
        %3187 = vperm.xlu0 %3186, %v2387
        %v3188 = vpop.permute.xlu0 %3187
        %v3190 = vrot.slane %v2207, 5
        %v3191 = vrot.slane %v2208, 5
        %v3192 = vrot.slane %v2209, 5
        %v3193 = vrot.slane %v2210, 5
        %v3194 = vrot.slane %v2211, 5
        %v3195 = vrot.slane %v2212, 5
        %v3196 = vrot.slane %v2213, 5
        %v3197 = vrot.slane %v2214, 5
        %v3198 = vrot.slane %v2215, 5
        %v3199 = vrot.slane %v2216, 5
        %v3200 = vrot.slane %v2217, 5
        %v3201 = vrot.slane %v2218, 5
        %v3202 = vrot.slane %v2219, 5
        %v3203 = vrot.slane %v2220, 5
        %v3204 = vrot.slane %v2221, 5
        %v3205 = vrot.slane %v2222, 5
        %v3206 = vrot.slane %v2223, 5
        %v3207 = vrot.slane %v2224, 5
        %v3208 = vrot.slane %v2225, 5
        %v3209 = vrot.slane %v2226, 5
        %v3230 = vmul.f32 %v3188, %v3190
        %v3231 = vmul.f32 %v3188, %v3191
        %v3232 = vmul.f32 %v3188, %v3192
        %v3233 = vmul.f32 %v3188, %v3193
        %v3234 = vmul.f32 %v3188, %v3194
        %v3235 = vmul.f32 %v3188, %v3195
        %v3236 = vmul.f32 %v3188, %v3196
        %v3237 = vmul.f32 %v3188, %v3197
        %v3238 = vmul.f32 %v3188, %v3198
        %v3239 = vmul.f32 %v3188, %v3199
        %v3240 = vmul.f32 %v3188, %v3200
        %v3241 = vmul.f32 %v3188, %v3201
        %v3242 = vmul.f32 %v3188, %v3202
        %v3243 = vmul.f32 %v3188, %v3203
        %v3244 = vmul.f32 %v3188, %v3204
        %v3245 = vmul.f32 %v3188, %v3205
        %v3246 = vmul.f32 %v3188, %v3206
        %v3247 = vmul.f32 %v3188, %v3207
        %v3248 = vmul.f32 %v3188, %v3208
        %v3249 = vmul.f32 %v3188, %v3209
        %v3250 = vadd.f32 %v3126, %v3230
        %v3251 = vadd.f32 %v3127, %v3231
        %v3252 = vadd.f32 %v3128, %v3232
        %v3253 = vadd.f32 %v3129, %v3233
        %v3254 = vadd.f32 %v3130, %v3234
        %v3255 = vadd.f32 %v3131, %v3235
        %v3256 = vadd.f32 %v3132, %v3236
        %v3257 = vadd.f32 %v3133, %v3237
        %v3258 = vadd.f32 %v3134, %v3238
        %v3259 = vadd.f32 %v3135, %v3239
        %v3260 = vadd.f32 %v3136, %v3240
        %v3261 = vadd.f32 %v3137, %v3241
        %v3262 = vadd.f32 %v3138, %v3242
        %v3263 = vadd.f32 %v3139, %v3243
        %v3264 = vadd.f32 %v3140, %v3244
        %v3265 = vadd.f32 %v3141, %v3245
        %v3266 = vadd.f32 %v3142, %v3246
        %v3267 = vadd.f32 %v3143, %v3247
        %v3268 = vadd.f32 %v3144, %v3248
        %v3269 = vadd.f32 %v3145, %v3249
        %v3270 = vmul.f32 %v3188, %v3066
        %v3271 = vmul.f32 %v3188, %v3067
        %v3272 = vmul.f32 %v3188, %v3068
        %v3273 = vmul.f32 %v3188, %v3069
        %v3274 = vmul.f32 %v3188, %v3070
        %v3275 = vmul.f32 %v3188, %v3071
        %v3276 = vmul.f32 %v3188, %v3072
        %v3277 = vmul.f32 %v3188, %v3073
        %v3278 = vmul.f32 %v3188, %v3074
        %v3279 = vmul.f32 %v3188, %v3075
        %v3280 = vmul.f32 %v3188, %v3076
        %v3281 = vmul.f32 %v3188, %v3077
        %v3282 = vmul.f32 %v3188, %v3078
        %v3283 = vmul.f32 %v3188, %v3079
        %v3284 = vmul.f32 %v3188, %v3080
        %v3285 = vmul.f32 %v3188, %v3081
        %v3286 = vmul.f32 %v3188, %v3082
        %v3287 = vmul.f32 %v3188, %v3083
        %v3288 = vmul.f32 %v3188, %v3084
        %v3289 = vmul.f32 %v3188, %v3085
        %v3290 = vadd.f32 %v3166, %v3270
        %v3291 = vadd.f32 %v3167, %v3271
        %v3292 = vadd.f32 %v3168, %v3272
        %v3293 = vadd.f32 %v3169, %v3273
        %v3294 = vadd.f32 %v3170, %v3274
        %v3295 = vadd.f32 %v3171, %v3275
        %v3296 = vadd.f32 %v3172, %v3276
        %v3297 = vadd.f32 %v3173, %v3277
        %v3298 = vadd.f32 %v3174, %v3278
        %v3299 = vadd.f32 %v3175, %v3279
        %v3300 = vadd.f32 %v3176, %v3280
        %v3301 = vadd.f32 %v3177, %v3281
        %v3302 = vadd.f32 %v3178, %v3282
        %v3303 = vadd.f32 %v3179, %v3283
        %v3304 = vadd.f32 %v3180, %v3284
        %v3305 = vadd.f32 %v3181, %v3285
        %v3306 = vadd.f32 %v3182, %v3286
        %v3307 = vadd.f32 %v3183, %v3287
        %v3308 = vadd.f32 %v3184, %v3288
        %v3309 = vadd.f32 %v3185, %v3289
        %3310 = vset.pattern.permute.xlu0 6
        %3311 = vperm.xlu0 %3310, %v2387
        %v3312 = vpop.permute.xlu0 %3311
        %v3314 = vrot.slane %v2207, 6
        %v3315 = vrot.slane %v2208, 6
        %v3316 = vrot.slane %v2209, 6
        %v3317 = vrot.slane %v2210, 6
        %v3318 = vrot.slane %v2211, 6
        %v3319 = vrot.slane %v2212, 6
        %v3320 = vrot.slane %v2213, 6
        %v3321 = vrot.slane %v2214, 6
        %v3322 = vrot.slane %v2215, 6
        %v3323 = vrot.slane %v2216, 6
        %v3324 = vrot.slane %v2217, 6
        %v3325 = vrot.slane %v2218, 6
        %v3326 = vrot.slane %v2219, 6
        %v3327 = vrot.slane %v2220, 6
        %v3328 = vrot.slane %v2221, 6
        %v3329 = vrot.slane %v2222, 6
        %v3330 = vrot.slane %v2223, 6
        %v3331 = vrot.slane %v2224, 6
        %v3332 = vrot.slane %v2225, 6
        %v3333 = vrot.slane %v2226, 6
        %v3354 = vmul.f32 %v3312, %v3314
        %v3355 = vmul.f32 %v3312, %v3315
        %v3356 = vmul.f32 %v3312, %v3316
        %v3357 = vmul.f32 %v3312, %v3317
        %v3358 = vmul.f32 %v3312, %v3318
        %v3359 = vmul.f32 %v3312, %v3319
        %v3360 = vmul.f32 %v3312, %v3320
        %v3361 = vmul.f32 %v3312, %v3321
        %v3362 = vmul.f32 %v3312, %v3322
        %v3363 = vmul.f32 %v3312, %v3323
        %v3364 = vmul.f32 %v3312, %v3324
        %v3365 = vmul.f32 %v3312, %v3325
        %v3366 = vmul.f32 %v3312, %v3326
        %v3367 = vmul.f32 %v3312, %v3327
        %v3368 = vmul.f32 %v3312, %v3328
        %v3369 = vmul.f32 %v3312, %v3329
        %v3370 = vmul.f32 %v3312, %v3330
        %v3371 = vmul.f32 %v3312, %v3331
        %v3372 = vmul.f32 %v3312, %v3332
        %v3373 = vmul.f32 %v3312, %v3333
        %v3374 = vadd.f32 %v3250, %v3354
        %v3375 = vadd.f32 %v3251, %v3355
        %v3376 = vadd.f32 %v3252, %v3356
        %v3377 = vadd.f32 %v3253, %v3357
        %v3378 = vadd.f32 %v3254, %v3358
        %v3379 = vadd.f32 %v3255, %v3359
        %v3380 = vadd.f32 %v3256, %v3360
        %v3381 = vadd.f32 %v3257, %v3361
        %v3382 = vadd.f32 %v3258, %v3362
        %v3383 = vadd.f32 %v3259, %v3363
        %v3384 = vadd.f32 %v3260, %v3364
        %v3385 = vadd.f32 %v3261, %v3365
        %v3386 = vadd.f32 %v3262, %v3366
        %v3387 = vadd.f32 %v3263, %v3367
        %v3388 = vadd.f32 %v3264, %v3368
        %v3389 = vadd.f32 %v3265, %v3369
        %v3390 = vadd.f32 %v3266, %v3370
        %v3391 = vadd.f32 %v3267, %v3371
        %v3392 = vadd.f32 %v3268, %v3372
        %v3393 = vadd.f32 %v3269, %v3373
        %v3394 = vmul.f32 %v3312, %v3190
        %v3395 = vmul.f32 %v3312, %v3191
        %v3396 = vmul.f32 %v3312, %v3192
        %v3397 = vmul.f32 %v3312, %v3193
        %v3398 = vmul.f32 %v3312, %v3194
        %v3399 = vmul.f32 %v3312, %v3195
        %v3400 = vmul.f32 %v3312, %v3196
        %v3401 = vmul.f32 %v3312, %v3197
        %v3402 = vmul.f32 %v3312, %v3198
        %v3403 = vmul.f32 %v3312, %v3199
        %v3404 = vmul.f32 %v3312, %v3200
        %v3405 = vmul.f32 %v3312, %v3201
        %v3406 = vmul.f32 %v3312, %v3202
        %v3407 = vmul.f32 %v3312, %v3203
        %v3408 = vmul.f32 %v3312, %v3204
        %v3409 = vmul.f32 %v3312, %v3205
        %v3410 = vmul.f32 %v3312, %v3206
        %v3411 = vmul.f32 %v3312, %v3207
        %v3412 = vmul.f32 %v3312, %v3208
        %v3413 = vmul.f32 %v3312, %v3209
        %v3414 = vadd.f32 %v3290, %v3394
        %v3415 = vadd.f32 %v3291, %v3395
        %v3416 = vadd.f32 %v3292, %v3396
        %v3417 = vadd.f32 %v3293, %v3397
        %v3418 = vadd.f32 %v3294, %v3398
        %v3419 = vadd.f32 %v3295, %v3399
        %v3420 = vadd.f32 %v3296, %v3400
        %v3421 = vadd.f32 %v3297, %v3401
        %v3422 = vadd.f32 %v3298, %v3402
        %v3423 = vadd.f32 %v3299, %v3403
        %v3424 = vadd.f32 %v3300, %v3404
        %v3425 = vadd.f32 %v3301, %v3405
        %v3426 = vadd.f32 %v3302, %v3406
        %v3427 = vadd.f32 %v3303, %v3407
        %v3428 = vadd.f32 %v3304, %v3408
        %v3429 = vadd.f32 %v3305, %v3409
        %v3430 = vadd.f32 %v3306, %v3410
        %v3431 = vadd.f32 %v3307, %v3411
        %v3432 = vadd.f32 %v3308, %v3412
        %v3433 = vadd.f32 %v3309, %v3413
        %3434 = vset.pattern.permute.xlu0 7
        %3435 = vperm.xlu0 %3434, %v2387
        %v3436 = vpop.permute.xlu0 %3435
        %v3438 = vmul.f32 %v3436, %v2610
        %v3439 = vmul.f32 %v3436, %v2611
        %v3440 = vmul.f32 %v3436, %v2612
        %v3441 = vmul.f32 %v3436, %v2613
        %v3442 = vmul.f32 %v3436, %v2614
        %v3443 = vmul.f32 %v3436, %v2615
        %v3444 = vmul.f32 %v3436, %v2616
        %v3445 = vmul.f32 %v3436, %v2617
        %v3446 = vmul.f32 %v3436, %v2618
        %v3447 = vmul.f32 %v3436, %v2619
        %v3448 = vmul.f32 %v3436, %v2620
        %v3449 = vmul.f32 %v3436, %v2621
        %v3450 = vmul.f32 %v3436, %v2622
        %v3451 = vmul.f32 %v3436, %v2623
        %v3452 = vmul.f32 %v3436, %v2624
        %v3453 = vmul.f32 %v3436, %v2625
        %v3454 = vmul.f32 %v3436, %v2626
        %v3455 = vmul.f32 %v3436, %v2627
        %v3456 = vmul.f32 %v3436, %v2628
        %v3457 = vmul.f32 %v3436, %v2629
        %v3458 = vadd.f32 %v3374, %v3438
        %v3459 = vadd.f32 %v3375, %v3439
        %v3460 = vadd.f32 %v3376, %v3440
        %v3461 = vadd.f32 %v3377, %v3441
        %v3462 = vadd.f32 %v3378, %v3442
        %v3463 = vadd.f32 %v3379, %v3443
        %v3464 = vadd.f32 %v3380, %v3444
        %v3465 = vadd.f32 %v3381, %v3445
        %v3466 = vadd.f32 %v3382, %v3446
        %v3467 = vadd.f32 %v3383, %v3447
        %v3468 = vadd.f32 %v3384, %v3448
        %v3469 = vadd.f32 %v3385, %v3449
        %v3470 = vadd.f32 %v3386, %v3450
        %v3471 = vadd.f32 %v3387, %v3451
        %v3472 = vadd.f32 %v3388, %v3452
        %v3473 = vadd.f32 %v3389, %v3453
        %v3474 = vadd.f32 %v3390, %v3454
        %v3475 = vadd.f32 %v3391, %v3455
        %v3476 = vadd.f32 %v3392, %v3456
        %v3477 = vadd.f32 %v3393, %v3457
        %v3478 = vmul.f32 %v3436, %v3314
        %v3479 = vmul.f32 %v3436, %v3315
        %v3480 = vmul.f32 %v3436, %v3316
        %v3481 = vmul.f32 %v3436, %v3317
        %v3482 = vmul.f32 %v3436, %v3318
        %v3483 = vmul.f32 %v3436, %v3319
        %v3484 = vmul.f32 %v3436, %v3320
        %v3485 = vmul.f32 %v3436, %v3321
        %v3486 = vmul.f32 %v3436, %v3322
        %v3487 = vmul.f32 %v3436, %v3323
        %v3488 = vmul.f32 %v3436, %v3324
        %v3489 = vmul.f32 %v3436, %v3325
        %v3490 = vmul.f32 %v3436, %v3326
        %v3491 = vmul.f32 %v3436, %v3327
        %v3492 = vmul.f32 %v3436, %v3328
        %v3493 = vmul.f32 %v3436, %v3329
        %v3494 = vmul.f32 %v3436, %v3330
        %v3495 = vmul.f32 %v3436, %v3331
        %v3496 = vmul.f32 %v3436, %v3332
        %v3497 = vmul.f32 %v3436, %v3333
        %v3498 = vadd.f32 %v3414, %v3478
        %v3499 = vadd.f32 %v3415, %v3479
        %v3500 = vadd.f32 %v3416, %v3480
        %v3501 = vadd.f32 %v3417, %v3481
        %v3502 = vadd.f32 %v3418, %v3482
        %v3503 = vadd.f32 %v3419, %v3483
        %v3504 = vadd.f32 %v3420, %v3484
        %v3505 = vadd.f32 %v3421, %v3485
        %v3506 = vadd.f32 %v3422, %v3486
        %v3507 = vadd.f32 %v3423, %v3487
        %v3508 = vadd.f32 %v3424, %v3488
        %v3509 = vadd.f32 %v3425, %v3489
        %v3510 = vadd.f32 %v3426, %v3490
        %v3511 = vadd.f32 %v3427, %v3491
        %v3512 = vadd.f32 %v3428, %v3492
        %v3513 = vadd.f32 %v3429, %v3493
        %v3514 = vadd.f32 %v3430, %v3494
        %v3515 = vadd.f32 %v3431, %v3495
        %v3516 = vadd.f32 %v3432, %v3496
        %v3517 = vadd.f32 %v3433, %v3497
        %3518 = vset.pattern.permute.xlu0 8
        %3519 = vperm.xlu0 %3518, %v2387
        %v3520 = vpop.permute.xlu0 %3519
        %v3522 = vmul.f32 %v3520, %v2227
        %v3523 = vmul.f32 %v3520, %v2228
        %v3524 = vmul.f32 %v3520, %v2229
        %v3525 = vmul.f32 %v3520, %v2230
        %v3526 = vmul.f32 %v3520, %v2231
        %v3527 = vmul.f32 %v3520, %v2232
        %v3528 = vmul.f32 %v3520, %v2233
        %v3529 = vmul.f32 %v3520, %v2234
        %v3530 = vmul.f32 %v3520, %v2235
        %v3531 = vmul.f32 %v3520, %v2236
        %v3532 = vmul.f32 %v3520, %v2237
        %v3533 = vmul.f32 %v3520, %v2238
        %v3534 = vmul.f32 %v3520, %v2239
        %v3535 = vmul.f32 %v3520, %v2240
        %v3536 = vmul.f32 %v3520, %v2241
        %v3537 = vmul.f32 %v3520, %v2242
        %v3538 = vmul.f32 %v3520, %v2243
        %v3539 = vmul.f32 %v3520, %v2244
        %v3540 = vmul.f32 %v3520, %v2245
        %v3541 = vmul.f32 %v3520, %v2246
        %v3542 = vadd.f32 %v3458, %v3522
        %v3543 = vadd.f32 %v3459, %v3523
        %v3544 = vadd.f32 %v3460, %v3524
        %v3545 = vadd.f32 %v3461, %v3525
        %v3546 = vadd.f32 %v3462, %v3526
        %v3547 = vadd.f32 %v3463, %v3527
        %v3548 = vadd.f32 %v3464, %v3528
        %v3549 = vadd.f32 %v3465, %v3529
        %v3550 = vadd.f32 %v3466, %v3530
        %v3551 = vadd.f32 %v3467, %v3531
        %v3552 = vadd.f32 %v3468, %v3532
        %v3553 = vadd.f32 %v3469, %v3533
        %v3554 = vadd.f32 %v3470, %v3534
        %v3555 = vadd.f32 %v3471, %v3535
        %v3556 = vadd.f32 %v3472, %v3536
        %v3557 = vadd.f32 %v3473, %v3537
        %v3558 = vadd.f32 %v3474, %v3538
        %v3559 = vadd.f32 %v3475, %v3539
        %v3560 = vadd.f32 %v3476, %v3540
        %v3561 = vadd.f32 %v3477, %v3541
        %v3582 = vrot.slane %v2227, 7
        %v3583 = vrot.slane %v2228, 7
        %v3584 = vrot.slane %v2229, 7
        %v3585 = vrot.slane %v2230, 7
        %v3586 = vrot.slane %v2231, 7
        %v3587 = vrot.slane %v2232, 7
        %v3588 = vrot.slane %v2233, 7
        %v3589 = vrot.slane %v2234, 7
        %v3590 = vrot.slane %v2235, 7
        %v3591 = vrot.slane %v2236, 7
        %v3592 = vrot.slane %v2237, 7
        %v3593 = vrot.slane %v2238, 7
        %v3594 = vrot.slane %v2239, 7
        %v3595 = vrot.slane %v2240, 7
        %v3596 = vrot.slane %v2241, 7
        %v3597 = vrot.slane %v2242, 7
        %v3598 = vrot.slane %v2243, 7
        %v3599 = vrot.slane %v2244, 7
        %v3600 = vrot.slane %v2245, 7
        %v3601 = vrot.slane %v2246, 7
        %v3622 = vmul.f32 %v3520, %v3582
        %v3623 = vmul.f32 %v3520, %v3583
        %v3624 = vmul.f32 %v3520, %v3584
        %v3625 = vmul.f32 %v3520, %v3585
        %v3626 = vmul.f32 %v3520, %v3586
        %v3627 = vmul.f32 %v3520, %v3587
        %v3628 = vmul.f32 %v3520, %v3588
        %v3629 = vmul.f32 %v3520, %v3589
        %v3630 = vmul.f32 %v3520, %v3590
        %v3631 = vmul.f32 %v3520, %v3591
        %v3632 = vmul.f32 %v3520, %v3592
        %v3633 = vmul.f32 %v3520, %v3593
        %v3634 = vmul.f32 %v3520, %v3594
        %v3635 = vmul.f32 %v3520, %v3595
        %v3636 = vmul.f32 %v3520, %v3596
        %v3637 = vmul.f32 %v3520, %v3597
        %v3638 = vmul.f32 %v3520, %v3598
        %v3639 = vmul.f32 %v3520, %v3599
        %v3640 = vmul.f32 %v3520, %v3600
        %v3641 = vmul.f32 %v3520, %v3601
        %v3642 = vadd.f32 %v3498, %v3622
        %v3643 = vadd.f32 %v3499, %v3623
        %v3644 = vadd.f32 %v3500, %v3624
        %v3645 = vadd.f32 %v3501, %v3625
        %v3646 = vadd.f32 %v3502, %v3626
        %v3647 = vadd.f32 %v3503, %v3627
        %v3648 = vadd.f32 %v3504, %v3628
        %v3649 = vadd.f32 %v3505, %v3629
        %v3650 = vadd.f32 %v3506, %v3630
        %v3651 = vadd.f32 %v3507, %v3631
        %v3652 = vadd.f32 %v3508, %v3632
        %v3653 = vadd.f32 %v3509, %v3633
        %v3654 = vadd.f32 %v3510, %v3634
        %v3655 = vadd.f32 %v3511, %v3635
        %v3656 = vadd.f32 %v3512, %v3636
        %v3657 = vadd.f32 %v3513, %v3637
        %v3658 = vadd.f32 %v3514, %v3638
        %v3659 = vadd.f32 %v3515, %v3639
        %v3660 = vadd.f32 %v3516, %v3640
        %v3661 = vadd.f32 %v3517, %v3641
        %3662 = vset.pattern.permute.xlu0 9
        %3663 = vperm.xlu0 %3662, %v2387
        %v3664 = vpop.permute.xlu0 %3663
        %v3666 = vrot.slane %v2227, 1
        %v3667 = vrot.slane %v2228, 1
        %v3668 = vrot.slane %v2229, 1
        %v3669 = vrot.slane %v2230, 1
        %v3670 = vrot.slane %v2231, 1
        %v3671 = vrot.slane %v2232, 1
        %v3672 = vrot.slane %v2233, 1
        %v3673 = vrot.slane %v2234, 1
        %v3674 = vrot.slane %v2235, 1
        %v3675 = vrot.slane %v2236, 1
        %v3676 = vrot.slane %v2237, 1
        %v3677 = vrot.slane %v2238, 1
        %v3678 = vrot.slane %v2239, 1
        %v3679 = vrot.slane %v2240, 1
        %v3680 = vrot.slane %v2241, 1
        %v3681 = vrot.slane %v2242, 1
        %v3682 = vrot.slane %v2243, 1
        %v3683 = vrot.slane %v2244, 1
        %v3684 = vrot.slane %v2245, 1
        %v3685 = vrot.slane %v2246, 1
        %v3706 = vmul.f32 %v3664, %v3666
        %v3707 = vmul.f32 %v3664, %v3667
        %v3708 = vmul.f32 %v3664, %v3668
        %v3709 = vmul.f32 %v3664, %v3669
        %v3710 = vmul.f32 %v3664, %v3670
        %v3711 = vmul.f32 %v3664, %v3671
        %v3712 = vmul.f32 %v3664, %v3672
        %v3713 = vmul.f32 %v3664, %v3673
        %v3714 = vmul.f32 %v3664, %v3674
        %v3715 = vmul.f32 %v3664, %v3675
        %v3716 = vmul.f32 %v3664, %v3676
        %v3717 = vmul.f32 %v3664, %v3677
        %v3718 = vmul.f32 %v3664, %v3678
        %v3719 = vmul.f32 %v3664, %v3679
        %v3720 = vmul.f32 %v3664, %v3680
        %v3721 = vmul.f32 %v3664, %v3681
        %v3722 = vmul.f32 %v3664, %v3682
        %v3723 = vmul.f32 %v3664, %v3683
        %v3724 = vmul.f32 %v3664, %v3684
        %v3725 = vmul.f32 %v3664, %v3685
        %v3726 = vadd.f32 %v3542, %v3706
        %v3727 = vadd.f32 %v3543, %v3707
        %v3728 = vadd.f32 %v3544, %v3708
        %v3729 = vadd.f32 %v3545, %v3709
        %v3730 = vadd.f32 %v3546, %v3710
        %v3731 = vadd.f32 %v3547, %v3711
        %v3732 = vadd.f32 %v3548, %v3712
        %v3733 = vadd.f32 %v3549, %v3713
        %v3734 = vadd.f32 %v3550, %v3714
        %v3735 = vadd.f32 %v3551, %v3715
        %v3736 = vadd.f32 %v3552, %v3716
        %v3737 = vadd.f32 %v3553, %v3717
        %v3738 = vadd.f32 %v3554, %v3718
        %v3739 = vadd.f32 %v3555, %v3719
        %v3740 = vadd.f32 %v3556, %v3720
        %v3741 = vadd.f32 %v3557, %v3721
        %v3742 = vadd.f32 %v3558, %v3722
        %v3743 = vadd.f32 %v3559, %v3723
        %v3744 = vadd.f32 %v3560, %v3724
        %v3745 = vadd.f32 %v3561, %v3725
        %v3746 = vmul.f32 %v3664, %v2227
        %v3747 = vmul.f32 %v3664, %v2228
        %v3748 = vmul.f32 %v3664, %v2229
        %v3749 = vmul.f32 %v3664, %v2230
        %v3750 = vmul.f32 %v3664, %v2231
        %v3751 = vmul.f32 %v3664, %v2232
        %v3752 = vmul.f32 %v3664, %v2233
        %v3753 = vmul.f32 %v3664, %v2234
        %v3754 = vmul.f32 %v3664, %v2235
        %v3755 = vmul.f32 %v3664, %v2236
        %v3756 = vmul.f32 %v3664, %v2237
        %v3757 = vmul.f32 %v3664, %v2238
        %v3758 = vmul.f32 %v3664, %v2239
        %v3759 = vmul.f32 %v3664, %v2240
        %v3760 = vmul.f32 %v3664, %v2241
        %v3761 = vmul.f32 %v3664, %v2242
        %v3762 = vmul.f32 %v3664, %v2243
        %v3763 = vmul.f32 %v3664, %v2244
        %v3764 = vmul.f32 %v3664, %v2245
        %v3765 = vmul.f32 %v3664, %v2246
        %v3766 = vadd.f32 %v3642, %v3746
        %v3767 = vadd.f32 %v3643, %v3747
        %v3768 = vadd.f32 %v3644, %v3748
        %v3769 = vadd.f32 %v3645, %v3749
        %v3770 = vadd.f32 %v3646, %v3750
        %v3771 = vadd.f32 %v3647, %v3751
        %v3772 = vadd.f32 %v3648, %v3752
        %v3773 = vadd.f32 %v3649, %v3753
        %v3774 = vadd.f32 %v3650, %v3754
        %v3775 = vadd.f32 %v3651, %v3755
        %v3776 = vadd.f32 %v3652, %v3756
        %v3777 = vadd.f32 %v3653, %v3757
        %v3778 = vadd.f32 %v3654, %v3758
        %v3779 = vadd.f32 %v3655, %v3759
        %v3780 = vadd.f32 %v3656, %v3760
        %v3781 = vadd.f32 %v3657, %v3761
        %v3782 = vadd.f32 %v3658, %v3762
        %v3783 = vadd.f32 %v3659, %v3763
        %v3784 = vadd.f32 %v3660, %v3764
        %v3785 = vadd.f32 %v3661, %v3765
        %3786 = vset.pattern.permute.xlu0 10
        %3787 = vperm.xlu0 %3786, %v2387
        %v3788 = vpop.permute.xlu0 %3787
        %v3790 = vrot.slane %v2227, 2
        %v3791 = vrot.slane %v2228, 2
        %v3792 = vrot.slane %v2229, 2
        %v3793 = vrot.slane %v2230, 2
        %v3794 = vrot.slane %v2231, 2
        %v3795 = vrot.slane %v2232, 2
        %v3796 = vrot.slane %v2233, 2
        %v3797 = vrot.slane %v2234, 2
        %v3798 = vrot.slane %v2235, 2
        %v3799 = vrot.slane %v2236, 2
        %v3800 = vrot.slane %v2237, 2
        %v3801 = vrot.slane %v2238, 2
        %v3802 = vrot.slane %v2239, 2
        %v3803 = vrot.slane %v2240, 2
        %v3804 = vrot.slane %v2241, 2
        %v3805 = vrot.slane %v2242, 2
        %v3806 = vrot.slane %v2243, 2
        %v3807 = vrot.slane %v2244, 2
        %v3808 = vrot.slane %v2245, 2
        %v3809 = vrot.slane %v2246, 2
        %v3830 = vmul.f32 %v3788, %v3790
        %v3831 = vmul.f32 %v3788, %v3791
        %v3832 = vmul.f32 %v3788, %v3792
        %v3833 = vmul.f32 %v3788, %v3793
        %v3834 = vmul.f32 %v3788, %v3794
        %v3835 = vmul.f32 %v3788, %v3795
        %v3836 = vmul.f32 %v3788, %v3796
        %v3837 = vmul.f32 %v3788, %v3797
        %v3838 = vmul.f32 %v3788, %v3798
        %v3839 = vmul.f32 %v3788, %v3799
        %v3840 = vmul.f32 %v3788, %v3800
        %v3841 = vmul.f32 %v3788, %v3801
        %v3842 = vmul.f32 %v3788, %v3802
        %v3843 = vmul.f32 %v3788, %v3803
        %v3844 = vmul.f32 %v3788, %v3804
        %v3845 = vmul.f32 %v3788, %v3805
        %v3846 = vmul.f32 %v3788, %v3806
        %v3847 = vmul.f32 %v3788, %v3807
        %v3848 = vmul.f32 %v3788, %v3808
        %v3849 = vmul.f32 %v3788, %v3809
        %v3850 = vadd.f32 %v3726, %v3830
        %v3851 = vadd.f32 %v3727, %v3831
        %v3852 = vadd.f32 %v3728, %v3832
        %v3853 = vadd.f32 %v3729, %v3833
        %v3854 = vadd.f32 %v3730, %v3834
        %v3855 = vadd.f32 %v3731, %v3835
        %v3856 = vadd.f32 %v3732, %v3836
        %v3857 = vadd.f32 %v3733, %v3837
        %v3858 = vadd.f32 %v3734, %v3838
        %v3859 = vadd.f32 %v3735, %v3839
        %v3860 = vadd.f32 %v3736, %v3840
        %v3861 = vadd.f32 %v3737, %v3841
        %v3862 = vadd.f32 %v3738, %v3842
        %v3863 = vadd.f32 %v3739, %v3843
        %v3864 = vadd.f32 %v3740, %v3844
        %v3865 = vadd.f32 %v3741, %v3845
        %v3866 = vadd.f32 %v3742, %v3846
        %v3867 = vadd.f32 %v3743, %v3847
        %v3868 = vadd.f32 %v3744, %v3848
        %v3869 = vadd.f32 %v3745, %v3849
        %v3870 = vmul.f32 %v3788, %v3666
        %v3871 = vmul.f32 %v3788, %v3667
        %v3872 = vmul.f32 %v3788, %v3668
        %v3873 = vmul.f32 %v3788, %v3669
        %v3874 = vmul.f32 %v3788, %v3670
        %v3875 = vmul.f32 %v3788, %v3671
        %v3876 = vmul.f32 %v3788, %v3672
        %v3877 = vmul.f32 %v3788, %v3673
        %v3878 = vmul.f32 %v3788, %v3674
        %v3879 = vmul.f32 %v3788, %v3675
        %v3880 = vmul.f32 %v3788, %v3676
        %v3881 = vmul.f32 %v3788, %v3677
        %v3882 = vmul.f32 %v3788, %v3678
        %v3883 = vmul.f32 %v3788, %v3679
        %v3884 = vmul.f32 %v3788, %v3680
        %v3885 = vmul.f32 %v3788, %v3681
        %v3886 = vmul.f32 %v3788, %v3682
        %v3887 = vmul.f32 %v3788, %v3683
        %v3888 = vmul.f32 %v3788, %v3684
        %v3889 = vmul.f32 %v3788, %v3685
        %v3890 = vadd.f32 %v3766, %v3870
        %v3891 = vadd.f32 %v3767, %v3871
        %v3892 = vadd.f32 %v3768, %v3872
        %v3893 = vadd.f32 %v3769, %v3873
        %v3894 = vadd.f32 %v3770, %v3874
        %v3895 = vadd.f32 %v3771, %v3875
        %v3896 = vadd.f32 %v3772, %v3876
        %v3897 = vadd.f32 %v3773, %v3877
        %v3898 = vadd.f32 %v3774, %v3878
        %v3899 = vadd.f32 %v3775, %v3879
        %v3900 = vadd.f32 %v3776, %v3880
        %v3901 = vadd.f32 %v3777, %v3881
        %v3902 = vadd.f32 %v3778, %v3882
        %v3903 = vadd.f32 %v3779, %v3883
        %v3904 = vadd.f32 %v3780, %v3884
        %v3905 = vadd.f32 %v3781, %v3885
        %v3906 = vadd.f32 %v3782, %v3886
        %v3907 = vadd.f32 %v3783, %v3887
        %v3908 = vadd.f32 %v3784, %v3888
        %v3909 = vadd.f32 %v3785, %v3889
        %3910 = vset.pattern.permute.xlu0 11
        %3911 = vperm.xlu0 %3910, %v2387
        %v3912 = vpop.permute.xlu0 %3911
        %v3914 = vrot.slane %v2227, 3
        %v3915 = vrot.slane %v2228, 3
        %v3916 = vrot.slane %v2229, 3
        %v3917 = vrot.slane %v2230, 3
        %v3918 = vrot.slane %v2231, 3
        %v3919 = vrot.slane %v2232, 3
        %v3920 = vrot.slane %v2233, 3
        %v3921 = vrot.slane %v2234, 3
        %v3922 = vrot.slane %v2235, 3
        %v3923 = vrot.slane %v2236, 3
        %v3924 = vrot.slane %v2237, 3
        %v3925 = vrot.slane %v2238, 3
        %v3926 = vrot.slane %v2239, 3
        %v3927 = vrot.slane %v2240, 3
        %v3928 = vrot.slane %v2241, 3
        %v3929 = vrot.slane %v2242, 3
        %v3930 = vrot.slane %v2243, 3
        %v3931 = vrot.slane %v2244, 3
        %v3932 = vrot.slane %v2245, 3
        %v3933 = vrot.slane %v2246, 3
        %v3954 = vmul.f32 %v3912, %v3914
        %v3955 = vmul.f32 %v3912, %v3915
        %v3956 = vmul.f32 %v3912, %v3916
        %v3957 = vmul.f32 %v3912, %v3917
        %v3958 = vmul.f32 %v3912, %v3918
        %v3959 = vmul.f32 %v3912, %v3919
        %v3960 = vmul.f32 %v3912, %v3920
        %v3961 = vmul.f32 %v3912, %v3921
        %v3962 = vmul.f32 %v3912, %v3922
        %v3963 = vmul.f32 %v3912, %v3923
        %v3964 = vmul.f32 %v3912, %v3924
        %v3965 = vmul.f32 %v3912, %v3925
        %v3966 = vmul.f32 %v3912, %v3926
        %v3967 = vmul.f32 %v3912, %v3927
        %v3968 = vmul.f32 %v3912, %v3928
        %v3969 = vmul.f32 %v3912, %v3929
        %v3970 = vmul.f32 %v3912, %v3930
        %v3971 = vmul.f32 %v3912, %v3931
        %v3972 = vmul.f32 %v3912, %v3932
        %v3973 = vmul.f32 %v3912, %v3933
        %v3974 = vadd.f32 %v3850, %v3954
        %v3975 = vadd.f32 %v3851, %v3955
        %v3976 = vadd.f32 %v3852, %v3956
        %v3977 = vadd.f32 %v3853, %v3957
        %v3978 = vadd.f32 %v3854, %v3958
        %v3979 = vadd.f32 %v3855, %v3959
        %v3980 = vadd.f32 %v3856, %v3960
        %v3981 = vadd.f32 %v3857, %v3961
        %v3982 = vadd.f32 %v3858, %v3962
        %v3983 = vadd.f32 %v3859, %v3963
        %v3984 = vadd.f32 %v3860, %v3964
        %v3985 = vadd.f32 %v3861, %v3965
        %v3986 = vadd.f32 %v3862, %v3966
        %v3987 = vadd.f32 %v3863, %v3967
        %v3988 = vadd.f32 %v3864, %v3968
        %v3989 = vadd.f32 %v3865, %v3969
        %v3990 = vadd.f32 %v3866, %v3970
        %v3991 = vadd.f32 %v3867, %v3971
        %v3992 = vadd.f32 %v3868, %v3972
        %v3993 = vadd.f32 %v3869, %v3973
        %v3994 = vmul.f32 %v3912, %v3790
        %v3995 = vmul.f32 %v3912, %v3791
        %v3996 = vmul.f32 %v3912, %v3792
        %v3997 = vmul.f32 %v3912, %v3793
        %v3998 = vmul.f32 %v3912, %v3794
        %v3999 = vmul.f32 %v3912, %v3795
        %v4000 = vmul.f32 %v3912, %v3796
        %v4001 = vmul.f32 %v3912, %v3797
        %v4002 = vmul.f32 %v3912, %v3798
        %v4003 = vmul.f32 %v3912, %v3799
        %v4004 = vmul.f32 %v3912, %v3800
        %v4005 = vmul.f32 %v3912, %v3801
        %v4006 = vmul.f32 %v3912, %v3802
        %v4007 = vmul.f32 %v3912, %v3803
        %v4008 = vmul.f32 %v3912, %v3804
        %v4009 = vmul.f32 %v3912, %v3805
        %v4010 = vmul.f32 %v3912, %v3806
        %v4011 = vmul.f32 %v3912, %v3807
        %v4012 = vmul.f32 %v3912, %v3808
        %v4013 = vmul.f32 %v3912, %v3809
        %v4014 = vadd.f32 %v3890, %v3994
        %v4015 = vadd.f32 %v3891, %v3995
        %v4016 = vadd.f32 %v3892, %v3996
        %v4017 = vadd.f32 %v3893, %v3997
        %v4018 = vadd.f32 %v3894, %v3998
        %v4019 = vadd.f32 %v3895, %v3999
        %v4020 = vadd.f32 %v3896, %v4000
        %v4021 = vadd.f32 %v3897, %v4001
        %v4022 = vadd.f32 %v3898, %v4002
        %v4023 = vadd.f32 %v3899, %v4003
        %v4024 = vadd.f32 %v3900, %v4004
        %v4025 = vadd.f32 %v3901, %v4005
        %v4026 = vadd.f32 %v3902, %v4006
        %v4027 = vadd.f32 %v3903, %v4007
        %v4028 = vadd.f32 %v3904, %v4008
        %v4029 = vadd.f32 %v3905, %v4009
        %v4030 = vadd.f32 %v3906, %v4010
        %v4031 = vadd.f32 %v3907, %v4011
        %v4032 = vadd.f32 %v3908, %v4012
        %v4033 = vadd.f32 %v3909, %v4013
        %4034 = vset.pattern.permute.xlu0 12
        %4035 = vperm.xlu0 %4034, %v2387
        %v4036 = vpop.permute.xlu0 %4035
        %v4038 = vrot.slane %v2227, 4
        %v4039 = vrot.slane %v2228, 4
        %v4040 = vrot.slane %v2229, 4
        %v4041 = vrot.slane %v2230, 4
        %v4042 = vrot.slane %v2231, 4
        %v4043 = vrot.slane %v2232, 4
        %v4044 = vrot.slane %v2233, 4
        %v4045 = vrot.slane %v2234, 4
        %v4046 = vrot.slane %v2235, 4
        %v4047 = vrot.slane %v2236, 4
        %v4048 = vrot.slane %v2237, 4
        %v4049 = vrot.slane %v2238, 4
        %v4050 = vrot.slane %v2239, 4
        %v4051 = vrot.slane %v2240, 4
        %v4052 = vrot.slane %v2241, 4
        %v4053 = vrot.slane %v2242, 4
        %v4054 = vrot.slane %v2243, 4
        %v4055 = vrot.slane %v2244, 4
        %v4056 = vrot.slane %v2245, 4
        %v4057 = vrot.slane %v2246, 4
        %v4078 = vmul.f32 %v4036, %v4038
        %v4079 = vmul.f32 %v4036, %v4039
        %v4080 = vmul.f32 %v4036, %v4040
        %v4081 = vmul.f32 %v4036, %v4041
        %v4082 = vmul.f32 %v4036, %v4042
        %v4083 = vmul.f32 %v4036, %v4043
        %v4084 = vmul.f32 %v4036, %v4044
        %v4085 = vmul.f32 %v4036, %v4045
        %v4086 = vmul.f32 %v4036, %v4046
        %v4087 = vmul.f32 %v4036, %v4047
        %v4088 = vmul.f32 %v4036, %v4048
        %v4089 = vmul.f32 %v4036, %v4049
        %v4090 = vmul.f32 %v4036, %v4050
        %v4091 = vmul.f32 %v4036, %v4051
        %v4092 = vmul.f32 %v4036, %v4052
        %v4093 = vmul.f32 %v4036, %v4053
        %v4094 = vmul.f32 %v4036, %v4054
        %v4095 = vmul.f32 %v4036, %v4055
        %v4096 = vmul.f32 %v4036, %v4056
        %v4097 = vmul.f32 %v4036, %v4057
        %v4098 = vadd.f32 %v3974, %v4078
        %v4099 = vadd.f32 %v3975, %v4079
        %v4100 = vadd.f32 %v3976, %v4080
        %v4101 = vadd.f32 %v3977, %v4081
        %v4102 = vadd.f32 %v3978, %v4082
        %v4103 = vadd.f32 %v3979, %v4083
        %v4104 = vadd.f32 %v3980, %v4084
        %v4105 = vadd.f32 %v3981, %v4085
        %v4106 = vadd.f32 %v3982, %v4086
        %v4107 = vadd.f32 %v3983, %v4087
        %v4108 = vadd.f32 %v3984, %v4088
        %v4109 = vadd.f32 %v3985, %v4089
        %v4110 = vadd.f32 %v3986, %v4090
        %v4111 = vadd.f32 %v3987, %v4091
        %v4112 = vadd.f32 %v3988, %v4092
        %v4113 = vadd.f32 %v3989, %v4093
        %v4114 = vadd.f32 %v3990, %v4094
        %v4115 = vadd.f32 %v3991, %v4095
        %v4116 = vadd.f32 %v3992, %v4096
        %v4117 = vadd.f32 %v3993, %v4097
        %v4118 = vmul.f32 %v4036, %v3914
        %v4119 = vmul.f32 %v4036, %v3915
        %v4120 = vmul.f32 %v4036, %v3916
        %v4121 = vmul.f32 %v4036, %v3917
        %v4122 = vmul.f32 %v4036, %v3918
        %v4123 = vmul.f32 %v4036, %v3919
        %v4124 = vmul.f32 %v4036, %v3920
        %v4125 = vmul.f32 %v4036, %v3921
        %v4126 = vmul.f32 %v4036, %v3922
        %v4127 = vmul.f32 %v4036, %v3923
        %v4128 = vmul.f32 %v4036, %v3924
        %v4129 = vmul.f32 %v4036, %v3925
        %v4130 = vmul.f32 %v4036, %v3926
        %v4131 = vmul.f32 %v4036, %v3927
        %v4132 = vmul.f32 %v4036, %v3928
        %v4133 = vmul.f32 %v4036, %v3929
        %v4134 = vmul.f32 %v4036, %v3930
        %v4135 = vmul.f32 %v4036, %v3931
        %v4136 = vmul.f32 %v4036, %v3932
        %v4137 = vmul.f32 %v4036, %v3933
        %v4138 = vadd.f32 %v4014, %v4118
        %v4139 = vadd.f32 %v4015, %v4119
        %v4140 = vadd.f32 %v4016, %v4120
        %v4141 = vadd.f32 %v4017, %v4121
        %v4142 = vadd.f32 %v4018, %v4122
        %v4143 = vadd.f32 %v4019, %v4123
        %v4144 = vadd.f32 %v4020, %v4124
        %v4145 = vadd.f32 %v4021, %v4125
        %v4146 = vadd.f32 %v4022, %v4126
        %v4147 = vadd.f32 %v4023, %v4127
        %v4148 = vadd.f32 %v4024, %v4128
        %v4149 = vadd.f32 %v4025, %v4129
        %v4150 = vadd.f32 %v4026, %v4130
        %v4151 = vadd.f32 %v4027, %v4131
        %v4152 = vadd.f32 %v4028, %v4132
        %v4153 = vadd.f32 %v4029, %v4133
        %v4154 = vadd.f32 %v4030, %v4134
        %v4155 = vadd.f32 %v4031, %v4135
        %v4156 = vadd.f32 %v4032, %v4136
        %v4157 = vadd.f32 %v4033, %v4137
        %4158 = vset.pattern.permute.xlu0 13
        %4159 = vperm.xlu0 %4158, %v2387
        %v4160 = vpop.permute.xlu0 %4159
        %v4162 = vrot.slane %v2227, 5
        %v4163 = vrot.slane %v2228, 5
        %v4164 = vrot.slane %v2229, 5
        %v4165 = vrot.slane %v2230, 5
        %v4166 = vrot.slane %v2231, 5
        %v4167 = vrot.slane %v2232, 5
        %v4168 = vrot.slane %v2233, 5
        %v4169 = vrot.slane %v2234, 5
        %v4170 = vrot.slane %v2235, 5
        %v4171 = vrot.slane %v2236, 5
        %v4172 = vrot.slane %v2237, 5
        %v4173 = vrot.slane %v2238, 5
        %v4174 = vrot.slane %v2239, 5
        %v4175 = vrot.slane %v2240, 5
        %v4176 = vrot.slane %v2241, 5
        %v4177 = vrot.slane %v2242, 5
        %v4178 = vrot.slane %v2243, 5
        %v4179 = vrot.slane %v2244, 5
        %v4180 = vrot.slane %v2245, 5
        %v4181 = vrot.slane %v2246, 5
        %v4202 = vmul.f32 %v4160, %v4162
        %v4203 = vmul.f32 %v4160, %v4163
        %v4204 = vmul.f32 %v4160, %v4164
        %v4205 = vmul.f32 %v4160, %v4165
        %v4206 = vmul.f32 %v4160, %v4166
        %v4207 = vmul.f32 %v4160, %v4167
        %v4208 = vmul.f32 %v4160, %v4168
        %v4209 = vmul.f32 %v4160, %v4169
        %v4210 = vmul.f32 %v4160, %v4170
        %v4211 = vmul.f32 %v4160, %v4171
        %v4212 = vmul.f32 %v4160, %v4172
        %v4213 = vmul.f32 %v4160, %v4173
        %v4214 = vmul.f32 %v4160, %v4174
        %v4215 = vmul.f32 %v4160, %v4175
        %v4216 = vmul.f32 %v4160, %v4176
        %v4217 = vmul.f32 %v4160, %v4177
        %v4218 = vmul.f32 %v4160, %v4178
        %v4219 = vmul.f32 %v4160, %v4179
        %v4220 = vmul.f32 %v4160, %v4180
        %v4221 = vmul.f32 %v4160, %v4181
        %v4222 = vadd.f32 %v4098, %v4202
        %v4223 = vadd.f32 %v4099, %v4203
        %v4224 = vadd.f32 %v4100, %v4204
        %v4225 = vadd.f32 %v4101, %v4205
        %v4226 = vadd.f32 %v4102, %v4206
        %v4227 = vadd.f32 %v4103, %v4207
        %v4228 = vadd.f32 %v4104, %v4208
        %v4229 = vadd.f32 %v4105, %v4209
        %v4230 = vadd.f32 %v4106, %v4210
        %v4231 = vadd.f32 %v4107, %v4211
        %v4232 = vadd.f32 %v4108, %v4212
        %v4233 = vadd.f32 %v4109, %v4213
        %v4234 = vadd.f32 %v4110, %v4214
        %v4235 = vadd.f32 %v4111, %v4215
        %v4236 = vadd.f32 %v4112, %v4216
        %v4237 = vadd.f32 %v4113, %v4217
        %v4238 = vadd.f32 %v4114, %v4218
        %v4239 = vadd.f32 %v4115, %v4219
        %v4240 = vadd.f32 %v4116, %v4220
        %v4241 = vadd.f32 %v4117, %v4221
        %v4242 = vmul.f32 %v4160, %v4038
        %v4243 = vmul.f32 %v4160, %v4039
        %v4244 = vmul.f32 %v4160, %v4040
        %v4245 = vmul.f32 %v4160, %v4041
        %v4246 = vmul.f32 %v4160, %v4042
        %v4247 = vmul.f32 %v4160, %v4043
        %v4248 = vmul.f32 %v4160, %v4044
        %v4249 = vmul.f32 %v4160, %v4045
        %v4250 = vmul.f32 %v4160, %v4046
        %v4251 = vmul.f32 %v4160, %v4047
        %v4252 = vmul.f32 %v4160, %v4048
        %v4253 = vmul.f32 %v4160, %v4049
        %v4254 = vmul.f32 %v4160, %v4050
        %v4255 = vmul.f32 %v4160, %v4051
        %v4256 = vmul.f32 %v4160, %v4052
        %v4257 = vmul.f32 %v4160, %v4053
        %v4258 = vmul.f32 %v4160, %v4054
        %v4259 = vmul.f32 %v4160, %v4055
        %v4260 = vmul.f32 %v4160, %v4056
        %v4261 = vmul.f32 %v4160, %v4057
        %v4262 = vadd.f32 %v4138, %v4242
        %v4263 = vadd.f32 %v4139, %v4243
        %v4264 = vadd.f32 %v4140, %v4244
        %v4265 = vadd.f32 %v4141, %v4245
        %v4266 = vadd.f32 %v4142, %v4246
        %v4267 = vadd.f32 %v4143, %v4247
        %v4268 = vadd.f32 %v4144, %v4248
        %v4269 = vadd.f32 %v4145, %v4249
        %v4270 = vadd.f32 %v4146, %v4250
        %v4271 = vadd.f32 %v4147, %v4251
        %v4272 = vadd.f32 %v4148, %v4252
        %v4273 = vadd.f32 %v4149, %v4253
        %v4274 = vadd.f32 %v4150, %v4254
        %v4275 = vadd.f32 %v4151, %v4255
        %v4276 = vadd.f32 %v4152, %v4256
        %v4277 = vadd.f32 %v4153, %v4257
        %v4278 = vadd.f32 %v4154, %v4258
        %v4279 = vadd.f32 %v4155, %v4259
        %v4280 = vadd.f32 %v4156, %v4260
        %v4281 = vadd.f32 %v4157, %v4261
        %4282 = vset.pattern.permute.xlu0 14
        %4283 = vperm.xlu0 %4282, %v2387
        %v4284 = vpop.permute.xlu0 %4283
        %v4286 = vrot.slane %v2227, 6
        %v4287 = vrot.slane %v2228, 6
        %v4288 = vrot.slane %v2229, 6
        %v4289 = vrot.slane %v2230, 6
        %v4290 = vrot.slane %v2231, 6
        %v4291 = vrot.slane %v2232, 6
        %v4292 = vrot.slane %v2233, 6
        %v4293 = vrot.slane %v2234, 6
        %v4294 = vrot.slane %v2235, 6
        %v4295 = vrot.slane %v2236, 6
        %v4296 = vrot.slane %v2237, 6
        %v4297 = vrot.slane %v2238, 6
        %v4298 = vrot.slane %v2239, 6
        %v4299 = vrot.slane %v2240, 6
        %v4300 = vrot.slane %v2241, 6
        %v4301 = vrot.slane %v2242, 6
        %v4302 = vrot.slane %v2243, 6
        %v4303 = vrot.slane %v2244, 6
        %v4304 = vrot.slane %v2245, 6
        %v4305 = vrot.slane %v2246, 6
        %v4326 = vmul.f32 %v4284, %v4286
        %v4327 = vmul.f32 %v4284, %v4287
        %v4328 = vmul.f32 %v4284, %v4288
        %v4329 = vmul.f32 %v4284, %v4289
        %v4330 = vmul.f32 %v4284, %v4290
        %v4331 = vmul.f32 %v4284, %v4291
        %v4332 = vmul.f32 %v4284, %v4292
        %v4333 = vmul.f32 %v4284, %v4293
        %v4334 = vmul.f32 %v4284, %v4294
        %v4335 = vmul.f32 %v4284, %v4295
        %v4336 = vmul.f32 %v4284, %v4296
        %v4337 = vmul.f32 %v4284, %v4297
        %v4338 = vmul.f32 %v4284, %v4298
        %v4339 = vmul.f32 %v4284, %v4299
        %v4340 = vmul.f32 %v4284, %v4300
        %v4341 = vmul.f32 %v4284, %v4301
        %v4342 = vmul.f32 %v4284, %v4302
        %v4343 = vmul.f32 %v4284, %v4303
        %v4344 = vmul.f32 %v4284, %v4304
        %v4345 = vmul.f32 %v4284, %v4305
        %v4346 = vadd.f32 %v4222, %v4326
        %v4347 = vadd.f32 %v4223, %v4327
        %v4348 = vadd.f32 %v4224, %v4328
        %v4349 = vadd.f32 %v4225, %v4329
        %v4350 = vadd.f32 %v4226, %v4330
        %v4351 = vadd.f32 %v4227, %v4331
        %v4352 = vadd.f32 %v4228, %v4332
        %v4353 = vadd.f32 %v4229, %v4333
        %v4354 = vadd.f32 %v4230, %v4334
        %v4355 = vadd.f32 %v4231, %v4335
        %v4356 = vadd.f32 %v4232, %v4336
        %v4357 = vadd.f32 %v4233, %v4337
        %v4358 = vadd.f32 %v4234, %v4338
        %v4359 = vadd.f32 %v4235, %v4339
        %v4360 = vadd.f32 %v4236, %v4340
        %v4361 = vadd.f32 %v4237, %v4341
        %v4362 = vadd.f32 %v4238, %v4342
        %v4363 = vadd.f32 %v4239, %v4343
        %v4364 = vadd.f32 %v4240, %v4344
        %v4365 = vadd.f32 %v4241, %v4345
        %v4366 = vmul.f32 %v4284, %v4162
        %v4367 = vmul.f32 %v4284, %v4163
        %v4368 = vmul.f32 %v4284, %v4164
        %v4369 = vmul.f32 %v4284, %v4165
        %v4370 = vmul.f32 %v4284, %v4166
        %v4371 = vmul.f32 %v4284, %v4167
        %v4372 = vmul.f32 %v4284, %v4168
        %v4373 = vmul.f32 %v4284, %v4169
        %v4374 = vmul.f32 %v4284, %v4170
        %v4375 = vmul.f32 %v4284, %v4171
        %v4376 = vmul.f32 %v4284, %v4172
        %v4377 = vmul.f32 %v4284, %v4173
        %v4378 = vmul.f32 %v4284, %v4174
        %v4379 = vmul.f32 %v4284, %v4175
        %v4380 = vmul.f32 %v4284, %v4176
        %v4381 = vmul.f32 %v4284, %v4177
        %v4382 = vmul.f32 %v4284, %v4178
        %v4383 = vmul.f32 %v4284, %v4179
        %v4384 = vmul.f32 %v4284, %v4180
        %v4385 = vmul.f32 %v4284, %v4181
        %v4386 = vadd.f32 %v4262, %v4366
        %v4387 = vadd.f32 %v4263, %v4367
        %v4388 = vadd.f32 %v4264, %v4368
        %v4389 = vadd.f32 %v4265, %v4369
        %v4390 = vadd.f32 %v4266, %v4370
        %v4391 = vadd.f32 %v4267, %v4371
        %v4392 = vadd.f32 %v4268, %v4372
        %v4393 = vadd.f32 %v4269, %v4373
        %v4394 = vadd.f32 %v4270, %v4374
        %v4395 = vadd.f32 %v4271, %v4375
        %v4396 = vadd.f32 %v4272, %v4376
        %v4397 = vadd.f32 %v4273, %v4377
        %v4398 = vadd.f32 %v4274, %v4378
        %v4399 = vadd.f32 %v4275, %v4379
        %v4400 = vadd.f32 %v4276, %v4380
        %v4401 = vadd.f32 %v4277, %v4381
        %v4402 = vadd.f32 %v4278, %v4382
        %v4403 = vadd.f32 %v4279, %v4383
        %v4404 = vadd.f32 %v4280, %v4384
        %v4405 = vadd.f32 %v4281, %v4385
        %4406 = vset.pattern.permute.xlu0 15
        %4407 = vperm.xlu0 %4406, %v2387
        %v4408 = vpop.permute.xlu0 %4407
        %v4410 = vmul.f32 %v4408, %v3582
        %v4411 = vmul.f32 %v4408, %v3583
        %v4412 = vmul.f32 %v4408, %v3584
        %v4413 = vmul.f32 %v4408, %v3585
        %v4414 = vmul.f32 %v4408, %v3586
        %v4415 = vmul.f32 %v4408, %v3587
        %v4416 = vmul.f32 %v4408, %v3588
        %v4417 = vmul.f32 %v4408, %v3589
        %v4418 = vmul.f32 %v4408, %v3590
        %v4419 = vmul.f32 %v4408, %v3591
        %v4420 = vmul.f32 %v4408, %v3592
        %v4421 = vmul.f32 %v4408, %v3593
        %v4422 = vmul.f32 %v4408, %v3594
        %v4423 = vmul.f32 %v4408, %v3595
        %v4424 = vmul.f32 %v4408, %v3596
        %v4425 = vmul.f32 %v4408, %v3597
        %v4426 = vmul.f32 %v4408, %v3598
        %v4427 = vmul.f32 %v4408, %v3599
        %v4428 = vmul.f32 %v4408, %v3600
        %v4429 = vmul.f32 %v4408, %v3601
        %v4430 = vadd.f32 %v4346, %v4410
        %v4431 = vadd.f32 %v4347, %v4411
        %v4432 = vadd.f32 %v4348, %v4412
        %v4433 = vadd.f32 %v4349, %v4413
        %v4434 = vadd.f32 %v4350, %v4414
        %v4435 = vadd.f32 %v4351, %v4415
        %v4436 = vadd.f32 %v4352, %v4416
        %v4437 = vadd.f32 %v4353, %v4417
        %v4438 = vadd.f32 %v4354, %v4418
        %v4439 = vadd.f32 %v4355, %v4419
        %v4440 = vadd.f32 %v4356, %v4420
        %v4441 = vadd.f32 %v4357, %v4421
        %v4442 = vadd.f32 %v4358, %v4422
        %v4443 = vadd.f32 %v4359, %v4423
        %v4444 = vadd.f32 %v4360, %v4424
        %v4445 = vadd.f32 %v4361, %v4425
        %v4446 = vadd.f32 %v4362, %v4426
        %v4447 = vadd.f32 %v4363, %v4427
        %v4448 = vadd.f32 %v4364, %v4428
        %v4449 = vadd.f32 %v4365, %v4429
        %v4450 = vmul.f32 %v4408, %v4286
        %v4451 = vmul.f32 %v4408, %v4287
        %v4452 = vmul.f32 %v4408, %v4288
        %v4453 = vmul.f32 %v4408, %v4289
        %v4454 = vmul.f32 %v4408, %v4290
        %v4455 = vmul.f32 %v4408, %v4291
        %v4456 = vmul.f32 %v4408, %v4292
        %v4457 = vmul.f32 %v4408, %v4293
        %v4458 = vmul.f32 %v4408, %v4294
        %v4459 = vmul.f32 %v4408, %v4295
        %v4460 = vmul.f32 %v4408, %v4296
        %v4461 = vmul.f32 %v4408, %v4297
        %v4462 = vmul.f32 %v4408, %v4298
        %v4463 = vmul.f32 %v4408, %v4299
        %v4464 = vmul.f32 %v4408, %v4300
        %v4465 = vmul.f32 %v4408, %v4301
        %v4466 = vmul.f32 %v4408, %v4302
        %v4467 = vmul.f32 %v4408, %v4303
        %v4468 = vmul.f32 %v4408, %v4304
        %v4469 = vmul.f32 %v4408, %v4305
        %v4470 = vadd.f32 %v4386, %v4450
        %v4471 = vadd.f32 %v4387, %v4451
        %v4472 = vadd.f32 %v4388, %v4452
        %v4473 = vadd.f32 %v4389, %v4453
        %v4474 = vadd.f32 %v4390, %v4454
        %v4475 = vadd.f32 %v4391, %v4455
        %v4476 = vadd.f32 %v4392, %v4456
        %v4477 = vadd.f32 %v4393, %v4457
        %v4478 = vadd.f32 %v4394, %v4458
        %v4479 = vadd.f32 %v4395, %v4459
        %v4480 = vadd.f32 %v4396, %v4460
        %v4481 = vadd.f32 %v4397, %v4461
        %v4482 = vadd.f32 %v4398, %v4462
        %v4483 = vadd.f32 %v4399, %v4463
        %v4484 = vadd.f32 %v4400, %v4464
        %v4485 = vadd.f32 %v4401, %v4465
        %v4486 = vadd.f32 %v4402, %v4466
        %v4487 = vadd.f32 %v4403, %v4467
        %v4488 = vadd.f32 %v4404, %v4468
        %v4489 = vadd.f32 %v4405, %v4469
        %4490 = vset.pattern.permute.xlu0 16
        %4491 = vperm.xlu0 %4490, %v2387
        %v4492 = vpop.permute.xlu0 %4491
        %v4494 = vmul.f32 %v4492, %v2247
        %v4495 = vmul.f32 %v4492, %v2248
        %v4496 = vmul.f32 %v4492, %v2249
        %v4497 = vmul.f32 %v4492, %v2250
        %v4498 = vmul.f32 %v4492, %v2251
        %v4499 = vmul.f32 %v4492, %v2252
        %v4500 = vmul.f32 %v4492, %v2253
        %v4501 = vmul.f32 %v4492, %v2254
        %v4502 = vmul.f32 %v4492, %v2255
        %v4503 = vmul.f32 %v4492, %v2256
        %v4504 = vmul.f32 %v4492, %v2257
        %v4505 = vmul.f32 %v4492, %v2258
        %v4506 = vmul.f32 %v4492, %v2259
        %v4507 = vmul.f32 %v4492, %v2260
        %v4508 = vmul.f32 %v4492, %v2261
        %v4509 = vmul.f32 %v4492, %v2262
        %v4510 = vmul.f32 %v4492, %v2263
        %v4511 = vmul.f32 %v4492, %v2264
        %v4512 = vmul.f32 %v4492, %v2265
        %v4513 = vmul.f32 %v4492, %v2266
        %v4514 = vadd.f32 %v4430, %v4494
        %v4515 = vadd.f32 %v4431, %v4495
        %v4516 = vadd.f32 %v4432, %v4496
        %v4517 = vadd.f32 %v4433, %v4497
        %v4518 = vadd.f32 %v4434, %v4498
        %v4519 = vadd.f32 %v4435, %v4499
        %v4520 = vadd.f32 %v4436, %v4500
        %v4521 = vadd.f32 %v4437, %v4501
        %v4522 = vadd.f32 %v4438, %v4502
        %v4523 = vadd.f32 %v4439, %v4503
        %v4524 = vadd.f32 %v4440, %v4504
        %v4525 = vadd.f32 %v4441, %v4505
        %v4526 = vadd.f32 %v4442, %v4506
        %v4527 = vadd.f32 %v4443, %v4507
        %v4528 = vadd.f32 %v4444, %v4508
        %v4529 = vadd.f32 %v4445, %v4509
        %v4530 = vadd.f32 %v4446, %v4510
        %v4531 = vadd.f32 %v4447, %v4511
        %v4532 = vadd.f32 %v4448, %v4512
        %v4533 = vadd.f32 %v4449, %v4513
        %v4554 = vrot.slane %v2247, 7
        %v4555 = vrot.slane %v2248, 7
        %v4556 = vrot.slane %v2249, 7
        %v4557 = vrot.slane %v2250, 7
        %v4558 = vrot.slane %v2251, 7
        %v4559 = vrot.slane %v2252, 7
        %v4560 = vrot.slane %v2253, 7
        %v4561 = vrot.slane %v2254, 7
        %v4562 = vrot.slane %v2255, 7
        %v4563 = vrot.slane %v2256, 7
        %v4564 = vrot.slane %v2257, 7
        %v4565 = vrot.slane %v2258, 7
        %v4566 = vrot.slane %v2259, 7
        %v4567 = vrot.slane %v2260, 7
        %v4568 = vrot.slane %v2261, 7
        %v4569 = vrot.slane %v2262, 7
        %v4570 = vrot.slane %v2263, 7
        %v4571 = vrot.slane %v2264, 7
        %v4572 = vrot.slane %v2265, 7
        %v4573 = vrot.slane %v2266, 7
        %v4594 = vmul.f32 %v4492, %v4554
        %v4595 = vmul.f32 %v4492, %v4555
        %v4596 = vmul.f32 %v4492, %v4556
        %v4597 = vmul.f32 %v4492, %v4557
        %v4598 = vmul.f32 %v4492, %v4558
        %v4599 = vmul.f32 %v4492, %v4559
        %v4600 = vmul.f32 %v4492, %v4560
        %v4601 = vmul.f32 %v4492, %v4561
        %v4602 = vmul.f32 %v4492, %v4562
        %v4603 = vmul.f32 %v4492, %v4563
        %v4604 = vmul.f32 %v4492, %v4564
        %v4605 = vmul.f32 %v4492, %v4565
        %v4606 = vmul.f32 %v4492, %v4566
        %v4607 = vmul.f32 %v4492, %v4567
        %v4608 = vmul.f32 %v4492, %v4568
        %v4609 = vmul.f32 %v4492, %v4569
        %v4610 = vmul.f32 %v4492, %v4570
        %v4611 = vmul.f32 %v4492, %v4571
        %v4612 = vmul.f32 %v4492, %v4572
        %v4613 = vmul.f32 %v4492, %v4573
        %v4614 = vadd.f32 %v4470, %v4594
        %v4615 = vadd.f32 %v4471, %v4595
        %v4616 = vadd.f32 %v4472, %v4596
        %v4617 = vadd.f32 %v4473, %v4597
        %v4618 = vadd.f32 %v4474, %v4598
        %v4619 = vadd.f32 %v4475, %v4599
        %v4620 = vadd.f32 %v4476, %v4600
        %v4621 = vadd.f32 %v4477, %v4601
        %v4622 = vadd.f32 %v4478, %v4602
        %v4623 = vadd.f32 %v4479, %v4603
        %v4624 = vadd.f32 %v4480, %v4604
        %v4625 = vadd.f32 %v4481, %v4605
        %v4626 = vadd.f32 %v4482, %v4606
        %v4627 = vadd.f32 %v4483, %v4607
        %v4628 = vadd.f32 %v4484, %v4608
        %v4629 = vadd.f32 %v4485, %v4609
        %v4630 = vadd.f32 %v4486, %v4610
        %v4631 = vadd.f32 %v4487, %v4611
        %v4632 = vadd.f32 %v4488, %v4612
        %v4633 = vadd.f32 %v4489, %v4613
        %4634 = vset.pattern.permute.xlu0 17
        %4635 = vperm.xlu0 %4634, %v2387
        %v4636 = vpop.permute.xlu0 %4635
        %v4638 = vrot.slane %v2247, 1
        %v4639 = vrot.slane %v2248, 1
        %v4640 = vrot.slane %v2249, 1
        %v4641 = vrot.slane %v2250, 1
        %v4642 = vrot.slane %v2251, 1
        %v4643 = vrot.slane %v2252, 1
        %v4644 = vrot.slane %v2253, 1
        %v4645 = vrot.slane %v2254, 1
        %v4646 = vrot.slane %v2255, 1
        %v4647 = vrot.slane %v2256, 1
        %v4648 = vrot.slane %v2257, 1
        %v4649 = vrot.slane %v2258, 1
        %v4650 = vrot.slane %v2259, 1
        %v4651 = vrot.slane %v2260, 1
        %v4652 = vrot.slane %v2261, 1
        %v4653 = vrot.slane %v2262, 1
        %v4654 = vrot.slane %v2263, 1
        %v4655 = vrot.slane %v2264, 1
        %v4656 = vrot.slane %v2265, 1
        %v4657 = vrot.slane %v2266, 1
        %v4678 = vmul.f32 %v4636, %v4638
        %v4679 = vmul.f32 %v4636, %v4639
        %v4680 = vmul.f32 %v4636, %v4640
        %v4681 = vmul.f32 %v4636, %v4641
        %v4682 = vmul.f32 %v4636, %v4642
        %v4683 = vmul.f32 %v4636, %v4643
        %v4684 = vmul.f32 %v4636, %v4644
        %v4685 = vmul.f32 %v4636, %v4645
        %v4686 = vmul.f32 %v4636, %v4646
        %v4687 = vmul.f32 %v4636, %v4647
        %v4688 = vmul.f32 %v4636, %v4648
        %v4689 = vmul.f32 %v4636, %v4649
        %v4690 = vmul.f32 %v4636, %v4650
        %v4691 = vmul.f32 %v4636, %v4651
        %v4692 = vmul.f32 %v4636, %v4652
        %v4693 = vmul.f32 %v4636, %v4653
        %v4694 = vmul.f32 %v4636, %v4654
        %v4695 = vmul.f32 %v4636, %v4655
        %v4696 = vmul.f32 %v4636, %v4656
        %v4697 = vmul.f32 %v4636, %v4657
        %v4698 = vadd.f32 %v4514, %v4678
        %v4699 = vadd.f32 %v4515, %v4679
        %v4700 = vadd.f32 %v4516, %v4680
        %v4701 = vadd.f32 %v4517, %v4681
        %v4702 = vadd.f32 %v4518, %v4682
        %v4703 = vadd.f32 %v4519, %v4683
        %v4704 = vadd.f32 %v4520, %v4684
        %v4705 = vadd.f32 %v4521, %v4685
        %v4706 = vadd.f32 %v4522, %v4686
        %v4707 = vadd.f32 %v4523, %v4687
        %v4708 = vadd.f32 %v4524, %v4688
        %v4709 = vadd.f32 %v4525, %v4689
        %v4710 = vadd.f32 %v4526, %v4690
        %v4711 = vadd.f32 %v4527, %v4691
        %v4712 = vadd.f32 %v4528, %v4692
        %v4713 = vadd.f32 %v4529, %v4693
        %v4714 = vadd.f32 %v4530, %v4694
        %v4715 = vadd.f32 %v4531, %v4695
        %v4716 = vadd.f32 %v4532, %v4696
        %v4717 = vadd.f32 %v4533, %v4697
        %v4718 = vmul.f32 %v4636, %v2247
        %v4719 = vmul.f32 %v4636, %v2248
        %v4720 = vmul.f32 %v4636, %v2249
        %v4721 = vmul.f32 %v4636, %v2250
        %v4722 = vmul.f32 %v4636, %v2251
        %v4723 = vmul.f32 %v4636, %v2252
        %v4724 = vmul.f32 %v4636, %v2253
        %v4725 = vmul.f32 %v4636, %v2254
        %v4726 = vmul.f32 %v4636, %v2255
        %v4727 = vmul.f32 %v4636, %v2256
        %v4728 = vmul.f32 %v4636, %v2257
        %v4729 = vmul.f32 %v4636, %v2258
        %v4730 = vmul.f32 %v4636, %v2259
        %v4731 = vmul.f32 %v4636, %v2260
        %v4732 = vmul.f32 %v4636, %v2261
        %v4733 = vmul.f32 %v4636, %v2262
        %v4734 = vmul.f32 %v4636, %v2263
        %v4735 = vmul.f32 %v4636, %v2264
        %v4736 = vmul.f32 %v4636, %v2265
        %v4737 = vmul.f32 %v4636, %v2266
        %v4738 = vadd.f32 %v4614, %v4718
        %v4739 = vadd.f32 %v4615, %v4719
        %v4740 = vadd.f32 %v4616, %v4720
        %v4741 = vadd.f32 %v4617, %v4721
        %v4742 = vadd.f32 %v4618, %v4722
        %v4743 = vadd.f32 %v4619, %v4723
        %v4744 = vadd.f32 %v4620, %v4724
        %v4745 = vadd.f32 %v4621, %v4725
        %v4746 = vadd.f32 %v4622, %v4726
        %v4747 = vadd.f32 %v4623, %v4727
        %v4748 = vadd.f32 %v4624, %v4728
        %v4749 = vadd.f32 %v4625, %v4729
        %v4750 = vadd.f32 %v4626, %v4730
        %v4751 = vadd.f32 %v4627, %v4731
        %v4752 = vadd.f32 %v4628, %v4732
        %v4753 = vadd.f32 %v4629, %v4733
        %v4754 = vadd.f32 %v4630, %v4734
        %v4755 = vadd.f32 %v4631, %v4735
        %v4756 = vadd.f32 %v4632, %v4736
        %v4757 = vadd.f32 %v4633, %v4737
        %4758 = vset.pattern.permute.xlu0 18
        %4759 = vperm.xlu0 %4758, %v2387
        %v4760 = vpop.permute.xlu0 %4759
        %v4762 = vrot.slane %v2247, 2
        %v4763 = vrot.slane %v2248, 2
        %v4764 = vrot.slane %v2249, 2
        %v4765 = vrot.slane %v2250, 2
        %v4766 = vrot.slane %v2251, 2
        %v4767 = vrot.slane %v2252, 2
        %v4768 = vrot.slane %v2253, 2
        %v4769 = vrot.slane %v2254, 2
        %v4770 = vrot.slane %v2255, 2
        %v4771 = vrot.slane %v2256, 2
        %v4772 = vrot.slane %v2257, 2
        %v4773 = vrot.slane %v2258, 2
        %v4774 = vrot.slane %v2259, 2
        %v4775 = vrot.slane %v2260, 2
        %v4776 = vrot.slane %v2261, 2
        %v4777 = vrot.slane %v2262, 2
        %v4778 = vrot.slane %v2263, 2
        %v4779 = vrot.slane %v2264, 2
        %v4780 = vrot.slane %v2265, 2
        %v4781 = vrot.slane %v2266, 2
        %v4802 = vmul.f32 %v4760, %v4762
        %v4803 = vmul.f32 %v4760, %v4763
        %v4804 = vmul.f32 %v4760, %v4764
        %v4805 = vmul.f32 %v4760, %v4765
        %v4806 = vmul.f32 %v4760, %v4766
        %v4807 = vmul.f32 %v4760, %v4767
        %v4808 = vmul.f32 %v4760, %v4768
        %v4809 = vmul.f32 %v4760, %v4769
        %v4810 = vmul.f32 %v4760, %v4770
        %v4811 = vmul.f32 %v4760, %v4771
        %v4812 = vmul.f32 %v4760, %v4772
        %v4813 = vmul.f32 %v4760, %v4773
        %v4814 = vmul.f32 %v4760, %v4774
        %v4815 = vmul.f32 %v4760, %v4775
        %v4816 = vmul.f32 %v4760, %v4776
        %v4817 = vmul.f32 %v4760, %v4777
        %v4818 = vmul.f32 %v4760, %v4778
        %v4819 = vmul.f32 %v4760, %v4779
        %v4820 = vmul.f32 %v4760, %v4780
        %v4821 = vmul.f32 %v4760, %v4781
        %v4822 = vadd.f32 %v4698, %v4802
        %v4823 = vadd.f32 %v4699, %v4803
        %v4824 = vadd.f32 %v4700, %v4804
        %v4825 = vadd.f32 %v4701, %v4805
        %v4826 = vadd.f32 %v4702, %v4806
        %v4827 = vadd.f32 %v4703, %v4807
        %v4828 = vadd.f32 %v4704, %v4808
        %v4829 = vadd.f32 %v4705, %v4809
        %v4830 = vadd.f32 %v4706, %v4810
        %v4831 = vadd.f32 %v4707, %v4811
        %v4832 = vadd.f32 %v4708, %v4812
        %v4833 = vadd.f32 %v4709, %v4813
        %v4834 = vadd.f32 %v4710, %v4814
        %v4835 = vadd.f32 %v4711, %v4815
        %v4836 = vadd.f32 %v4712, %v4816
        %v4837 = vadd.f32 %v4713, %v4817
        %v4838 = vadd.f32 %v4714, %v4818
        %v4839 = vadd.f32 %v4715, %v4819
        %v4840 = vadd.f32 %v4716, %v4820
        %v4841 = vadd.f32 %v4717, %v4821
        %v4842 = vmul.f32 %v4760, %v4638
        %v4843 = vmul.f32 %v4760, %v4639
        %v4844 = vmul.f32 %v4760, %v4640
        %v4845 = vmul.f32 %v4760, %v4641
        %v4846 = vmul.f32 %v4760, %v4642
        %v4847 = vmul.f32 %v4760, %v4643
        %v4848 = vmul.f32 %v4760, %v4644
        %v4849 = vmul.f32 %v4760, %v4645
        %v4850 = vmul.f32 %v4760, %v4646
        %v4851 = vmul.f32 %v4760, %v4647
        %v4852 = vmul.f32 %v4760, %v4648
        %v4853 = vmul.f32 %v4760, %v4649
        %v4854 = vmul.f32 %v4760, %v4650
        %v4855 = vmul.f32 %v4760, %v4651
        %v4856 = vmul.f32 %v4760, %v4652
        %v4857 = vmul.f32 %v4760, %v4653
        %v4858 = vmul.f32 %v4760, %v4654
        %v4859 = vmul.f32 %v4760, %v4655
        %v4860 = vmul.f32 %v4760, %v4656
        %v4861 = vmul.f32 %v4760, %v4657
        %v4862 = vadd.f32 %v4738, %v4842
        %v4863 = vadd.f32 %v4739, %v4843
        %v4864 = vadd.f32 %v4740, %v4844
        %v4865 = vadd.f32 %v4741, %v4845
        %v4866 = vadd.f32 %v4742, %v4846
        %v4867 = vadd.f32 %v4743, %v4847
        %v4868 = vadd.f32 %v4744, %v4848
        %v4869 = vadd.f32 %v4745, %v4849
        %v4870 = vadd.f32 %v4746, %v4850
        %v4871 = vadd.f32 %v4747, %v4851
        %v4872 = vadd.f32 %v4748, %v4852
        %v4873 = vadd.f32 %v4749, %v4853
        %v4874 = vadd.f32 %v4750, %v4854
        %v4875 = vadd.f32 %v4751, %v4855
        %v4876 = vadd.f32 %v4752, %v4856
        %v4877 = vadd.f32 %v4753, %v4857
        %v4878 = vadd.f32 %v4754, %v4858
        %v4879 = vadd.f32 %v4755, %v4859
        %v4880 = vadd.f32 %v4756, %v4860
        %v4881 = vadd.f32 %v4757, %v4861
        %4882 = vset.pattern.permute.xlu0 19
        %4883 = vperm.xlu0 %4882, %v2387
        %v4884 = vpop.permute.xlu0 %4883
        %v4886 = vrot.slane %v2247, 3
        %v4887 = vrot.slane %v2248, 3
        %v4888 = vrot.slane %v2249, 3
        %v4889 = vrot.slane %v2250, 3
        %v4890 = vrot.slane %v2251, 3
        %v4891 = vrot.slane %v2252, 3
        %v4892 = vrot.slane %v2253, 3
        %v4893 = vrot.slane %v2254, 3
        %v4894 = vrot.slane %v2255, 3
        %v4895 = vrot.slane %v2256, 3
        %v4896 = vrot.slane %v2257, 3
        %v4897 = vrot.slane %v2258, 3
        %v4898 = vrot.slane %v2259, 3
        %v4899 = vrot.slane %v2260, 3
        %v4900 = vrot.slane %v2261, 3
        %v4901 = vrot.slane %v2262, 3
        %v4902 = vrot.slane %v2263, 3
        %v4903 = vrot.slane %v2264, 3
        %v4904 = vrot.slane %v2265, 3
        %v4905 = vrot.slane %v2266, 3
        %v4926 = vmul.f32 %v4884, %v4886
        %v4927 = vmul.f32 %v4884, %v4887
        %v4928 = vmul.f32 %v4884, %v4888
        %v4929 = vmul.f32 %v4884, %v4889
        %v4930 = vmul.f32 %v4884, %v4890
        %v4931 = vmul.f32 %v4884, %v4891
        %v4932 = vmul.f32 %v4884, %v4892
        %v4933 = vmul.f32 %v4884, %v4893
        %v4934 = vmul.f32 %v4884, %v4894
        %v4935 = vmul.f32 %v4884, %v4895
        %v4936 = vmul.f32 %v4884, %v4896
        %v4937 = vmul.f32 %v4884, %v4897
        %v4938 = vmul.f32 %v4884, %v4898
        %v4939 = vmul.f32 %v4884, %v4899
        %v4940 = vmul.f32 %v4884, %v4900
        %v4941 = vmul.f32 %v4884, %v4901
        %v4942 = vmul.f32 %v4884, %v4902
        %v4943 = vmul.f32 %v4884, %v4903
        %v4944 = vmul.f32 %v4884, %v4904
        %v4945 = vmul.f32 %v4884, %v4905
        %v4946 = vadd.f32 %v4822, %v4926
        %v4947 = vadd.f32 %v4823, %v4927
        %v4948 = vadd.f32 %v4824, %v4928
        %v4949 = vadd.f32 %v4825, %v4929
        %v4950 = vadd.f32 %v4826, %v4930
        %v4951 = vadd.f32 %v4827, %v4931
        %v4952 = vadd.f32 %v4828, %v4932
        %v4953 = vadd.f32 %v4829, %v4933
        %v4954 = vadd.f32 %v4830, %v4934
        %v4955 = vadd.f32 %v4831, %v4935
        %v4956 = vadd.f32 %v4832, %v4936
        %v4957 = vadd.f32 %v4833, %v4937
        %v4958 = vadd.f32 %v4834, %v4938
        %v4959 = vadd.f32 %v4835, %v4939
        %v4960 = vadd.f32 %v4836, %v4940
        %v4961 = vadd.f32 %v4837, %v4941
        %v4962 = vadd.f32 %v4838, %v4942
        %v4963 = vadd.f32 %v4839, %v4943
        %v4964 = vadd.f32 %v4840, %v4944
        %v4965 = vadd.f32 %v4841, %v4945
        %v4966 = vmul.f32 %v4884, %v4762
        %v4967 = vmul.f32 %v4884, %v4763
        %v4968 = vmul.f32 %v4884, %v4764
        %v4969 = vmul.f32 %v4884, %v4765
        %v4970 = vmul.f32 %v4884, %v4766
        %v4971 = vmul.f32 %v4884, %v4767
        %v4972 = vmul.f32 %v4884, %v4768
        %v4973 = vmul.f32 %v4884, %v4769
        %v4974 = vmul.f32 %v4884, %v4770
        %v4975 = vmul.f32 %v4884, %v4771
        %v4976 = vmul.f32 %v4884, %v4772
        %v4977 = vmul.f32 %v4884, %v4773
        %v4978 = vmul.f32 %v4884, %v4774
        %v4979 = vmul.f32 %v4884, %v4775
        %v4980 = vmul.f32 %v4884, %v4776
        %v4981 = vmul.f32 %v4884, %v4777
        %v4982 = vmul.f32 %v4884, %v4778
        %v4983 = vmul.f32 %v4884, %v4779
        %v4984 = vmul.f32 %v4884, %v4780
        %v4985 = vmul.f32 %v4884, %v4781
        %v4986 = vadd.f32 %v4862, %v4966
        %v4987 = vadd.f32 %v4863, %v4967
        %v4988 = vadd.f32 %v4864, %v4968
        %v4989 = vadd.f32 %v4865, %v4969
        %v4990 = vadd.f32 %v4866, %v4970
        %v4991 = vadd.f32 %v4867, %v4971
        %v4992 = vadd.f32 %v4868, %v4972
        %v4993 = vadd.f32 %v4869, %v4973
        %v4994 = vadd.f32 %v4870, %v4974
        %v4995 = vadd.f32 %v4871, %v4975
        %v4996 = vadd.f32 %v4872, %v4976
        %v4997 = vadd.f32 %v4873, %v4977
        %v4998 = vadd.f32 %v4874, %v4978
        %v4999 = vadd.f32 %v4875, %v4979
        %v5000 = vadd.f32 %v4876, %v4980
        %v5001 = vadd.f32 %v4877, %v4981
        %v5002 = vadd.f32 %v4878, %v4982
        %v5003 = vadd.f32 %v4879, %v4983
        %v5004 = vadd.f32 %v4880, %v4984
        %v5005 = vadd.f32 %v4881, %v4985
        %v5006 = vmul.f32 %v4946, 0.5
        %v5007 = vmul.f32 %v4947, 0.5
        %v5008 = vmul.f32 %v4948, 0.5
        %v5009 = vmul.f32 %v4949, 0.5
        %v5010 = vmul.f32 %v4950, 0.5
        %v5011 = vmul.f32 %v4951, 0.5
        %v5012 = vmul.f32 %v4952, 0.5
        %v5013 = vmul.f32 %v4953, 0.5
        %v5014 = vmul.f32 %v4954, 0.5
        %v5015 = vmul.f32 %v4955, 0.5
        %v5016 = vmul.f32 %v4956, 0.5
        %v5017 = vmul.f32 %v4957, 0.5
        %v5018 = vmul.f32 %v4958, 0.5
        %v5019 = vmul.f32 %v4959, 0.5
        %v5020 = vmul.f32 %v4960, 0.5
        %v5021 = vmul.f32 %v4961, 0.5
        %v5022 = vmul.f32 %v4962, 0.5
        %v5023 = vmul.f32 %v4963, 0.5
        %v5024 = vmul.f32 %v4964, 0.5
        %v5025 = vmul.f32 %v4965, 0.5
        %v5026 = vtanh.pop %v5006
        %v5027 = vtanh.pop %v5007
        %v5028 = vtanh.pop %v5008
        %v5029 = vtanh.pop %v5009
        %v5030 = vtanh.pop %v5010
        %v5031 = vtanh.pop %v5011
        %v5032 = vtanh.pop %v5012
        %v5033 = vtanh.pop %v5013
        %v5034 = vtanh.pop %v5014
        %v5035 = vtanh.pop %v5015
        %v5036 = vtanh.pop %v5016
        %v5037 = vtanh.pop %v5017
        %v5038 = vtanh.pop %v5018
        %v5039 = vtanh.pop %v5019
        %v5040 = vtanh.pop %v5020
        %v5041 = vtanh.pop %v5021
        %v5042 = vtanh.pop %v5022
        %v5043 = vtanh.pop %v5023
        %v5044 = vtanh.pop %v5024
        %v5045 = vtanh.pop %v5025
        %v5046 = vmul.f32 %v5026, 0.5
        %v5047 = vmul.f32 %v5027, 0.5
        %v5048 = vmul.f32 %v5028, 0.5
        %v5049 = vmul.f32 %v5029, 0.5
        %v5050 = vmul.f32 %v5030, 0.5
        %v5051 = vmul.f32 %v5031, 0.5
        %v5052 = vmul.f32 %v5032, 0.5
        %v5053 = vmul.f32 %v5033, 0.5
        %v5054 = vmul.f32 %v5034, 0.5
        %v5055 = vmul.f32 %v5035, 0.5
        %v5056 = vmul.f32 %v5036, 0.5
        %v5057 = vmul.f32 %v5037, 0.5
        %v5058 = vmul.f32 %v5038, 0.5
        %v5059 = vmul.f32 %v5039, 0.5
        %v5060 = vmul.f32 %v5040, 0.5
        %v5061 = vmul.f32 %v5041, 0.5
        %v5062 = vmul.f32 %v5042, 0.5
        %v5063 = vmul.f32 %v5043, 0.5
        %v5064 = vmul.f32 %v5044, 0.5
        %v5065 = vmul.f32 %v5045, 0.5
        %v5066 = vadd.f32 %v5046, 0.5
        %v5067 = vadd.f32 %v5047, 0.5
        %v5068 = vadd.f32 %v5048, 0.5
        %v5069 = vadd.f32 %v5049, 0.5
        %v5070 = vadd.f32 %v5050, 0.5
        %v5071 = vadd.f32 %v5051, 0.5
        %v5072 = vadd.f32 %v5052, 0.5
        %v5073 = vadd.f32 %v5053, 0.5
        %v5074 = vadd.f32 %v5054, 0.5
        %v5075 = vadd.f32 %v5055, 0.5
        %v5076 = vadd.f32 %v5056, 0.5
        %v5077 = vadd.f32 %v5057, 0.5
        %v5078 = vadd.f32 %v5058, 0.5
        %v5079 = vadd.f32 %v5059, 0.5
        %v5080 = vadd.f32 %v5060, 0.5
        %v5081 = vadd.f32 %v5061, 0.5
        %v5082 = vadd.f32 %v5062, 0.5
        %v5083 = vadd.f32 %v5063, 0.5
        %v5084 = vadd.f32 %v5064, 0.5
        %v5085 = vadd.f32 %v5065, 0.5
        %v5086 = vmul.f32 %v5066, %v2405
        %v5087 = vmul.f32 %v5067, %v2409
        %v5088 = vmul.f32 %v5068, %v2413
        %v5089 = vmul.f32 %v5069, %v2417
        %v5090 = vmul.f32 %v5070, %v2421
        %v5091 = vmul.f32 %v5071, %v2425
        %v5092 = vmul.f32 %v5072, %v2429
        %v5093 = vmul.f32 %v5073, %v2433
        %v5094 = vmul.f32 %v5074, %v2437
        %v5095 = vmul.f32 %v5075, %v2441
        %v5096 = vmul.f32 %v5076, %v2445
        %v5097 = vmul.f32 %v5077, %v2449
        %v5098 = vmul.f32 %v5078, %v2453
        %v5099 = vmul.f32 %v5079, %v2457
        %v5100 = vmul.f32 %v5080, %v2461
        %v5101 = vmul.f32 %v5081, %v2465
        %v5102 = vmul.f32 %v5082, %v2469
        %v5103 = vmul.f32 %v5083, %v2473
        %v5104 = vmul.f32 %v5084, %v2477
        %v5105 = vmul.f32 %v5085, %v2481
        %v5106 = vmul.f32 %v4986, 0.5
        %v5107 = vmul.f32 %v4987, 0.5
        %v5108 = vmul.f32 %v4988, 0.5
        %v5109 = vmul.f32 %v4989, 0.5
        %v5110 = vmul.f32 %v4990, 0.5
        %v5111 = vmul.f32 %v4991, 0.5
        %v5112 = vmul.f32 %v4992, 0.5
        %v5113 = vmul.f32 %v4993, 0.5
        %v5114 = vmul.f32 %v4994, 0.5
        %v5115 = vmul.f32 %v4995, 0.5
        %v5116 = vmul.f32 %v4996, 0.5
        %v5117 = vmul.f32 %v4997, 0.5
        %v5118 = vmul.f32 %v4998, 0.5
        %v5119 = vmul.f32 %v4999, 0.5
        %v5120 = vmul.f32 %v5000, 0.5
        %v5121 = vmul.f32 %v5001, 0.5
        %v5122 = vmul.f32 %v5002, 0.5
        %v5123 = vmul.f32 %v5003, 0.5
        %v5124 = vmul.f32 %v5004, 0.5
        %v5125 = vmul.f32 %v5005, 0.5
        %v5126 = vtanh.pop %v5106
        %v5127 = vtanh.pop %v5107
        %v5128 = vtanh.pop %v5108
        %v5129 = vtanh.pop %v5109
        %v5130 = vtanh.pop %v5110
        %v5131 = vtanh.pop %v5111
        %v5132 = vtanh.pop %v5112
        %v5133 = vtanh.pop %v5113
        %v5134 = vtanh.pop %v5114
        %v5135 = vtanh.pop %v5115
        %v5136 = vtanh.pop %v5116
        %v5137 = vtanh.pop %v5117
        %v5138 = vtanh.pop %v5118
        %v5139 = vtanh.pop %v5119
        %v5140 = vtanh.pop %v5120
        %v5141 = vtanh.pop %v5121
        %v5142 = vtanh.pop %v5122
        %v5143 = vtanh.pop %v5123
        %v5144 = vtanh.pop %v5124
        %v5145 = vtanh.pop %v5125
        %v5146 = vmul.f32 %v5126, 0.5
        %v5147 = vmul.f32 %v5127, 0.5
        %v5148 = vmul.f32 %v5128, 0.5
        %v5149 = vmul.f32 %v5129, 0.5
        %v5150 = vmul.f32 %v5130, 0.5
        %v5151 = vmul.f32 %v5131, 0.5
        %v5152 = vmul.f32 %v5132, 0.5
        %v5153 = vmul.f32 %v5133, 0.5
        %v5154 = vmul.f32 %v5134, 0.5
        %v5155 = vmul.f32 %v5135, 0.5
        %v5156 = vmul.f32 %v5136, 0.5
        %v5157 = vmul.f32 %v5137, 0.5
        %v5158 = vmul.f32 %v5138, 0.5
        %v5159 = vmul.f32 %v5139, 0.5
        %v5160 = vmul.f32 %v5140, 0.5
        %v5161 = vmul.f32 %v5141, 0.5
        %v5162 = vmul.f32 %v5142, 0.5
        %v5163 = vmul.f32 %v5143, 0.5
        %v5164 = vmul.f32 %v5144, 0.5
        %v5165 = vmul.f32 %v5145, 0.5
        %v5166 = vadd.f32 %v5146, 0.5
        %v5167 = vadd.f32 %v5147, 0.5
        %v5168 = vadd.f32 %v5148, 0.5
        %v5169 = vadd.f32 %v5149, 0.5
        %v5170 = vadd.f32 %v5150, 0.5
        %v5171 = vadd.f32 %v5151, 0.5
        %v5172 = vadd.f32 %v5152, 0.5
        %v5173 = vadd.f32 %v5153, 0.5
        %v5174 = vadd.f32 %v5154, 0.5
        %v5175 = vadd.f32 %v5155, 0.5
        %v5176 = vadd.f32 %v5156, 0.5
        %v5177 = vadd.f32 %v5157, 0.5
        %v5178 = vadd.f32 %v5158, 0.5
        %v5179 = vadd.f32 %v5159, 0.5
        %v5180 = vadd.f32 %v5160, 0.5
        %v5181 = vadd.f32 %v5161, 0.5
        %v5182 = vadd.f32 %v5162, 0.5
        %v5183 = vadd.f32 %v5163, 0.5
        %v5184 = vadd.f32 %v5164, 0.5
        %v5185 = vadd.f32 %v5165, 0.5
        %v5189 = vlaneseq
        %v5190 = vshrl.u32 %v5189, 7
        %v5191 = vsub.s32 0, %v5190
        %v5192 = vrot.slane %v2391, %v5191
        %v5193 = vlaneseq
        %v5194 = vshrl.u32 %v5193, 7
        %v5195 = vsub.s32 1, %v5194
        %v5196 = vrot.slane %v2391, %v5195
        %v5197 = vlaneseq
        %v5198 = vshrl.u32 %v5197, 7
        %v5199 = vsub.s32 2, %v5198
        %v5200 = vrot.slane %v2391, %v5199
        %v5201 = vlaneseq
        %v5202 = vshrl.u32 %v5201, 7
        %v5203 = vsub.s32 3, %v5202
        %v5204 = vrot.slane %v2391, %v5203
        %v5205 = vlaneseq
        %v5206 = vshrl.u32 %v5205, 7
        %v5207 = vsub.s32 4, %v5206
        %v5208 = vrot.slane %v2391, %v5207
        %v5209 = vlaneseq
        %v5210 = vshrl.u32 %v5209, 7
        %v5211 = vsub.s32 5, %v5210
        %v5212 = vrot.slane %v2391, %v5211
        %v5213 = vlaneseq
        %v5214 = vshrl.u32 %v5213, 7
        %v5215 = vsub.s32 6, %v5214
        %v5216 = vrot.slane %v2391, %v5215
        %v5217 = vlaneseq
        %v5218 = vshrl.u32 %v5217, 7
        %v5219 = vsub.s32 7, %v5218
        %v5220 = vrot.slane %v2391, %v5219
        %v5221 = vlaneseq
        %v5222 = vshrl.u32 %v5221, 7
        %v5223 = vsub.s32 0, %v5222
        %v5224 = vrot.slane %v2392, %v5223
        %v5225 = vlaneseq
        %v5226 = vshrl.u32 %v5225, 7
        %v5227 = vsub.s32 1, %v5226
        %v5228 = vrot.slane %v2392, %v5227
        %v5229 = vlaneseq
        %v5230 = vshrl.u32 %v5229, 7
        %v5231 = vsub.s32 2, %v5230
        %v5232 = vrot.slane %v2392, %v5231
        %v5233 = vlaneseq
        %v5234 = vshrl.u32 %v5233, 7
        %v5235 = vsub.s32 3, %v5234
        %v5236 = vrot.slane %v2392, %v5235
        %v5237 = vlaneseq
        %v5238 = vshrl.u32 %v5237, 7
        %v5239 = vsub.s32 4, %v5238
        %v5240 = vrot.slane %v2392, %v5239
        %v5241 = vlaneseq
        %v5242 = vshrl.u32 %v5241, 7
        %v5243 = vsub.s32 5, %v5242
        %v5244 = vrot.slane %v2392, %v5243
        %v5245 = vlaneseq
        %v5246 = vshrl.u32 %v5245, 7
        %v5247 = vsub.s32 6, %v5246
        %v5248 = vrot.slane %v2392, %v5247
        %v5249 = vlaneseq
        %v5250 = vshrl.u32 %v5249, 7
        %v5251 = vsub.s32 7, %v5250
        %v5252 = vrot.slane %v2392, %v5251
        %v5253 = vlaneseq
        %v5254 = vshrl.u32 %v5253, 7
        %v5255 = vsub.s32 0, %v5254
        %v5256 = vrot.slane %v2393, %v5255
        %v5257 = vlaneseq
        %v5258 = vshrl.u32 %v5257, 7
        %v5259 = vsub.s32 1, %v5258
        %v5260 = vrot.slane %v2393, %v5259
        %v5261 = vlaneseq
        %v5262 = vshrl.u32 %v5261, 7
        %v5263 = vsub.s32 2, %v5262
        %v5264 = vrot.slane %v2393, %v5263
        %v5265 = vlaneseq
        %v5266 = vshrl.u32 %v5265, 7
        %v5267 = vsub.s32 3, %v5266
        %v5268 = vrot.slane %v2393, %v5267
        %v5289 = vmul.f32 %v5166, %v5192
        %v5290 = vmul.f32 %v5167, %v5196
        %v5291 = vmul.f32 %v5168, %v5200
        %v5292 = vmul.f32 %v5169, %v5204
        %v5293 = vmul.f32 %v5170, %v5208
        %v5294 = vmul.f32 %v5171, %v5212
        %v5295 = vmul.f32 %v5172, %v5216
        %v5296 = vmul.f32 %v5173, %v5220
        %v5297 = vmul.f32 %v5174, %v5224
        %v5298 = vmul.f32 %v5175, %v5228
        %v5299 = vmul.f32 %v5176, %v5232
        %v5300 = vmul.f32 %v5177, %v5236
        %v5301 = vmul.f32 %v5178, %v5240
        %v5302 = vmul.f32 %v5179, %v5244
        %v5303 = vmul.f32 %v5180, %v5248
        %v5304 = vmul.f32 %v5181, %v5252
        %v5305 = vmul.f32 %v5182, %v5256
        %v5306 = vmul.f32 %v5183, %v5260
        %v5307 = vmul.f32 %v5184, %v5264
        %v5308 = vmul.f32 %v5185, %v5268
        %v5329 = vrot.slane %v5289, 1
        %v5330 = vrot.slane %v5290, 1
        %v5331 = vrot.slane %v5291, 1
        %v5332 = vrot.slane %v5292, 1
        %v5333 = vrot.slane %v5293, 1
        %v5334 = vrot.slane %v5294, 1
        %v5335 = vrot.slane %v5295, 1
        %v5336 = vrot.slane %v5296, 1
        %v5337 = vrot.slane %v5297, 1
        %v5338 = vrot.slane %v5298, 1
        %v5339 = vrot.slane %v5299, 1
        %v5340 = vrot.slane %v5300, 1
        %v5341 = vrot.slane %v5301, 1
        %v5342 = vrot.slane %v5302, 1
        %v5343 = vrot.slane %v5303, 1
        %v5344 = vrot.slane %v5304, 1
        %v5345 = vrot.slane %v5305, 1
        %v5346 = vrot.slane %v5306, 1
        %v5347 = vrot.slane %v5307, 1
        %v5348 = vrot.slane %v5308, 1
        %v5369 = vsub.f32 %v5086, %v5329
        %v5370 = vsub.f32 %v5087, %v5330
        %v5371 = vsub.f32 %v5088, %v5331
        %v5372 = vsub.f32 %v5089, %v5332
        %v5373 = vsub.f32 %v5090, %v5333
        %v5374 = vsub.f32 %v5091, %v5334
        %v5375 = vsub.f32 %v5092, %v5335
        %v5376 = vsub.f32 %v5093, %v5336
        %v5377 = vsub.f32 %v5094, %v5337
        %v5378 = vsub.f32 %v5095, %v5338
        %v5379 = vsub.f32 %v5096, %v5339
        %v5380 = vsub.f32 %v5097, %v5340
        %v5381 = vsub.f32 %v5098, %v5341
        %v5382 = vsub.f32 %v5099, %v5342
        %v5383 = vsub.f32 %v5100, %v5343
        %v5384 = vsub.f32 %v5101, %v5344
        %v5385 = vsub.f32 %v5102, %v5345
        %v5386 = vsub.f32 %v5103, %v5346
        %v5387 = vsub.f32 %v5104, %v5347
        %v5388 = vsub.f32 %v5105, %v5348
        %v5409 = vcombine.low %v4946, %v4947
        %v5410 = vcombine.low %v4948, %v4949
        %v5411 = vcombine.low %v4950, %v4951
        %v5412 = vcombine.low %v4952, %v4953
        %v5414 = vunpack.c.l.s4 1966171168
        %v5415 = vunpack.c.0.s8 %v5414
        %v5416 = vlaneseq
        %v5417 = vshrl.u32 %v5416, 7
        %v5418 = vsub.s32 %v5415, %v5417
        %v5419 = vrot.slane %v5409, %v5418
        %v5421 = vunpack.c.l.s4 1966171168
        %v5422 = vunpack.c.0.s8 %v5421
        %v5423 = vlaneseq
        %v5424 = vshrl.u32 %v5423, 7
        %v5425 = vsub.s32 %v5422, %v5424
        %v5426 = vrot.slane %v5410, %v5425
        %v5428 = vunpack.c.l.s4 1966171168
        %v5429 = vunpack.c.0.s8 %v5428
        %v5430 = vlaneseq
        %v5431 = vshrl.u32 %v5430, 7
        %v5432 = vsub.s32 %v5429, %v5431
        %v5433 = vrot.slane %v5411, %v5432
        %v5435 = vunpack.c.l.s4 1966171168
        %v5436 = vunpack.c.0.s8 %v5435
        %v5437 = vlaneseq
        %v5438 = vshrl.u32 %v5437, 7
        %v5439 = vsub.s32 %v5436, %v5438
        %v5440 = vrot.slane %v5412, %v5439
        %v5441 = vcombine.low %v5419, %v5426
        %v5442 = vcombine.low %v5433, %v5440
        %v5444 = vunpack.c.l.s4 1966171168
        %v5445 = vunpack.c.0.s8 %v5444
        %v5446 = vlaneseq
        %v5447 = vshrl.u32 %v5446, 7
        %v5448 = vsub.s32 %v5445, %v5447
        %v5449 = vrot.slane %v5441, %v5448
        %v5451 = vunpack.c.l.s4 1966171168
        %v5452 = vunpack.c.0.s8 %v5451
        %v5453 = vlaneseq
        %v5454 = vshrl.u32 %v5453, 7
        %v5455 = vsub.s32 %v5452, %v5454
        %v5456 = vrot.slane %v5442, %v5455
        %v5457 = vcombine.low %v5449, %v5456
        %v5458 = vcombine.low %v4954, %v4955
        %v5459 = vcombine.low %v4956, %v4957
        %v5460 = vcombine.low %v4958, %v4959
        %v5461 = vcombine.low %v4960, %v4961
        %v5463 = vunpack.c.l.s4 1966171168
        %v5464 = vunpack.c.0.s8 %v5463
        %v5465 = vlaneseq
        %v5466 = vshrl.u32 %v5465, 7
        %v5467 = vsub.s32 %v5464, %v5466
        %v5468 = vrot.slane %v5458, %v5467
        %v5470 = vunpack.c.l.s4 1966171168
        %v5471 = vunpack.c.0.s8 %v5470
        %v5472 = vlaneseq
        %v5473 = vshrl.u32 %v5472, 7
        %v5474 = vsub.s32 %v5471, %v5473
        %v5475 = vrot.slane %v5459, %v5474
        %v5477 = vunpack.c.l.s4 1966171168
        %v5478 = vunpack.c.0.s8 %v5477
        %v5479 = vlaneseq
        %v5480 = vshrl.u32 %v5479, 7
        %v5481 = vsub.s32 %v5478, %v5480
        %v5482 = vrot.slane %v5460, %v5481
        %v5484 = vunpack.c.l.s4 1966171168
        %v5485 = vunpack.c.0.s8 %v5484
        %v5486 = vlaneseq
        %v5487 = vshrl.u32 %v5486, 7
        %v5488 = vsub.s32 %v5485, %v5487
        %v5489 = vrot.slane %v5461, %v5488
        %v5490 = vcombine.low %v5468, %v5475
        %v5491 = vcombine.low %v5482, %v5489
        %v5493 = vunpack.c.l.s4 1966171168
        %v5494 = vunpack.c.0.s8 %v5493
        %v5495 = vlaneseq
        %v5496 = vshrl.u32 %v5495, 7
        %v5497 = vsub.s32 %v5494, %v5496
        %v5498 = vrot.slane %v5490, %v5497
        %v5500 = vunpack.c.l.s4 1966171168
        %v5501 = vunpack.c.0.s8 %v5500
        %v5502 = vlaneseq
        %v5503 = vshrl.u32 %v5502, 7
        %v5504 = vsub.s32 %v5501, %v5503
        %v5505 = vrot.slane %v5491, %v5504
        %v5506 = vcombine.low %v5498, %v5505
        %v5507 = vcombine.low %v4962, %v4963
        %v5508 = vcombine.low %v4964, %v4965
        %v5510 = vunpack.c.l.s4 1966171168
        %v5511 = vunpack.c.0.s8 %v5510
        %v5512 = vlaneseq
        %v5513 = vshrl.u32 %v5512, 7
        %v5514 = vsub.s32 %v5511, %v5513
        %v5515 = vrot.slane %v5507, %v5514
        %v5517 = vunpack.c.l.s4 1966171168
        %v5518 = vunpack.c.0.s8 %v5517
        %v5519 = vlaneseq
        %v5520 = vshrl.u32 %v5519, 7
        %v5521 = vsub.s32 %v5518, %v5520
        %v5522 = vrot.slane %v5508, %v5521
        %v5523 = vcombine.low %v5515, %v5522
        %v5525 = vunpack.c.l.s4 1966171168
        %v5526 = vunpack.c.0.s8 %v5525
        %v5527 = vlaneseq
        %v5528 = vshrl.u32 %v5527, 7
        %v5529 = vsub.s32 %v5526, %v5528
        %v5530 = vrot.slane %v5523, %v5529
        %5534 = vst [vmem:[%s341] ss:$4 sm:$0xff] %v5457
        %s5535 = scalar_lea.vmem %s341, 32
        %5536 = vst [vmem:[%s5535] ss:$4 sm:$0xff] %v5506
        %v5537 = vlaneseq
        %vm5538 = vcmp.ge.s32.totalorder %v5537, 0
        %vm5539 = vcmp.lt.s32.totalorder %v5537, 512
        %vm5540 = vmand %vm5538, %vm5539
        %s5541 = scalar_lea.vmem %s341, 64
        %5542 = vst.msk [vmem:[%s5541] ss:$4 sm:$0xf] %vm5540, %v5530
        %v5563 = vcombine.low %v4986, %v4987
        %v5564 = vcombine.low %v4988, %v4989
        %v5565 = vcombine.low %v4990, %v4991
        %v5566 = vcombine.low %v4992, %v4993
        %v5568 = vunpack.c.l.s4 1966171168
        %v5569 = vunpack.c.0.s8 %v5568
        %v5570 = vlaneseq
        %v5571 = vshrl.u32 %v5570, 7
        %v5572 = vsub.s32 %v5569, %v5571
        %v5573 = vrot.slane %v5563, %v5572
        %v5575 = vunpack.c.l.s4 1966171168
        %v5576 = vunpack.c.0.s8 %v5575
        %v5577 = vlaneseq
        %v5578 = vshrl.u32 %v5577, 7
        %v5579 = vsub.s32 %v5576, %v5578
        %v5580 = vrot.slane %v5564, %v5579
        %v5582 = vunpack.c.l.s4 1966171168
        %v5583 = vunpack.c.0.s8 %v5582
        %v5584 = vlaneseq
        %v5585 = vshrl.u32 %v5584, 7
        %v5586 = vsub.s32 %v5583, %v5585
        %v5587 = vrot.slane %v5565, %v5586
        %v5589 = vunpack.c.l.s4 1966171168
        %v5590 = vunpack.c.0.s8 %v5589
        %v5591 = vlaneseq
        %v5592 = vshrl.u32 %v5591, 7
        %v5593 = vsub.s32 %v5590, %v5592
        %v5594 = vrot.slane %v5566, %v5593
        %v5595 = vcombine.high %v5573, %v5580
        %v5596 = vcombine.high %v5587, %v5594
        %v5598 = vunpack.c.l.s4 1966171168
        %v5599 = vunpack.c.0.s8 %v5598
        %v5600 = vlaneseq
        %v5601 = vshrl.u32 %v5600, 7
        %v5602 = vsub.s32 %v5599, %v5601
        %v5603 = vrot.slane %v5595, %v5602
        %v5605 = vunpack.c.l.s4 1966171168
        %v5606 = vunpack.c.0.s8 %v5605
        %v5607 = vlaneseq
        %v5608 = vshrl.u32 %v5607, 7
        %v5609 = vsub.s32 %v5606, %v5608
        %v5610 = vrot.slane %v5596, %v5609
        %v5611 = vcombine.low %v5603, %v5610
        %v5612 = vcombine.low %v4994, %v4995
        %v5613 = vcombine.low %v4996, %v4997
        %v5614 = vcombine.low %v4998, %v4999
        %v5615 = vcombine.low %v5000, %v5001
        %v5617 = vunpack.c.l.s4 1966171168
        %v5618 = vunpack.c.0.s8 %v5617
        %v5619 = vlaneseq
        %v5620 = vshrl.u32 %v5619, 7
        %v5621 = vsub.s32 %v5618, %v5620
        %v5622 = vrot.slane %v5612, %v5621
        %v5624 = vunpack.c.l.s4 1966171168
        %v5625 = vunpack.c.0.s8 %v5624
        %v5626 = vlaneseq
        %v5627 = vshrl.u32 %v5626, 7
        %v5628 = vsub.s32 %v5625, %v5627
        %v5629 = vrot.slane %v5613, %v5628
        %v5631 = vunpack.c.l.s4 1966171168
        %v5632 = vunpack.c.0.s8 %v5631
        %v5633 = vlaneseq
        %v5634 = vshrl.u32 %v5633, 7
        %v5635 = vsub.s32 %v5632, %v5634
        %v5636 = vrot.slane %v5614, %v5635
        %v5638 = vunpack.c.l.s4 1966171168
        %v5639 = vunpack.c.0.s8 %v5638
        %v5640 = vlaneseq
        %v5641 = vshrl.u32 %v5640, 7
        %v5642 = vsub.s32 %v5639, %v5641
        %v5643 = vrot.slane %v5615, %v5642
        %v5644 = vcombine.high %v5622, %v5629
        %v5645 = vcombine.high %v5636, %v5643
        %v5647 = vunpack.c.l.s4 1966171168
        %v5648 = vunpack.c.0.s8 %v5647
        %v5649 = vlaneseq
        %v5650 = vshrl.u32 %v5649, 7
        %v5651 = vsub.s32 %v5648, %v5650
        %v5652 = vrot.slane %v5644, %v5651
        %v5654 = vunpack.c.l.s4 1966171168
        %v5655 = vunpack.c.0.s8 %v5654
        %v5656 = vlaneseq
        %v5657 = vshrl.u32 %v5656, 7
        %v5658 = vsub.s32 %v5655, %v5657
        %v5659 = vrot.slane %v5645, %v5658
        %v5660 = vcombine.low %v5652, %v5659
        %v5661 = vcombine.low %v5002, %v5003
        %v5662 = vcombine.low %v5004, %v5005
        %v5664 = vunpack.c.l.s4 1966171168
        %v5665 = vunpack.c.0.s8 %v5664
        %v5666 = vlaneseq
        %v5667 = vshrl.u32 %v5666, 7
        %v5668 = vsub.s32 %v5665, %v5667
        %v5669 = vrot.slane %v5661, %v5668
        %v5671 = vunpack.c.l.s4 1966171168
        %v5672 = vunpack.c.0.s8 %v5671
        %v5673 = vlaneseq
        %v5674 = vshrl.u32 %v5673, 7
        %v5675 = vsub.s32 %v5672, %v5674
        %v5676 = vrot.slane %v5662, %v5675
        %v5677 = vcombine.high %v5669, %v5676
        %v5679 = vunpack.c.l.s4 1966171168
        %v5680 = vunpack.c.0.s8 %v5679
        %v5681 = vlaneseq
        %v5682 = vshrl.u32 %v5681, 7
        %v5683 = vsub.s32 %v5680, %v5682
        %v5684 = vrot.slane %v5677, %v5683
        %s5688 = scalar_lea.vmem %s341, 1
        %5689 = vst [vmem:[%s5688] ss:$4 sm:$0xff] %v5611
        %s5690 = scalar_lea.vmem %s341, 33
        %5691 = vst [vmem:[%s5690] ss:$4 sm:$0xff] %v5660
        %s5692 = scalar_lea.vmem %s341, 65
        %5693 = vst.msk [vmem:[%s5692] ss:$4 sm:$0xf] %vm5540, %v5684
        %v5714 = vcombine.low %v5369, %v5370
        %v5715 = vcombine.low %v5371, %v5372
        %v5716 = vcombine.low %v5373, %v5374
        %v5717 = vcombine.low %v5375, %v5376
        %v5719 = vunpack.c.l.s4 1966171168
        %v5720 = vunpack.c.0.s8 %v5719
        %v5721 = vlaneseq
        %v5722 = vshrl.u32 %v5721, 7
        %v5723 = vsub.s32 %v5720, %v5722
        %v5724 = vrot.slane %v5714, %v5723
        %v5726 = vunpack.c.l.s4 1966171168
        %v5727 = vunpack.c.0.s8 %v5726
        %v5728 = vlaneseq
        %v5729 = vshrl.u32 %v5728, 7
        %v5730 = vsub.s32 %v5727, %v5729
        %v5731 = vrot.slane %v5715, %v5730
        %v5733 = vunpack.c.l.s4 1966171168
        %v5734 = vunpack.c.0.s8 %v5733
        %v5735 = vlaneseq
        %v5736 = vshrl.u32 %v5735, 7
        %v5737 = vsub.s32 %v5734, %v5736
        %v5738 = vrot.slane %v5716, %v5737
        %v5740 = vunpack.c.l.s4 1966171168
        %v5741 = vunpack.c.0.s8 %v5740
        %v5742 = vlaneseq
        %v5743 = vshrl.u32 %v5742, 7
        %v5744 = vsub.s32 %v5741, %v5743
        %v5745 = vrot.slane %v5717, %v5744
        %v5746 = vcombine.low %v5724, %v5731
        %v5747 = vcombine.low %v5738, %v5745
        %v5749 = vunpack.c.l.s4 1966171168
        %v5750 = vunpack.c.0.s8 %v5749
        %v5751 = vlaneseq
        %v5752 = vshrl.u32 %v5751, 7
        %v5753 = vsub.s32 %v5750, %v5752
        %v5754 = vrot.slane %v5746, %v5753
        %v5756 = vunpack.c.l.s4 1966171168
        %v5757 = vunpack.c.0.s8 %v5756
        %v5758 = vlaneseq
        %v5759 = vshrl.u32 %v5758, 7
        %v5760 = vsub.s32 %v5757, %v5759
        %v5761 = vrot.slane %v5747, %v5760
        %v5762 = vcombine.low %v5754, %v5761
        %v5763 = vcombine.low %v5377, %v5378
        %v5764 = vcombine.low %v5379, %v5380
        %v5765 = vcombine.low %v5381, %v5382
        %v5766 = vcombine.low %v5383, %v5384
        %v5768 = vunpack.c.l.s4 1966171168
        %v5769 = vunpack.c.0.s8 %v5768
        %v5770 = vlaneseq
        %v5771 = vshrl.u32 %v5770, 7
        %v5772 = vsub.s32 %v5769, %v5771
        %v5773 = vrot.slane %v5763, %v5772
        %v5775 = vunpack.c.l.s4 1966171168
        %v5776 = vunpack.c.0.s8 %v5775
        %v5777 = vlaneseq
        %v5778 = vshrl.u32 %v5777, 7
        %v5779 = vsub.s32 %v5776, %v5778
        %v5780 = vrot.slane %v5764, %v5779
        %v5782 = vunpack.c.l.s4 1966171168
        %v5783 = vunpack.c.0.s8 %v5782
        %v5784 = vlaneseq
        %v5785 = vshrl.u32 %v5784, 7
        %v5786 = vsub.s32 %v5783, %v5785
        %v5787 = vrot.slane %v5765, %v5786
        %v5789 = vunpack.c.l.s4 1966171168
        %v5790 = vunpack.c.0.s8 %v5789
        %v5791 = vlaneseq
        %v5792 = vshrl.u32 %v5791, 7
        %v5793 = vsub.s32 %v5790, %v5792
        %v5794 = vrot.slane %v5766, %v5793
        %v5795 = vcombine.low %v5773, %v5780
        %v5796 = vcombine.low %v5787, %v5794
        %v5798 = vunpack.c.l.s4 1966171168
        %v5799 = vunpack.c.0.s8 %v5798
        %v5800 = vlaneseq
        %v5801 = vshrl.u32 %v5800, 7
        %v5802 = vsub.s32 %v5799, %v5801
        %v5803 = vrot.slane %v5795, %v5802
        %v5805 = vunpack.c.l.s4 1966171168
        %v5806 = vunpack.c.0.s8 %v5805
        %v5807 = vlaneseq
        %v5808 = vshrl.u32 %v5807, 7
        %v5809 = vsub.s32 %v5806, %v5808
        %v5810 = vrot.slane %v5796, %v5809
        %v5811 = vcombine.low %v5803, %v5810
        %v5812 = vcombine.low %v5385, %v5386
        %v5813 = vcombine.low %v5387, %v5388
        %v5815 = vunpack.c.l.s4 1966171168
        %v5816 = vunpack.c.0.s8 %v5815
        %v5817 = vlaneseq
        %v5818 = vshrl.u32 %v5817, 7
        %v5819 = vsub.s32 %v5816, %v5818
        %v5820 = vrot.slane %v5812, %v5819
        %v5822 = vunpack.c.l.s4 1966171168
        %v5823 = vunpack.c.0.s8 %v5822
        %v5824 = vlaneseq
        %v5825 = vshrl.u32 %v5824, 7
        %v5826 = vsub.s32 %v5823, %v5825
        %v5827 = vrot.slane %v5813, %v5826
        %v5828 = vcombine.low %v5820, %v5827
        %v5830 = vunpack.c.l.s4 1966171168
        %v5831 = vunpack.c.0.s8 %v5830
        %v5832 = vlaneseq
        %v5833 = vshrl.u32 %v5832, 7
        %v5834 = vsub.s32 %v5831, %v5833
        %v5835 = vrot.slane %v5828, %v5834
        %s5839 = scalar_lea.vmem %s341, 2
        %5840 = vst [vmem:[%s5839] ss:$4 sm:$0xff] %v5762
        %s5841 = scalar_lea.vmem %s341, 34
        %5842 = vst [vmem:[%s5841] ss:$4 sm:$0xff] %v5811
        %s5843 = scalar_lea.vmem %s341, 66
        %5844 = vst.msk [vmem:[%s5843] ss:$4 sm:$0xf] %vm5540, %v5835
        %s5845 = sand.u32 %s153, 1
        %s5846 = scalar_lea.sflag [#allocation3], %s5845
        %s5847 = sand.u32 %s153, 1
        %s5848 = smul.addr %s5847, 480
        %s5849 = scalar_lea.vmem [#allocation2], %s5848
        %s5850 = sand.u32 %s179, 1
        %s5851 = scalar_lea.sflag [#allocation5], %s5850
        %s5852 = sand.u32 %s179, 1
        %s5853 = smul.addr %s5852, 480
        %s5854 = scalar_lea.vmem [#allocation4], %s5853
        %s5855 = smul.u32 20, %s25
        %p5856 = scmp.lt.s32.totalorder %s5855, 39
        %s5857 = scalar_select %p5856, %s5855, 39
        %s5858 = smul.addr %s5857, 4
        %s5859 = scalar_lea.vmem %s7, %s5858
        // Predicated region
        $region41: #{metalearner_forward.1} parent=39 // pred_check
          %p5860 = pneg %p163
        $region42: #{metalearner_forward.1} parent=39 // pred_check_branch
          %5862 = sbr.rel (%p5860) target = $region44
        $region43: #{metalearner_forward.1} parent=39 // pred_region
          %s5863 = smul.u32 20, %s25
          %s5865 = ssub.s32 7680, 7680
          %5866 = vsyncadd %s5846, %s5865
          %s5867 = smul.addr %s5863, 128
          %s5868 = scalar_lea.hbm %s5, %s5867
          %s5869 = sshll.u32 %s5849, 4
          %s5870 = int_to_ptr.vmem [resolvable:$true] %s5869
          %5875 = dma.vmem_to_hbm [thread:$0]  %s5870, 7680, %s5868, %s5846, 2560, 5120, 160
        $region44: #{metalearner_forward.1} parent=39 // pred_fallthru
          _
        // Predicated region
        $region45: #{metalearner_forward.1} parent=39 // pred_check
          %p5876 = pneg %p189
        $region46: #{metalearner_forward.1} parent=39 // pred_check_branch
          %5878 = sbr.rel (%p5876) target = $region48
        $region47: #{metalearner_forward.1} parent=39 // pred_region
          %s5879 = smul.u32 20, %s25
          %s5881 = ssub.s32 7680, 7680
          %5882 = vsyncadd %s5851, %s5881
          %s5883 = smul.addr %s5879, 128
          %s5884 = scalar_lea.hbm %s6, %s5883
          %s5885 = sshll.u32 %s5854, 4
          %s5886 = int_to_ptr.vmem [resolvable:$true] %s5885
          %5891 = dma.vmem_to_hbm [thread:$0]  %s5886, 7680, %s5884, %s5851, 2560, 5120, 160
        $region48: #{metalearner_forward.1} parent=39 // pred_fallthru
          _
        // Predicated region
        $region49: #{metalearner_forward.1} parent=39 // pred_check
          %p5892 = pneg %p215
        $region50: #{metalearner_forward.1} parent=39 // pred_check_branch
          %5894 = sbr.rel (%p5892) target = $region52
        $region51: #{metalearner_forward.1} parent=39 // pred_region
          %s5895 = smul.u32 20, %s25
        $region52: #{metalearner_forward.1} parent=39 // pred_fallthru
          _
      $region40: #{metalearner_forward.1} parent=5 // pred_fallthru
        _
      %p5896 = scmp.le.s32.totalorder 2, %s20
      // Predicated region
      $region53: #{metalearner_forward.1} parent=5 // pred_check
        %p5897 = pneg %p5896
      $region54: #{metalearner_forward.1} parent=5 // pred_check_branch
        %5899 = sbr.rel (%p5897) target = $region56
      $region55: #{metalearner_forward.1} parent=5 // pred_region
        %s5900 = ssub.s32 %s20, 2
        // Predicated region
        $region57: #{metalearner_forward.1} parent=55 // pred_check
          %p5901 = pneg %p169
        $region58: #{metalearner_forward.1} parent=55 // pred_check_branch
          %5903 = sbr.rel (%p5901) target = $region60
        $region59: #{metalearner_forward.1} parent=55 // pred_region
          %s5904 = sand.u32 %s154, 1
          %s5905 = scalar_lea.sflag [#allocation3], %s5904
          %s5906 = sand.u32 %s154, 1
          %s5907 = smul.addr %s5906, 480
          %s5908 = scalar_lea.vmem [#allocation2], %s5907
          %5909 = dma.done %s5905, 7680
        $region60: #{metalearner_forward.1} parent=55 // pred_fallthru
          _
        // Predicated region
        $region61: #{metalearner_forward.1} parent=55 // pred_check
          %p5910 = pneg %p195
        $region62: #{metalearner_forward.1} parent=55 // pred_check_branch
          %5912 = sbr.rel (%p5910) target = $region64
        $region63: #{metalearner_forward.1} parent=55 // pred_region
          %s5913 = sand.u32 %s180, 1
          %s5914 = scalar_lea.sflag [#allocation5], %s5913
          %s5915 = sand.u32 %s180, 1
          %s5916 = smul.addr %s5915, 480
          %s5917 = scalar_lea.vmem [#allocation4], %s5916
          %5918 = dma.done %s5914, 7680
        $region64: #{metalearner_forward.1} parent=55 // pred_fallthru
          _
        // Predicated region
        $region65: #{metalearner_forward.1} parent=55 // pred_check
          %p5919 = pneg %p221
        $region66: #{metalearner_forward.1} parent=55 // pred_check_branch
          %5921 = sbr.rel (%p5919) target = $region68
        $region67: #{metalearner_forward.1} parent=55 // pred_region
          %s5922 = smul.u32 20, %s26
          %p5923 = scmp.lt.s32.totalorder %s5922, 39
          %s5924 = scalar_select %p5923, %s5922, 39
          %s5925 = smul.addr %s5924, 4
          %s5926 = scalar_lea.vmem %s7, %s5925
        $region68: #{metalearner_forward.1} parent=55 // pred_fallthru
          _
      $region56: #{metalearner_forward.1} parent=5 // pred_fallthru
        _
    $region6: #{metalearner_forward.1} parent=1 // loop_footer
      %s24 = sadd.s32 1, %s20
    $region7: #{metalearner_forward.1} parent=1 // loop_footer_branch
      %19 = sbr.rel target = $region3
    $region8: #{metalearner_forward.1} parent=1 // loop_exit
      _
    %5927 = vsyncpa [#allocation3], 1
    %s5928 = scalar_lea.sflag [#allocation3], 1
    %5929 = vsyncpa %s5928, 1
    %5930 = vsyncpa [#allocation5], 1
    %s5931 = scalar_lea.sflag [#allocation5], 1
    %5932 = vsyncpa %s5931, 1

</llo_original>
